<compile_context>
chip_gen: v6e
topology: v6e:2x2x1
jax: 0.10.0
libtpu: 0.0.40
codegen_flags: <defaults>
</compile_context>

<pallas_src>
import jax
import jax.numpy as jnp
import numpy as np
from jax.experimental import pallas as pl
from jax.experimental.pallas import tpu as pltpu

NUM_CLASSES = 6
HID_DIM = 32          # CONFIG['hid_dim']
CLIP_FEAT = 1024      # CLIP RN50 visual output dim (cls_head input = 1024)


def _quick_gelu(x):
    return x * jax.nn.sigmoid(1.702 * x)


# ---------------------------------------------------------------------------
# Single fused kernel:
#   x_flat (B, H*W*C) --bf16--> [768x1024 MXU matmul] -> feat (B,1024) f32
#   -> Linear(1024->32) -> QuickGELU -> Linear(32->16) -> QuickGELU
#   -> Linear(16->8)   -> QuickGELU -> Linear(8->6)    -> logits (B, 6)
# Everything stays resident in VMEM; only the logits are stored to HBM.
# ---------------------------------------------------------------------------
def fused_classifier_kernel(x_ref, wv_ref, bv_ref,
                            w1_ref, b1_ref, w2_ref, b2_ref,
                            w3_ref, b3_ref, w4_ref, b4_ref, o_ref):
    # bf16 operands for the MXU, f32 accumulation.
    x = x_ref[...].astype(jnp.bfloat16)
    feat = jnp.dot(x, wv_ref[...], preferred_element_type=jnp.float32) + bv_ref[...]

    h = _quick_gelu(jnp.dot(feat, w1_ref[...],
                            preferred_element_type=jnp.float32) + b1_ref[...])
    h = _quick_gelu(jnp.dot(h, w2_ref[...],
                            preferred_element_type=jnp.float32) + b2_ref[...])
    h = _quick_gelu(jnp.dot(h, w3_ref[...],
                            preferred_element_type=jnp.float32) + b3_ref[...])
    o_ref[...] = jnp.dot(h, w4_ref[...],
                         preferred_element_type=jnp.float32) + b4_ref[...]


def fused_classifier(x_flat, wv_bf16, bv, head_params):
    (w1, b1), (w2, b2), (w3, b3), (w4, b4) = head_params
    B, f_in = x_flat.shape
    f_out = wv_bf16.shape[1]

    flops = 2 * B * (f_in * f_out
                     + f_out * HID_DIM
                     + HID_DIM * (HID_DIM // 2)
                     + (HID_DIM // 2) * (HID_DIM // 4)
                     + (HID_DIM // 4) * NUM_CLASSES)
    transcendentals = B * (HID_DIM + HID_DIM // 2 + HID_DIM // 4)   # sigmoids
    args = (x_flat, wv_bf16, bv, w1, b1, w2, b2, w3, b3, w4, b4)
    bytes_accessed = (sum(int(a.size) * a.dtype.itemsize for a in args)
                      + B * NUM_CLASSES * 4)

    return pl.pallas_call(
        fused_classifier_kernel,
        out_shape=jax.ShapeDtypeStruct((B, NUM_CLASSES), jnp.float32),
        # No grid / BlockSpecs: all (small) operands live whole in VMEM,
        # single launch, no per-step pipeline bookkeeping.
        cost_estimate=pl.CostEstimate(flops=flops,
                                      transcendentals=transcendentals,
                                      bytes_accessed=bytes_accessed),
        compiler_params=pltpu.CompilerParams(vmem_limit_bytes=32 * 1024 * 1024),
    )(*args)


# ---------------------------------------------------------------------------
# Parameter-prep: fold normalization + NCHW permutation into (wv, bv).
# ---------------------------------------------------------------------------
def fold_norm_into_visual(wv, bv, mean_c, std_c, H, W, C):
    """wv: (C*H*W, F) expecting normalized NCHW-flattened input; bv: (1, F).

    Returns (wv_folded_bf16, bv_folded_f32) such that
        x_nhwc.reshape(B, H*W*C) @ wv_folded + bv_folded
     == ((x_nchw - mean)/std).reshape(B, C*H*W) @ wv + bv
    """
    F = wv.shape[1]
    inv_std = 1.0 / std_c                                    # (C,)
    m_vec = jnp.repeat(mean_c, H * W)                        # NCHW-flat order
    s_vec = jnp.repeat(inv_std, H * W)
    w_scaled = wv * s_vec[:, None]                           # (C*H*W, F)
    b_folded = bv - m_vec[None, :] @ w_scaled                # (1, F)
    # permute rows: NCHW-flat index (c,h,w) -> NHWC-flat index (h,w,c)
    w_folded = jnp.transpose(w_scaled.reshape(C, H, W, F),
                             (1, 2, 0, 3)).reshape(H * W * C, F)
    return w_folded.astype(jnp.bfloat16), b_folded.astype(jnp.float32)


def classifier_forward(x, wv_folded, bv_folded, head_params):
    B = x.shape[0]
    x_flat = x.reshape(B, -1)        # NHWC flatten: zero-copy, no transpose
    return fused_classifier(x_flat, wv_folded, bv_folded, head_params)


def _linear_init(key, fan_in, fan_out, scale=0.02):
    kw, kb = jax.random.split(key)
    w = scale * jax.random.normal(kw, (fan_in, fan_out), dtype=jnp.float32)
    b = scale * jax.random.normal(kb, (1, fan_out), dtype=jnp.float32)
    return w, b


if __name__ == "__main__":
    key = jax.random.PRNGKey(0)
    k_x, k_vis, k1, k2, k3, k4 = jax.random.split(key, 6)

    B, H, W, C = 2, 16, 16, 3
    # image-like input in [0, 255], NHWC (PyTorch forward permutes to NCHW)
    x = jax.random.uniform(k_x, (B, H, W, C), dtype=jnp.float32) * 255.0

    mean_c = 255.0 * jnp.array([0.485, 0.456, 0.406], dtype=jnp.float32)   # (3,)
    std_c = 255.0 * jnp.array([0.229, 0.224, 0.225], dtype=jnp.float32)    # (3,)

    # deterministic synthetic parameters
    vis_params = _linear_init(k_vis, C * H * W, CLIP_FEAT)            # 768 -> 1024
    head_params = (
        _linear_init(k1, CLIP_FEAT, HID_DIM),                         # 1024 -> 32
        _linear_init(k2, HID_DIM, HID_DIM // 2),                      # 32 -> 16
        _linear_init(k3, HID_DIM // 2, HID_DIM // 4),                 # 16 -> 8
        _linear_init(k4, HID_DIM // 4, NUM_CLASSES),                  # 8 -> 6
    )

    # one-time parameter prep (normalization + permutation folded into weights)
    wv_folded, bv_folded = fold_norm_into_visual(vis_params[0], vis_params[1],
                                                 mean_c, std_c, H, W, C)

    logits = classifier_forward(x, wv_folded, bv_folded, head_params)
    logits = jax.block_until_ready(logits)

    # pure-JAX f32 reference following the original PyTorch path
    def ref_forward(x):
        xn = (x - mean_c.reshape(1, 1, 1, 3)) / std_c.reshape(1, 1, 1, 3)
        xf = jnp.transpose(xn, (0, 3, 1, 2)).reshape(B, C * H * W)
        h = xf @ vis_params[0] + vis_params[1]
        for (w, b) in head_params[:-1]:
            h = h @ w + b
            h = h * jax.nn.sigmoid(1.702 * h)
        return h @ head_params[-1][0] + head_params[-1][1]

    ref = ref_forward(x)
    np.testing.assert_allclose(np.asarray(logits), np.asarray(ref),
                               rtol=1e-2, atol=1e-2)

    assert logits.shape == (B, NUM_CLASSES)
    print("KERNEL_OK")
</pallas_src>

<mosaic_0001>
module attributes {stable_mosaic.version = 11 : i64} {
  func.func @fused_classifier_kernel(%arg0: memref<2x768xf32, #tpu.memory_space<vmem>>, %arg1: memref<768x1024xbf16, #tpu.memory_space<vmem>>, %arg2: memref<1x1024xf32, #tpu.memory_space<vmem>>, %arg3: memref<1024x32xf32, #tpu.memory_space<vmem>>, %arg4: memref<1x32xf32, #tpu.memory_space<vmem>>, %arg5: memref<32x16xf32, #tpu.memory_space<vmem>>, %arg6: memref<1x16xf32, #tpu.memory_space<vmem>>, %arg7: memref<16x8xf32, #tpu.memory_space<vmem>>, %arg8: memref<1x8xf32, #tpu.memory_space<vmem>>, %arg9: memref<8x6xf32, #tpu.memory_space<vmem>>, %arg10: memref<1x6xf32, #tpu.memory_space<vmem>>, %arg11: memref<2x6xf32, #tpu.memory_space<vmem>>) attributes {dimension_semantics = [], scalar_prefetch = 0 : i64, scratch_operands = 0 : i64, tpu.core_type = #tpu.core_type<tc>} {
    %c0 = arith.constant 0 : index
    %c0_0 = arith.constant 0 : index
    %0 = vector.load %arg0[%c0, %c0_0] : memref<2x768xf32, #tpu.memory_space<vmem>>, vector<2x768xf32>
    %1 = arith.truncf %0 : vector<2x768xf32> to vector<2x768xbf16>
    %c0_1 = arith.constant 0 : index
    %c0_2 = arith.constant 0 : index
    %2 = vector.load %arg1[%c0_1, %c0_2] : memref<768x1024xbf16, #tpu.memory_space<vmem>>, vector<768x1024xbf16>
    %cst = arith.constant dense<0.000000e+00> : vector<2x1024xf32>
    %3 = tpu.matmul %1, %2, %cst {dimension_numbers = #tpu.dot_dimension_numbers<[1], [0], [0], [1], [0, 0, 1, 1], [], []>} : vector<2x768xbf16>, vector<768x1024xbf16>, vector<2x1024xf32> -> vector<2x1024xf32>
    %c0_3 = arith.constant 0 : index
    %c0_4 = arith.constant 0 : index
    %4 = vector.load %arg2[%c0_3, %c0_4] : memref<1x1024xf32, #tpu.memory_space<vmem>>, vector<1x1024xf32>
    %5 = vector.broadcast %4 : vector<1x1024xf32> to vector<2x1024xf32>
    %6 = arith.addf %3, %5 : vector<2x1024xf32>
    %c0_5 = arith.constant 0 : index
    %c0_6 = arith.constant 0 : index
    %7 = vector.load %arg3[%c0_5, %c0_6] : memref<1024x32xf32, #tpu.memory_space<vmem>>, vector<1024x32xf32>
    %cst_7 = arith.constant dense<0.000000e+00> : vector<2x32xf32>
    %8 = tpu.matmul %6, %7, %cst_7 {dimension_numbers = #tpu.dot_dimension_numbers<[1], [0], [0], [1], [0, 0, 1, 1], [], []>} : vector<2x1024xf32>, vector<1024x32xf32>, vector<2x32xf32> -> vector<2x32xf32>
    %c0_8 = arith.constant 0 : index
    %c0_9 = arith.constant 0 : index
    %9 = vector.load %arg4[%c0_8, %c0_9] : memref<1x32xf32, #tpu.memory_space<vmem>>, vector<1x32xf32>
    %10 = vector.broadcast %9 : vector<1x32xf32> to vector<2x32xf32>
    %11 = arith.addf %8, %10 : vector<2x32xf32>
    %cst_10 = arith.constant 1.702000e+00 : f32
    %12 = vector.broadcast %cst_10 : f32 to vector<2x32xf32>
    %13 = arith.mulf %12, %11 : vector<2x32xf32>
    %14 = arith.negf %13 : vector<2x32xf32>
    %15 = math.exp %14 : vector<2x32xf32>
    %cst_11 = arith.constant 1.000000e+00 : f32
    %16 = vector.broadcast %cst_11 : f32 to vector<2x32xf32>
    %17 = arith.addf %16, %15 : vector<2x32xf32>
    %18 = arith.divf %16, %17 : vector<2x32xf32>
    %19 = arith.mulf %11, %18 : vector<2x32xf32>
    %c0_12 = arith.constant 0 : index
    %c0_13 = arith.constant 0 : index
    %20 = vector.load %arg5[%c0_12, %c0_13] : memref<32x16xf32, #tpu.memory_space<vmem>>, vector<32x16xf32>
    %cst_14 = arith.constant dense<0.000000e+00> : vector<2x16xf32>
    %21 = tpu.matmul %19, %20, %cst_14 {dimension_numbers = #tpu.dot_dimension_numbers<[1], [0], [0], [1], [0, 0, 1, 1], [], []>} : vector<2x32xf32>, vector<32x16xf32>, vector<2x16xf32> -> vector<2x16xf32>
    %c0_15 = arith.constant 0 : index
    %c0_16 = arith.constant 0 : index
    %22 = vector.load %arg6[%c0_15, %c0_16] : memref<1x16xf32, #tpu.memory_space<vmem>>, vector<1x16xf32>
    %23 = vector.broadcast %22 : vector<1x16xf32> to vector<2x16xf32>
    %24 = arith.addf %21, %23 : vector<2x16xf32>
    %cst_17 = arith.constant 1.702000e+00 : f32
    %25 = vector.broadcast %cst_17 : f32 to vector<2x16xf32>
    %26 = arith.mulf %25, %24 : vector<2x16xf32>
    %27 = arith.negf %26 : vector<2x16xf32>
    %28 = math.exp %27 : vector<2x16xf32>
    %cst_18 = arith.constant 1.000000e+00 : f32
    %29 = vector.broadcast %cst_18 : f32 to vector<2x16xf32>
    %30 = arith.addf %29, %28 : vector<2x16xf32>
    %31 = arith.divf %29, %30 : vector<2x16xf32>
    %32 = arith.mulf %24, %31 : vector<2x16xf32>
    %c0_19 = arith.constant 0 : index
    %c0_20 = arith.constant 0 : index
    %33 = vector.load %arg7[%c0_19, %c0_20] : memref<16x8xf32, #tpu.memory_space<vmem>>, vector<16x8xf32>
    %cst_21 = arith.constant dense<0.000000e+00> : vector<2x8xf32>
    %34 = tpu.matmul %32, %33, %cst_21 {dimension_numbers = #tpu.dot_dimension_numbers<[1], [0], [0], [1], [0, 0, 1, 1], [], []>} : vector<2x16xf32>, vector<16x8xf32>, vector<2x8xf32> -> vector<2x8xf32>
    %c0_22 = arith.constant 0 : index
    %c0_23 = arith.constant 0 : index
    %35 = vector.load %arg8[%c0_22, %c0_23] : memref<1x8xf32, #tpu.memory_space<vmem>>, vector<1x8xf32>
    %36 = vector.broadcast %35 : vector<1x8xf32> to vector<2x8xf32>
    %37 = arith.addf %34, %36 : vector<2x8xf32>
    %cst_24 = arith.constant 1.702000e+00 : f32
    %38 = vector.broadcast %cst_24 : f32 to vector<2x8xf32>
    %39 = arith.mulf %38, %37 : vector<2x8xf32>
    %40 = arith.negf %39 : vector<2x8xf32>
    %41 = math.exp %40 : vector<2x8xf32>
    %cst_25 = arith.constant 1.000000e+00 : f32
    %42 = vector.broadcast %cst_25 : f32 to vector<2x8xf32>
    %43 = arith.addf %42, %41 : vector<2x8xf32>
    %44 = arith.divf %42, %43 : vector<2x8xf32>
    %45 = arith.mulf %37, %44 : vector<2x8xf32>
    %c0_26 = arith.constant 0 : index
    %c0_27 = arith.constant 0 : index
    %46 = vector.load %arg9[%c0_26, %c0_27] : memref<8x6xf32, #tpu.memory_space<vmem>>, vector<8x6xf32>
    %cst_28 = arith.constant dense<0.000000e+00> : vector<2x6xf32>
    %47 = tpu.matmul %45, %46, %cst_28 {dimension_numbers = #tpu.dot_dimension_numbers<[1], [0], [0], [1], [0, 0, 1, 1], [], []>} : vector<2x8xf32>, vector<8x6xf32>, vector<2x6xf32> -> vector<2x6xf32>
    %c0_29 = arith.constant 0 : index
    %c0_30 = arith.constant 0 : index
    %48 = vector.load %arg10[%c0_29, %c0_30] : memref<1x6xf32, #tpu.memory_space<vmem>>, vector<1x6xf32>
    %49 = vector.broadcast %48 : vector<1x6xf32> to vector<2x6xf32>
    %50 = arith.addf %47, %49 : vector<2x6xf32>
    %c0_31 = arith.constant 0 : index
    %c0_32 = arith.constant 0 : index
    %51 = vector.load %arg11[%c0_31, %c0_32] : memref<2x6xf32, #tpu.memory_space<vmem>>, vector<2x6xf32>
    tpu.vector_store %arg11[%c0_31, %c0_32], %50 {strides = array<i32>} : memref<2x6xf32, #tpu.memory_space<vmem>>, vector<2x6xf32>,
    return
  }
}

</mosaic_0001>

<llo_original>
// kernel: tpu_custom_call.1
$region0: #{tpu_custom_call.1}
  #allocation0 [shape = 'u32[]', space=smem, size = 0x4, offset = 0x4, fixed_abs, tag = 'smem constant byte address 0x4 - core index']
  #allocation1 [shape = 'u32[144,128]{1,0:T(1,128)}', space=vmem, size = 0x12000, scoped, tag = 'internal scratch']
  %s0 = inlined_call_operand.hbm [shape: f32[2,768], index: 0, kind: input, shape index: {}]
  %s1 = inlined_call_operand.hbm [shape: bf16[768,1024], index: 1, kind: input, shape index: {}]
  %s2 = inlined_call_operand.hbm [shape: f32[1,1024], index: 2, kind: input, shape index: {}]
  %s3 = inlined_call_operand.vmem [shape: f32[1024,32], index: 3, kind: input, shape index: {}]
  %s4 = inlined_call_operand.hbm [shape: f32[1,32], index: 4, kind: input, shape index: {}]
  %s5 = inlined_call_operand.vmem [shape: f32[32,16], index: 5, kind: input, shape index: {}]
  %s6 = inlined_call_operand.hbm [shape: f32[1,16], index: 6, kind: input, shape index: {}]
  %s7 = inlined_call_operand.vmem [shape: f32[16,8], index: 7, kind: input, shape index: {}]
  %s8 = inlined_call_operand.hbm [shape: f32[1,8], index: 8, kind: input, shape index: {}]
  %s9 = inlined_call_operand.hbm [shape: f32[8,6], index: 9, kind: input, shape index: {}]
  %s10 = inlined_call_operand.hbm [shape: f32[1,6], index: 10, kind: input, shape index: {}]
  %s11 = inlined_call_operand.hbm [shape: f32[2,6], index: 11, kind: output, shape index: {}]
  %s12 = sld [smem:[#allocation0]]
  $region86: #{tpu_custom_call.1} parent=0
    _
  %s14 = ssub.s32 1, %s12
  %s15 = scalar_select 0, %s14, %s12
  $region1: #{tpu_custom_call.1} parent=0
    #allocation2 [shape = 'u8[6144]{0}', space=vmem, size = 0x1800, scoped, tag = 'input window, operand 0, single buffered']
    #allocation3 [shape = 's32[1]{0}', space=sflag, size = 0x4, scoped, tag = 'scoped memory for tpu_custom_call.1']
    #allocation4 [shape = 's32[1]{0}', space=sflag, size = 0x4, scoped, tag = 'scoped memory for tpu_custom_call.1']
    #allocation5 [shape = 'u8[1572864]{0}', space=vmem, size = 0x180000, scoped, tag = 'input window, operand 1, single buffered']
    #allocation6 [shape = 's32[1]{0}', space=sflag, size = 0x4, scoped, tag = 'scoped memory for tpu_custom_call.1']
    #allocation7 [shape = 'u8[4096]{0}', space=vmem, size = 0x1000, scoped, tag = 'input window, operand 2, single buffered']
    #allocation8 [shape = 'u8[512]{0}', space=vmem, size = 0x400, scoped, tag = 'input window, operand 4, single buffered']
    #allocation9 [shape = 's32[1]{0}', space=sflag, size = 0x4, scoped, tag = 'scoped memory for tpu_custom_call.1']
    #allocation10 [shape = 'u8[512]{0}', space=vmem, size = 0x400, scoped, tag = 'input window, operand 6, single buffered']
    #allocation11 [shape = 'u8[512]{0}', space=vmem, size = 0x400, scoped, tag = 'input window, operand 8, single buffered']
    #allocation12 [shape = 's32[1]{0}', space=sflag, size = 0x4, scoped, tag = 'scoped memory for tpu_custom_call.1']
    #allocation13 [shape = 'u8[4096]{0}', space=vmem, size = 0x1000, scoped, tag = 'input window, operand 9, single buffered']
    #allocation14 [shape = 'u8[512]{0}', space=vmem, size = 0x400, scoped, tag = 'input window, operand 10, single buffered']
    #allocation15 [shape = 's32[1]{0}', space=sflag, size = 0x4, scoped, tag = 'scoped memory for tpu_custom_call.1']
    #allocation16 [shape = 'u8[1024]{0}', space=vmem, size = 0x400, scoped, tag = 'output window, operand 0, single buffered']
    %16 = vsyncpa [#allocation3], 0
    %17 = vsyncpa [#allocation6], 0
    %18 = vsyncpa [#allocation9], 0
    %19 = vsyncpa [#allocation12], 0
    %20 = vsyncpa [#allocation15], 0
    %21 = vsyncpa [#allocation4], 0
    // Predicated region
    $region2: #{tpu_custom_call.1} parent=1 // pred_check
      _
    $region3: #{tpu_custom_call.1} parent=1 // pred_check_branch
      %23 = sbr.rel (0) target = $region5
    $region4: #{tpu_custom_call.1} parent=1 // pred_region
      %s25 = ssub.s32 192, 192
      %26 = vsyncadd [#allocation3], %s25
      %s28 = sshll.u32 [#allocation2], 4
      %s29 = int_to_ptr.vmem [resolvable:$true] %s28
      %31 = dma.hbm_to_vmem [thread:$0]  %s0, 192, %s29, [#allocation3]
    $region5: #{tpu_custom_call.1} parent=1 // pred_fallthru
      _
    // Predicated region
    $region6: #{tpu_custom_call.1} parent=1 // pred_check
      _
    $region7: #{tpu_custom_call.1} parent=1 // pred_check_branch
      %33 = sbr.rel (0) target = $region9
    $region8: #{tpu_custom_call.1} parent=1 // pred_region
      %s35 = ssub.s32 49152, 49152
      %36 = vsyncadd [#allocation6], %s35
      %s37 = sshll.u32 [#allocation5], 4
      %s38 = int_to_ptr.vmem [resolvable:$true] %s37
      %43 = dma.hbm_to_vmem [thread:$0]  %s1, 49152, %s38, [#allocation6], 512, 512, 32
    $region9: #{tpu_custom_call.1} parent=1 // pred_fallthru
      _
    // Predicated region
    $region10: #{tpu_custom_call.1} parent=1 // pred_check
      _
    $region11: #{tpu_custom_call.1} parent=1 // pred_check_branch
      %45 = sbr.rel (0) target = $region13
    $region12: #{tpu_custom_call.1} parent=1 // pred_region
      %s47 = ssub.s32 128, 128
      %48 = vsyncadd [#allocation6], %s47
      %s50 = sshll.u32 [#allocation7], 4
      %s51 = int_to_ptr.vmem [resolvable:$true] %s50
      %53 = dma.hbm_to_vmem [thread:$0]  %s2, 128, %s51, [#allocation6]
    $region13: #{tpu_custom_call.1} parent=1 // pred_fallthru
      _
    // Predicated region
    $region14: #{tpu_custom_call.1} parent=1 // pred_check
      _
    $region15: #{tpu_custom_call.1} parent=1 // pred_check_branch
      %55 = sbr.rel (0) target = $region17
    $region16: #{tpu_custom_call.1} parent=1 // pred_region
      _
    $region17: #{tpu_custom_call.1} parent=1 // pred_fallthru
      _
    // Predicated region
    $region18: #{tpu_custom_call.1} parent=1 // pred_check
      _
    $region19: #{tpu_custom_call.1} parent=1 // pred_check_branch
      %57 = sbr.rel (0) target = $region21
    $region20: #{tpu_custom_call.1} parent=1 // pred_region
      %s59 = ssub.s32 16, 16
      %60 = vsyncadd [#allocation9], %s59
      %s62 = sshll.u32 [#allocation8], 4
      %s63 = int_to_ptr.vmem [resolvable:$true] %s62
      %65 = dma.hbm_to_vmem [thread:$0]  %s4, 16, %s63, [#allocation9]
    $region21: #{tpu_custom_call.1} parent=1 // pred_fallthru
      _
    // Predicated region
    $region22: #{tpu_custom_call.1} parent=1 // pred_check
      _
    $region23: #{tpu_custom_call.1} parent=1 // pred_check_branch
      %67 = sbr.rel (0) target = $region25
    $region24: #{tpu_custom_call.1} parent=1 // pred_region
      _
    $region25: #{tpu_custom_call.1} parent=1 // pred_fallthru
      _
    // Predicated region
    $region26: #{tpu_custom_call.1} parent=1 // pred_check
      _
    $region27: #{tpu_custom_call.1} parent=1 // pred_check_branch
      %69 = sbr.rel (0) target = $region29
    $region28: #{tpu_custom_call.1} parent=1 // pred_region
      %s71 = ssub.s32 16, 16
      %72 = vsyncadd [#allocation9], %s71
      %s74 = sshll.u32 [#allocation10], 4
      %s75 = int_to_ptr.vmem [resolvable:$true] %s74
      %77 = dma.hbm_to_vmem [thread:$0]  %s6, 16, %s75, [#allocation9]
    $region29: #{tpu_custom_call.1} parent=1 // pred_fallthru
      _
    // Predicated region
    $region30: #{tpu_custom_call.1} parent=1 // pred_check
      _
    $region31: #{tpu_custom_call.1} parent=1 // pred_check_branch
      %79 = sbr.rel (0) target = $region33
    $region32: #{tpu_custom_call.1} parent=1 // pred_region
      _
    $region33: #{tpu_custom_call.1} parent=1 // pred_fallthru
      _
    // Predicated region
    $region34: #{tpu_custom_call.1} parent=1 // pred_check
      _
    $region35: #{tpu_custom_call.1} parent=1 // pred_check_branch
      %81 = sbr.rel (0) target = $region37
    $region36: #{tpu_custom_call.1} parent=1 // pred_region
      %s83 = ssub.s32 16, 16
      %84 = vsyncadd [#allocation12], %s83
      %s86 = sshll.u32 [#allocation11], 4
      %s87 = int_to_ptr.vmem [resolvable:$true] %s86
      %89 = dma.hbm_to_vmem [thread:$0]  %s8, 16, %s87, [#allocation12]
    $region37: #{tpu_custom_call.1} parent=1 // pred_fallthru
      _
    // Predicated region
    $region38: #{tpu_custom_call.1} parent=1 // pred_check
      _
    $region39: #{tpu_custom_call.1} parent=1 // pred_check_branch
      %91 = sbr.rel (0) target = $region41
    $region40: #{tpu_custom_call.1} parent=1 // pred_region
      %s93 = ssub.s32 128, 128
      %94 = vsyncadd [#allocation12], %s93
      %s96 = sshll.u32 [#allocation13], 4
      %s97 = int_to_ptr.vmem [resolvable:$true] %s96
      %99 = dma.hbm_to_vmem [thread:$0]  %s9, 128, %s97, [#allocation12]
    $region41: #{tpu_custom_call.1} parent=1 // pred_fallthru
      _
    // Predicated region
    $region42: #{tpu_custom_call.1} parent=1 // pred_check
      _
    $region43: #{tpu_custom_call.1} parent=1 // pred_check_branch
      %101 = sbr.rel (0) target = $region45
    $region44: #{tpu_custom_call.1} parent=1 // pred_region
      %s103 = ssub.s32 16, 16
      %104 = vsyncadd [#allocation15], %s103
      %s106 = sshll.u32 [#allocation14], 4
      %s107 = int_to_ptr.vmem [resolvable:$true] %s106
      %109 = dma.hbm_to_vmem [thread:$0]  %s10, 16, %s107, [#allocation15]
    $region45: #{tpu_custom_call.1} parent=1 // pred_fallthru
      _
    // Predicated region
    $region46: #{tpu_custom_call.1} parent=1 // pred_check
      _
    $region47: #{tpu_custom_call.1} parent=1 // pred_check_branch
      %111 = sbr.rel (0) target = $region49
    $region48: #{tpu_custom_call.1} parent=1 // pred_region
      %112 = dma.done [#allocation3], 192
    $region49: #{tpu_custom_call.1} parent=1 // pred_fallthru
      _
    // Predicated region
    $region50: #{tpu_custom_call.1} parent=1 // pred_check
      _
    $region51: #{tpu_custom_call.1} parent=1 // pred_check_branch
      %114 = sbr.rel (0) target = $region53
    $region52: #{tpu_custom_call.1} parent=1 // pred_region
      %115 = dma.done [#allocation6], 49152
    $region53: #{tpu_custom_call.1} parent=1 // pred_fallthru
      _
    // Predicated region
    $region54: #{tpu_custom_call.1} parent=1 // pred_check
      _
    $region55: #{tpu_custom_call.1} parent=1 // pred_check_branch
      %117 = sbr.rel (0) target = $region57
    $region56: #{tpu_custom_call.1} parent=1 // pred_region
      %118 = dma.done [#allocation6], 128
    $region57: #{tpu_custom_call.1} parent=1 // pred_fallthru
      _
    // Predicated region
    $region58: #{tpu_custom_call.1} parent=1 // pred_check
      _
    $region59: #{tpu_custom_call.1} parent=1 // pred_check_branch
      %120 = sbr.rel (0) target = $region61
    $region60: #{tpu_custom_call.1} parent=1 // pred_region
      %121 = dma.done [#allocation9], 16
    $region61: #{tpu_custom_call.1} parent=1 // pred_fallthru
      _
    // Predicated region
    $region62: #{tpu_custom_call.1} parent=1 // pred_check
      _
    $region63: #{tpu_custom_call.1} parent=1 // pred_check_branch
      %123 = sbr.rel (0) target = $region65
    $region64: #{tpu_custom_call.1} parent=1 // pred_region
      %124 = dma.done [#allocation9], 16
    $region65: #{tpu_custom_call.1} parent=1 // pred_fallthru
      _
    // Predicated region
    $region66: #{tpu_custom_call.1} parent=1 // pred_check
      _
    $region67: #{tpu_custom_call.1} parent=1 // pred_check_branch
      %126 = sbr.rel (0) target = $region69
    $region68: #{tpu_custom_call.1} parent=1 // pred_region
      %127 = dma.done [#allocation12], 16
    $region69: #{tpu_custom_call.1} parent=1 // pred_fallthru
      _
    // Predicated region
    $region70: #{tpu_custom_call.1} parent=1 // pred_check
      _
    $region71: #{tpu_custom_call.1} parent=1 // pred_check_branch
      %129 = sbr.rel (0) target = $region73
    $region72: #{tpu_custom_call.1} parent=1 // pred_region
      %130 = dma.done [#allocation12], 128
    $region73: #{tpu_custom_call.1} parent=1 // pred_fallthru
      _
    // Predicated region
    $region74: #{tpu_custom_call.1} parent=1 // pred_check
      _
    $region75: #{tpu_custom_call.1} parent=1 // pred_check_branch
      %132 = sbr.rel (0) target = $region77
    $region76: #{tpu_custom_call.1} parent=1 // pred_region
      %133 = dma.done [#allocation15], 16
    $region77: #{tpu_custom_call.1} parent=1 // pred_fallthru
      _
    %v134 = vld [vmem:[#allocation2] sm:$0xff]
    %v135 = vld [vmem:[#allocation2 + $0x8] sm:$0xf]
    %v138 = vcombine.high %v134, %v134
    %v140 = vunpack.c.l.s4 1983009808
    %v141 = vunpack.c.0.s8 %v140
    %v142 = vlaneseq
    %v143 = vshrl.u32 %v142, 7
    %v144 = vsub.s32 %v141, %v143
    %v145 = vrot.slane %v134, %v144
    %v147 = vunpack.c.l.s4 1983009808
    %v148 = vunpack.c.0.s8 %v147
    %v149 = vlaneseq
    %v150 = vshrl.u32 %v149, 7
    %v151 = vsub.s32 %v148, %v150
    %v152 = vrot.slane %v138, %v151
    %v153 = vcombine.high %v145, %v145
    %v154 = vcombine.high %v152, %v152
    %v156 = vunpack.c.l.s4 1983009808
    %v157 = vunpack.c.0.s8 %v156
    %v158 = vlaneseq
    %v159 = vshrl.u32 %v158, 7
    %v160 = vsub.s32 %v157, %v159
    %v161 = vrot.slane %v135, %v160
    %v162 = vcombine.high %v161, %v161
    %v169 = vpack.c.bf16 %v145, %v145
    %v170 = vpack.c.bf16 %v153, %v153
    %v171 = vpack.c.bf16 %v152, %v152
    %v172 = vpack.c.bf16 %v154, %v154
    %v173 = vpack.c.bf16 %v161, %v161
    %v174 = vpack.c.bf16 %v162, %v162
    %v175 = vld [vmem:[#allocation5] sm:$0xff]
    %v176 = vld [vmem:[#allocation5 + $0x8] sm:$0xff]
    %v177 = vld [vmem:[#allocation5 + $0x10] sm:$0xff]
    %v178 = vld [vmem:[#allocation5 + $0x18] sm:$0xff]
    %v179 = vld [vmem:[#allocation5 + $0x20] sm:$0xff]
    %v180 = vld [vmem:[#allocation5 + $0x28] sm:$0xff]
    %v181 = vld [vmem:[#allocation5 + $0x30] sm:$0xff]
    %v182 = vld [vmem:[#allocation5 + $0x38] sm:$0xff]
    %v183 = vld [vmem:[#allocation5 + $0x40] sm:$0xff]
    %v184 = vld [vmem:[#allocation5 + $0x48] sm:$0xff]
    %v185 = vld [vmem:[#allocation5 + $0x50] sm:$0xff]
    %v186 = vld [vmem:[#allocation5 + $0x58] sm:$0xff]
    %v187 = vld [vmem:[#allocation5 + $0x60] sm:$0xff]
    %v188 = vld [vmem:[#allocation5 + $0x68] sm:$0xff]
    %v189 = vld [vmem:[#allocation5 + $0x70] sm:$0xff]
    %v190 = vld [vmem:[#allocation5 + $0x78] sm:$0xff]
    %v191 = vld [vmem:[#allocation5 + $0x80] sm:$0xff]
    %v192 = vld [vmem:[#allocation5 + $0x88] sm:$0xff]
    %v193 = vld [vmem:[#allocation5 + $0x90] sm:$0xff]
    %v194 = vld [vmem:[#allocation5 + $0x98] sm:$0xff]
    %v195 = vld [vmem:[#allocation5 + $0xa0] sm:$0xff]
    %v196 = vld [vmem:[#allocation5 + $0xa8] sm:$0xff]
    %v197 = vld [vmem:[#allocation5 + $0xb0] sm:$0xff]
    %v198 = vld [vmem:[#allocation5 + $0xb8] sm:$0xff]
    %v199 = vld [vmem:[#allocation5 + $0xc0] sm:$0xff]
    %v200 = vld [vmem:[#allocation5 + $0xc8] sm:$0xff]
    %v201 = vld [vmem:[#allocation5 + $0xd0] sm:$0xff]
    %v202 = vld [vmem:[#allocation5 + $0xd8] sm:$0xff]
    %v203 = vld [vmem:[#allocation5 + $0xe0] sm:$0xff]
    %v204 = vld [vmem:[#allocation5 + $0xe8] sm:$0xff]
    %v205 = vld [vmem:[#allocation5 + $0xf0] sm:$0xff]
    %v206 = vld [vmem:[#allocation5 + $0xf8] sm:$0xff]
    %v207 = vld [vmem:[#allocation5 + $0x100] sm:$0xff]
    %v208 = vld [vmem:[#allocation5 + $0x108] sm:$0xff]
    %v209 = vld [vmem:[#allocation5 + $0x110] sm:$0xff]
    %v210 = vld [vmem:[#allocation5 + $0x118] sm:$0xff]
    %v211 = vld [vmem:[#allocation5 + $0x120] sm:$0xff]
    %v212 = vld [vmem:[#allocation5 + $0x128] sm:$0xff]
    %v213 = vld [vmem:[#allocation5 + $0x130] sm:$0xff]
    %v214 = vld [vmem:[#allocation5 + $0x138] sm:$0xff]
    %v215 = vld [vmem:[#allocation5 + $0x140] sm:$0xff]
    %v216 = vld [vmem:[#allocation5 + $0x148] sm:$0xff]
    %v217 = vld [vmem:[#allocation5 + $0x150] sm:$0xff]
    %v218 = vld [vmem:[#allocation5 + $0x158] sm:$0xff]
    %v219 = vld [vmem:[#allocation5 + $0x160] sm:$0xff]
    %v220 = vld [vmem:[#allocation5 + $0x168] sm:$0xff]
    %v221 = vld [vmem:[#allocation5 + $0x170] sm:$0xff]
    %v222 = vld [vmem:[#allocation5 + $0x178] sm:$0xff]
    %v223 = vld [vmem:[#allocation5 + $0x180] sm:$0xff]
    %v224 = vld [vmem:[#allocation5 + $0x188] sm:$0xff]
    %v225 = vld [vmem:[#allocation5 + $0x190] sm:$0xff]
    %v226 = vld [vmem:[#allocation5 + $0x198] sm:$0xff]
    %v227 = vld [vmem:[#allocation5 + $0x1a0] sm:$0xff]
    %v228 = vld [vmem:[#allocation5 + $0x1a8] sm:$0xff]
    %v229 = vld [vmem:[#allocation5 + $0x1b0] sm:$0xff]
    %v230 = vld [vmem:[#allocation5 + $0x1b8] sm:$0xff]
    %v231 = vld [vmem:[#allocation5 + $0x1c0] sm:$0xff]
    %v232 = vld [vmem:[#allocation5 + $0x1c8] sm:$0xff]
    %v233 = vld [vmem:[#allocation5 + $0x1d0] sm:$0xff]
    %v234 = vld [vmem:[#allocation5 + $0x1d8] sm:$0xff]
    %v235 = vld [vmem:[#allocation5 + $0x1e0] sm:$0xff]
    %v236 = vld [vmem:[#allocation5 + $0x1e8] sm:$0xff]
    %v237 = vld [vmem:[#allocation5 + $0x1f0] sm:$0xff]
    %v238 = vld [vmem:[#allocation5 + $0x1f8] sm:$0xff]
    %v239 = vld [vmem:[#allocation5 + $0x200] sm:$0xff]
    %v240 = vld [vmem:[#allocation5 + $0x208] sm:$0xff]
    %v241 = vld [vmem:[#allocation5 + $0x210] sm:$0xff]
    %v242 = vld [vmem:[#allocation5 + $0x218] sm:$0xff]
    %v243 = vld [vmem:[#allocation5 + $0x220] sm:$0xff]
    %v244 = vld [vmem:[#allocation5 + $0x228] sm:$0xff]
    %v245 = vld [vmem:[#allocation5 + $0x230] sm:$0xff]
    %v246 = vld [vmem:[#allocation5 + $0x238] sm:$0xff]
    %v247 = vld [vmem:[#allocation5 + $0x240] sm:$0xff]
    %v248 = vld [vmem:[#allocation5 + $0x248] sm:$0xff]
    %v249 = vld [vmem:[#allocation5 + $0x250] sm:$0xff]
    %v250 = vld [vmem:[#allocation5 + $0x258] sm:$0xff]
    %v251 = vld [vmem:[#allocation5 + $0x260] sm:$0xff]
    %v252 = vld [vmem:[#allocation5 + $0x268] sm:$0xff]
    %v253 = vld [vmem:[#allocation5 + $0x270] sm:$0xff]
    %v254 = vld [vmem:[#allocation5 + $0x278] sm:$0xff]
    %v255 = vld [vmem:[#allocation5 + $0x280] sm:$0xff]
    %v256 = vld [vmem:[#allocation5 + $0x288] sm:$0xff]
    %v257 = vld [vmem:[#allocation5 + $0x290] sm:$0xff]
    %v258 = vld [vmem:[#allocation5 + $0x298] sm:$0xff]
    %v259 = vld [vmem:[#allocation5 + $0x2a0] sm:$0xff]
    %v260 = vld [vmem:[#allocation5 + $0x2a8] sm:$0xff]
    %v261 = vld [vmem:[#allocation5 + $0x2b0] sm:$0xff]
    %v262 = vld [vmem:[#allocation5 + $0x2b8] sm:$0xff]
    %v263 = vld [vmem:[#allocation5 + $0x2c0] sm:$0xff]
    %v264 = vld [vmem:[#allocation5 + $0x2c8] sm:$0xff]
    %v265 = vld [vmem:[#allocation5 + $0x2d0] sm:$0xff]
    %v266 = vld [vmem:[#allocation5 + $0x2d8] sm:$0xff]
    %v267 = vld [vmem:[#allocation5 + $0x2e0] sm:$0xff]
    %v268 = vld [vmem:[#allocation5 + $0x2e8] sm:$0xff]
    %v269 = vld [vmem:[#allocation5 + $0x2f0] sm:$0xff]
    %v270 = vld [vmem:[#allocation5 + $0x2f8] sm:$0xff]
    %v271 = vld [vmem:[#allocation5 + $0x300] sm:$0xff]
    %v272 = vld [vmem:[#allocation5 + $0x308] sm:$0xff]
    %v273 = vld [vmem:[#allocation5 + $0x310] sm:$0xff]
    %v274 = vld [vmem:[#allocation5 + $0x318] sm:$0xff]
    %v275 = vld [vmem:[#allocation5 + $0x320] sm:$0xff]
    %v276 = vld [vmem:[#allocation5 + $0x328] sm:$0xff]
    %v277 = vld [vmem:[#allocation5 + $0x330] sm:$0xff]
    %v278 = vld [vmem:[#allocation5 + $0x338] sm:$0xff]
    %v279 = vld [vmem:[#allocation5 + $0x340] sm:$0xff]
    %v280 = vld [vmem:[#allocation5 + $0x348] sm:$0xff]
    %v281 = vld [vmem:[#allocation5 + $0x350] sm:$0xff]
    %v282 = vld [vmem:[#allocation5 + $0x358] sm:$0xff]
    %v283 = vld [vmem:[#allocation5 + $0x360] sm:$0xff]
    %v284 = vld [vmem:[#allocation5 + $0x368] sm:$0xff]
    %v285 = vld [vmem:[#allocation5 + $0x370] sm:$0xff]
    %v286 = vld [vmem:[#allocation5 + $0x378] sm:$0xff]
    %v287 = vld [vmem:[#allocation5 + $0x380] sm:$0xff]
    %v288 = vld [vmem:[#allocation5 + $0x388] sm:$0xff]
    %v289 = vld [vmem:[#allocation5 + $0x390] sm:$0xff]
    %v290 = vld [vmem:[#allocation5 + $0x398] sm:$0xff]
    %v291 = vld [vmem:[#allocation5 + $0x3a0] sm:$0xff]
    %v292 = vld [vmem:[#allocation5 + $0x3a8] sm:$0xff]
    %v293 = vld [vmem:[#allocation5 + $0x3b0] sm:$0xff]
    %v294 = vld [vmem:[#allocation5 + $0x3b8] sm:$0xff]
    %v295 = vld [vmem:[#allocation5 + $0x3c0] sm:$0xff]
    %v296 = vld [vmem:[#allocation5 + $0x3c8] sm:$0xff]
    %v297 = vld [vmem:[#allocation5 + $0x3d0] sm:$0xff]
    %v298 = vld [vmem:[#allocation5 + $0x3d8] sm:$0xff]
    %v299 = vld [vmem:[#allocation5 + $0x3e0] sm:$0xff]
    %v300 = vld [vmem:[#allocation5 + $0x3e8] sm:$0xff]
    %v301 = vld [vmem:[#allocation5 + $0x3f0] sm:$0xff]
    %v302 = vld [vmem:[#allocation5 + $0x3f8] sm:$0xff]
    %v303 = vld [vmem:[#allocation5 + $0x400] sm:$0xff]
    %v304 = vld [vmem:[#allocation5 + $0x408] sm:$0xff]
    %v305 = vld [vmem:[#allocation5 + $0x410] sm:$0xff]
    %v306 = vld [vmem:[#allocation5 + $0x418] sm:$0xff]
    %v307 = vld [vmem:[#allocation5 + $0x420] sm:$0xff]
    %v308 = vld [vmem:[#allocation5 + $0x428] sm:$0xff]
    %v309 = vld [vmem:[#allocation5 + $0x430] sm:$0xff]
    %v310 = vld [vmem:[#allocation5 + $0x438] sm:$0xff]
    %v311 = vld [vmem:[#allocation5 + $0x440] sm:$0xff]
    %v312 = vld [vmem:[#allocation5 + $0x448] sm:$0xff]
    %v313 = vld [vmem:[#allocation5 + $0x450] sm:$0xff]
    %v314 = vld [vmem:[#allocation5 + $0x458] sm:$0xff]
    %v315 = vld [vmem:[#allocation5 + $0x460] sm:$0xff]
    %v316 = vld [vmem:[#allocation5 + $0x468] sm:$0xff]
    %v317 = vld [vmem:[#allocation5 + $0x470] sm:$0xff]
    %v318 = vld [vmem:[#allocation5 + $0x478] sm:$0xff]
    %v319 = vld [vmem:[#allocation5 + $0x480] sm:$0xff]
    %v320 = vld [vmem:[#allocation5 + $0x488] sm:$0xff]
    %v321 = vld [vmem:[#allocation5 + $0x490] sm:$0xff]
    %v322 = vld [vmem:[#allocation5 + $0x498] sm:$0xff]
    %v323 = vld [vmem:[#allocation5 + $0x4a0] sm:$0xff]
    %v324 = vld [vmem:[#allocation5 + $0x4a8] sm:$0xff]
    %v325 = vld [vmem:[#allocation5 + $0x4b0] sm:$0xff]
    %v326 = vld [vmem:[#allocation5 + $0x4b8] sm:$0xff]
    %v327 = vld [vmem:[#allocation5 + $0x4c0] sm:$0xff]
    %v328 = vld [vmem:[#allocation5 + $0x4c8] sm:$0xff]
    %v329 = vld [vmem:[#allocation5 + $0x4d0] sm:$0xff]
    %v330 = vld [vmem:[#allocation5 + $0x4d8] sm:$0xff]
    %v331 = vld [vmem:[#allocation5 + $0x4e0] sm:$0xff]
    %v332 = vld [vmem:[#allocation5 + $0x4e8] sm:$0xff]
    %v333 = vld [vmem:[#allocation5 + $0x4f0] sm:$0xff]
    %v334 = vld [vmem:[#allocation5 + $0x4f8] sm:$0xff]
    %v335 = vld [vmem:[#allocation5 + $0x500] sm:$0xff]
    %v336 = vld [vmem:[#allocation5 + $0x508] sm:$0xff]
    %v337 = vld [vmem:[#allocation5 + $0x510] sm:$0xff]
    %v338 = vld [vmem:[#allocation5 + $0x518] sm:$0xff]
    %v339 = vld [vmem:[#allocation5 + $0x520] sm:$0xff]
    %v340 = vld [vmem:[#allocation5 + $0x528] sm:$0xff]
    %v341 = vld [vmem:[#allocation5 + $0x530] sm:$0xff]
    %v342 = vld [vmem:[#allocation5 + $0x538] sm:$0xff]
    %v343 = vld [vmem:[#allocation5 + $0x540] sm:$0xff]
    %v344 = vld [vmem:[#allocation5 + $0x548] sm:$0xff]
    %v345 = vld [vmem:[#allocation5 + $0x550] sm:$0xff]
    %v346 = vld [vmem:[#allocation5 + $0x558] sm:$0xff]
    %v347 = vld [vmem:[#allocation5 + $0x560] sm:$0xff]
    %v348 = vld [vmem:[#allocation5 + $0x568] sm:$0xff]
    %v349 = vld [vmem:[#allocation5 + $0x570] sm:$0xff]
    %v350 = vld [vmem:[#allocation5 + $0x578] sm:$0xff]
    %v351 = vld [vmem:[#allocation5 + $0x580] sm:$0xff]
    %v352 = vld [vmem:[#allocation5 + $0x588] sm:$0xff]
    %v353 = vld [vmem:[#allocation5 + $0x590] sm:$0xff]
    %v354 = vld [vmem:[#allocation5 + $0x598] sm:$0xff]
    %v355 = vld [vmem:[#allocation5 + $0x5a0] sm:$0xff]
    %v356 = vld [vmem:[#allocation5 + $0x5a8] sm:$0xff]
    %v357 = vld [vmem:[#allocation5 + $0x5b0] sm:$0xff]
    %v358 = vld [vmem:[#allocation5 + $0x5b8] sm:$0xff]
    %v359 = vld [vmem:[#allocation5 + $0x5c0] sm:$0xff]
    %v360 = vld [vmem:[#allocation5 + $0x5c8] sm:$0xff]
    %v361 = vld [vmem:[#allocation5 + $0x5d0] sm:$0xff]
    %v362 = vld [vmem:[#allocation5 + $0x5d8] sm:$0xff]
    %v363 = vld [vmem:[#allocation5 + $0x5e0] sm:$0xff]
    %v364 = vld [vmem:[#allocation5 + $0x5e8] sm:$0xff]
    %v365 = vld [vmem:[#allocation5 + $0x5f0] sm:$0xff]
    %v366 = vld [vmem:[#allocation5 + $0x5f8] sm:$0xff]
    %v367 = vld [vmem:[#allocation5 + $0x600] sm:$0xff]
    %v368 = vld [vmem:[#allocation5 + $0x608] sm:$0xff]
    %v369 = vld [vmem:[#allocation5 + $0x610] sm:$0xff]
    %v370 = vld [vmem:[#allocation5 + $0x618] sm:$0xff]
    %v371 = vld [vmem:[#allocation5 + $0x620] sm:$0xff]
    %v372 = vld [vmem:[#allocation5 + $0x628] sm:$0xff]
    %v373 = vld [vmem:[#allocation5 + $0x630] sm:$0xff]
    %v374 = vld [vmem:[#allocation5 + $0x638] sm:$0xff]
    %v375 = vld [vmem:[#allocation5 + $0x640] sm:$0xff]
    %v376 = vld [vmem:[#allocation5 + $0x648] sm:$0xff]
    %v377 = vld [vmem:[#allocation5 + $0x650] sm:$0xff]
    %v378 = vld [vmem:[#allocation5 + $0x658] sm:$0xff]
    %v379 = vld [vmem:[#allocation5 + $0x660] sm:$0xff]
    %v380 = vld [vmem:[#allocation5 + $0x668] sm:$0xff]
    %v381 = vld [vmem:[#allocation5 + $0x670] sm:$0xff]
    %v382 = vld [vmem:[#allocation5 + $0x678] sm:$0xff]
    %v383 = vld [vmem:[#allocation5 + $0x680] sm:$0xff]
    %v384 = vld [vmem:[#allocation5 + $0x688] sm:$0xff]
    %v385 = vld [vmem:[#allocation5 + $0x690] sm:$0xff]
    %v386 = vld [vmem:[#allocation5 + $0x698] sm:$0xff]
    %v387 = vld [vmem:[#allocation5 + $0x6a0] sm:$0xff]
    %v388 = vld [vmem:[#allocation5 + $0x6a8] sm:$0xff]
    %v389 = vld [vmem:[#allocation5 + $0x6b0] sm:$0xff]
    %v390 = vld [vmem:[#allocation5 + $0x6b8] sm:$0xff]
    %v391 = vld [vmem:[#allocation5 + $0x6c0] sm:$0xff]
    %v392 = vld [vmem:[#allocation5 + $0x6c8] sm:$0xff]
    %v393 = vld [vmem:[#allocation5 + $0x6d0] sm:$0xff]
    %v394 = vld [vmem:[#allocation5 + $0x6d8] sm:$0xff]
    %v395 = vld [vmem:[#allocation5 + $0x6e0] sm:$0xff]
    %v396 = vld [vmem:[#allocation5 + $0x6e8] sm:$0xff]
    %v397 = vld [vmem:[#allocation5 + $0x6f0] sm:$0xff]
    %v398 = vld [vmem:[#allocation5 + $0x6f8] sm:$0xff]
    %v399 = vld [vmem:[#allocation5 + $0x700] sm:$0xff]
    %v400 = vld [vmem:[#allocation5 + $0x708] sm:$0xff]
    %v401 = vld [vmem:[#allocation5 + $0x710] sm:$0xff]
    %v402 = vld [vmem:[#allocation5 + $0x718] sm:$0xff]
    %v403 = vld [vmem:[#allocation5 + $0x720] sm:$0xff]
    %v404 = vld [vmem:[#allocation5 + $0x728] sm:$0xff]
    %v405 = vld [vmem:[#allocation5 + $0x730] sm:$0xff]
    %v406 = vld [vmem:[#allocation5 + $0x738] sm:$0xff]
    %v407 = vld [vmem:[#allocation5 + $0x740] sm:$0xff]
    %v408 = vld [vmem:[#allocation5 + $0x748] sm:$0xff]
    %v409 = vld [vmem:[#allocation5 + $0x750] sm:$0xff]
    %v410 = vld [vmem:[#allocation5 + $0x758] sm:$0xff]
    %v411 = vld [vmem:[#allocation5 + $0x760] sm:$0xff]
    %v412 = vld [vmem:[#allocation5 + $0x768] sm:$0xff]
    %v413 = vld [vmem:[#allocation5 + $0x770] sm:$0xff]
    %v414 = vld [vmem:[#allocation5 + $0x778] sm:$0xff]
    %v415 = vld [vmem:[#allocation5 + $0x780] sm:$0xff]
    %v416 = vld [vmem:[#allocation5 + $0x788] sm:$0xff]
    %v417 = vld [vmem:[#allocation5 + $0x790] sm:$0xff]
    %v418 = vld [vmem:[#allocation5 + $0x798] sm:$0xff]
    %v419 = vld [vmem:[#allocation5 + $0x7a0] sm:$0xff]
    %v420 = vld [vmem:[#allocation5 + $0x7a8] sm:$0xff]
    %v421 = vld [vmem:[#allocation5 + $0x7b0] sm:$0xff]
    %v422 = vld [vmem:[#allocation5 + $0x7b8] sm:$0xff]
    %v423 = vld [vmem:[#allocation5 + $0x7c0] sm:$0xff]
    %v424 = vld [vmem:[#allocation5 + $0x7c8] sm:$0xff]
    %v425 = vld [vmem:[#allocation5 + $0x7d0] sm:$0xff]
    %v426 = vld [vmem:[#allocation5 + $0x7d8] sm:$0xff]
    %v427 = vld [vmem:[#allocation5 + $0x7e0] sm:$0xff]
    %v428 = vld [vmem:[#allocation5 + $0x7e8] sm:$0xff]
    %v429 = vld [vmem:[#allocation5 + $0x7f0] sm:$0xff]
    %v430 = vld [vmem:[#allocation5 + $0x7f8] sm:$0xff]
    %v431 = vld [vmem:[#allocation5 + $0x800] sm:$0xff]
    %v432 = vld [vmem:[#allocation5 + $0x808] sm:$0xff]
    %v433 = vld [vmem:[#allocation5 + $0x810] sm:$0xff]
    %v434 = vld [vmem:[#allocation5 + $0x818] sm:$0xff]
    %v435 = vld [vmem:[#allocation5 + $0x820] sm:$0xff]
    %v436 = vld [vmem:[#allocation5 + $0x828] sm:$0xff]
    %v437 = vld [vmem:[#allocation5 + $0x830] sm:$0xff]
    %v438 = vld [vmem:[#allocation5 + $0x838] sm:$0xff]
    %v439 = vld [vmem:[#allocation5 + $0x840] sm:$0xff]
    %v440 = vld [vmem:[#allocation5 + $0x848] sm:$0xff]
    %v441 = vld [vmem:[#allocation5 + $0x850] sm:$0xff]
    %v442 = vld [vmem:[#allocation5 + $0x858] sm:$0xff]
    %v443 = vld [vmem:[#allocation5 + $0x860] sm:$0xff]
    %v444 = vld [vmem:[#allocation5 + $0x868] sm:$0xff]
    %v445 = vld [vmem:[#allocation5 + $0x870] sm:$0xff]
    %v446 = vld [vmem:[#allocation5 + $0x878] sm:$0xff]
    %v447 = vld [vmem:[#allocation5 + $0x880] sm:$0xff]
    %v448 = vld [vmem:[#allocation5 + $0x888] sm:$0xff]
    %v449 = vld [vmem:[#allocation5 + $0x890] sm:$0xff]
    %v450 = vld [vmem:[#allocation5 + $0x898] sm:$0xff]
    %v451 = vld [vmem:[#allocation5 + $0x8a0] sm:$0xff]
    %v452 = vld [vmem:[#allocation5 + $0x8a8] sm:$0xff]
    %v453 = vld [vmem:[#allocation5 + $0x8b0] sm:$0xff]
    %v454 = vld [vmem:[#allocation5 + $0x8b8] sm:$0xff]
    %v455 = vld [vmem:[#allocation5 + $0x8c0] sm:$0xff]
    %v456 = vld [vmem:[#allocation5 + $0x8c8] sm:$0xff]
    %v457 = vld [vmem:[#allocation5 + $0x8d0] sm:$0xff]
    %v458 = vld [vmem:[#allocation5 + $0x8d8] sm:$0xff]
    %v459 = vld [vmem:[#allocation5 + $0x8e0] sm:$0xff]
    %v460 = vld [vmem:[#allocation5 + $0x8e8] sm:$0xff]
    %v461 = vld [vmem:[#allocation5 + $0x8f0] sm:$0xff]
    %v462 = vld [vmem:[#allocation5 + $0x8f8] sm:$0xff]
    %v463 = vld [vmem:[#allocation5 + $0x900] sm:$0xff]
    %v464 = vld [vmem:[#allocation5 + $0x908] sm:$0xff]
    %v465 = vld [vmem:[#allocation5 + $0x910] sm:$0xff]
    %v466 = vld [vmem:[#allocation5 + $0x918] sm:$0xff]
    %v467 = vld [vmem:[#allocation5 + $0x920] sm:$0xff]
    %v468 = vld [vmem:[#allocation5 + $0x928] sm:$0xff]
    %v469 = vld [vmem:[#allocation5 + $0x930] sm:$0xff]
    %v470 = vld [vmem:[#allocation5 + $0x938] sm:$0xff]
    %v471 = vld [vmem:[#allocation5 + $0x940] sm:$0xff]
    %v472 = vld [vmem:[#allocation5 + $0x948] sm:$0xff]
    %v473 = vld [vmem:[#allocation5 + $0x950] sm:$0xff]
    %v474 = vld [vmem:[#allocation5 + $0x958] sm:$0xff]
    %v475 = vld [vmem:[#allocation5 + $0x960] sm:$0xff]
    %v476 = vld [vmem:[#allocation5 + $0x968] sm:$0xff]
    %v477 = vld [vmem:[#allocation5 + $0x970] sm:$0xff]
    %v478 = vld [vmem:[#allocation5 + $0x978] sm:$0xff]
    %v479 = vld [vmem:[#allocation5 + $0x980] sm:$0xff]
    %v480 = vld [vmem:[#allocation5 + $0x988] sm:$0xff]
    %v481 = vld [vmem:[#allocation5 + $0x990] sm:$0xff]
    %v482 = vld [vmem:[#allocation5 + $0x998] sm:$0xff]
    %v483 = vld [vmem:[#allocation5 + $0x9a0] sm:$0xff]
    %v484 = vld [vmem:[#allocation5 + $0x9a8] sm:$0xff]
    %v485 = vld [vmem:[#allocation5 + $0x9b0] sm:$0xff]
    %v486 = vld [vmem:[#allocation5 + $0x9b8] sm:$0xff]
    %v487 = vld [vmem:[#allocation5 + $0x9c0] sm:$0xff]
    %v488 = vld [vmem:[#allocation5 + $0x9c8] sm:$0xff]
    %v489 = vld [vmem:[#allocation5 + $0x9d0] sm:$0xff]
    %v490 = vld [vmem:[#allocation5 + $0x9d8] sm:$0xff]
    %v491 = vld [vmem:[#allocation5 + $0x9e0] sm:$0xff]
    %v492 = vld [vmem:[#allocation5 + $0x9e8] sm:$0xff]
    %v493 = vld [vmem:[#allocation5 + $0x9f0] sm:$0xff]
    %v494 = vld [vmem:[#allocation5 + $0x9f8] sm:$0xff]
    %v495 = vld [vmem:[#allocation5 + $0xa00] sm:$0xff]
    %v496 = vld [vmem:[#allocation5 + $0xa08] sm:$0xff]
    %v497 = vld [vmem:[#allocation5 + $0xa10] sm:$0xff]
    %v498 = vld [vmem:[#allocation5 + $0xa18] sm:$0xff]
    %v499 = vld [vmem:[#allocation5 + $0xa20] sm:$0xff]
    %v500 = vld [vmem:[#allocation5 + $0xa28] sm:$0xff]
    %v501 = vld [vmem:[#allocation5 + $0xa30] sm:$0xff]
    %v502 = vld [vmem:[#allocation5 + $0xa38] sm:$0xff]
    %v503 = vld [vmem:[#allocation5 + $0xa40] sm:$0xff]
    %v504 = vld [vmem:[#allocation5 + $0xa48] sm:$0xff]
    %v505 = vld [vmem:[#allocation5 + $0xa50] sm:$0xff]
    %v506 = vld [vmem:[#allocation5 + $0xa58] sm:$0xff]
    %v507 = vld [vmem:[#allocation5 + $0xa60] sm:$0xff]
    %v508 = vld [vmem:[#allocation5 + $0xa68] sm:$0xff]
    %v509 = vld [vmem:[#allocation5 + $0xa70] sm:$0xff]
    %v510 = vld [vmem:[#allocation5 + $0xa78] sm:$0xff]
    %v511 = vld [vmem:[#allocation5 + $0xa80] sm:$0xff]
    %v512 = vld [vmem:[#allocation5 + $0xa88] sm:$0xff]
    %v513 = vld [vmem:[#allocation5 + $0xa90] sm:$0xff]
    %v514 = vld [vmem:[#allocation5 + $0xa98] sm:$0xff]
    %v515 = vld [vmem:[#allocation5 + $0xaa0] sm:$0xff]
    %v516 = vld [vmem:[#allocation5 + $0xaa8] sm:$0xff]
    %v517 = vld [vmem:[#allocation5 + $0xab0] sm:$0xff]
    %v518 = vld [vmem:[#allocation5 + $0xab8] sm:$0xff]
    %v519 = vld [vmem:[#allocation5 + $0xac0] sm:$0xff]
    %v520 = vld [vmem:[#allocation5 + $0xac8] sm:$0xff]
    %v521 = vld [vmem:[#allocation5 + $0xad0] sm:$0xff]
    %v522 = vld [vmem:[#allocation5 + $0xad8] sm:$0xff]
    %v523 = vld [vmem:[#allocation5 + $0xae0] sm:$0xff]
    %v524 = vld [vmem:[#allocation5 + $0xae8] sm:$0xff]
    %v525 = vld [vmem:[#allocation5 + $0xaf0] sm:$0xff]
    %v526 = vld [vmem:[#allocation5 + $0xaf8] sm:$0xff]
    %v527 = vld [vmem:[#allocation5 + $0xb00] sm:$0xff]
    %v528 = vld [vmem:[#allocation5 + $0xb08] sm:$0xff]
    %v529 = vld [vmem:[#allocation5 + $0xb10] sm:$0xff]
    %v530 = vld [vmem:[#allocation5 + $0xb18] sm:$0xff]
    %v531 = vld [vmem:[#allocation5 + $0xb20] sm:$0xff]
    %v532 = vld [vmem:[#allocation5 + $0xb28] sm:$0xff]
    %v533 = vld [vmem:[#allocation5 + $0xb30] sm:$0xff]
    %v534 = vld [vmem:[#allocation5 + $0xb38] sm:$0xff]
    %v535 = vld [vmem:[#allocation5 + $0xb40] sm:$0xff]
    %v536 = vld [vmem:[#allocation5 + $0xb48] sm:$0xff]
    %v537 = vld [vmem:[#allocation5 + $0xb50] sm:$0xff]
    %v538 = vld [vmem:[#allocation5 + $0xb58] sm:$0xff]
    %v539 = vld [vmem:[#allocation5 + $0xb60] sm:$0xff]
    %v540 = vld [vmem:[#allocation5 + $0xb68] sm:$0xff]
    %v541 = vld [vmem:[#allocation5 + $0xb70] sm:$0xff]
    %v542 = vld [vmem:[#allocation5 + $0xb78] sm:$0xff]
    %v543 = vld [vmem:[#allocation5 + $0xb80] sm:$0xff]
    %v544 = vld [vmem:[#allocation5 + $0xb88] sm:$0xff]
    %v545 = vld [vmem:[#allocation5 + $0xb90] sm:$0xff]
    %v546 = vld [vmem:[#allocation5 + $0xb98] sm:$0xff]
    %v547 = vld [vmem:[#allocation5 + $0xba0] sm:$0xff]
    %v548 = vld [vmem:[#allocation5 + $0xba8] sm:$0xff]
    %v549 = vld [vmem:[#allocation5 + $0xbb0] sm:$0xff]
    %v550 = vld [vmem:[#allocation5 + $0xbb8] sm:$0xff]
    %v551 = vld [vmem:[#allocation5 + $0xbc0] sm:$0xff]
    %v552 = vld [vmem:[#allocation5 + $0xbc8] sm:$0xff]
    %v553 = vld [vmem:[#allocation5 + $0xbd0] sm:$0xff]
    %v554 = vld [vmem:[#allocation5 + $0xbd8] sm:$0xff]
    %v555 = vld [vmem:[#allocation5 + $0xbe0] sm:$0xff]
    %v556 = vld [vmem:[#allocation5 + $0xbe8] sm:$0xff]
    %v557 = vld [vmem:[#allocation5 + $0xbf0] sm:$0xff]
    %v558 = vld [vmem:[#allocation5 + $0xbf8] sm:$0xff]
    %v559 = vld [vmem:[#allocation7] sm:$0xff]
    %v561 = vlaneseq
    %v562 = vshrl.u32 %v561, 7
    %v563 = vsub.s32 0, %v562
    %v564 = vrot.slane %v559, %v563
    %v565 = vlaneseq
    %v566 = vshrl.u32 %v565, 7
    %v567 = vsub.s32 1, %v566
    %v568 = vrot.slane %v559, %v567
    %v569 = vlaneseq
    %v570 = vshrl.u32 %v569, 7
    %v571 = vsub.s32 2, %v570
    %v572 = vrot.slane %v559, %v571
    %v573 = vlaneseq
    %v574 = vshrl.u32 %v573, 7
    %v575 = vsub.s32 3, %v574
    %v576 = vrot.slane %v559, %v575
    %v577 = vlaneseq
    %v578 = vshrl.u32 %v577, 7
    %v579 = vsub.s32 4, %v578
    %v580 = vrot.slane %v559, %v579
    %v581 = vlaneseq
    %v582 = vshrl.u32 %v581, 7
    %v583 = vsub.s32 5, %v582
    %v584 = vrot.slane %v559, %v583
    %v585 = vlaneseq
    %v586 = vshrl.u32 %v585, 7
    %v587 = vsub.s32 6, %v586
    %v588 = vrot.slane %v559, %v587
    %v589 = vlaneseq
    %v590 = vshrl.u32 %v589, 7
    %v591 = vsub.s32 7, %v590
    %v592 = vrot.slane %v559, %v591
    %v985 = vunpack.c.l.b16 %v175
    %v986 = vunpack.c.h.b16 %v175
    %v987 = vunpack.c.l.b16 %v176
    %v988 = vunpack.c.h.b16 %v176
    %v989 = vunpack.c.l.b16 %v177
    %v990 = vunpack.c.h.b16 %v177
    %v991 = vunpack.c.l.b16 %v178
    %v992 = vunpack.c.h.b16 %v178
    %v993 = vunpack.c.l.b16 %v179
    %v994 = vunpack.c.h.b16 %v179
    %v995 = vunpack.c.l.b16 %v180
    %v996 = vunpack.c.h.b16 %v180
    %v997 = vunpack.c.l.b16 %v181
    %v998 = vunpack.c.h.b16 %v181
    %v999 = vunpack.c.l.b16 %v182
    %v1000 = vunpack.c.h.b16 %v182
    %v1001 = vunpack.c.l.b16 %v183
    %v1002 = vunpack.c.h.b16 %v183
    %v1003 = vunpack.c.l.b16 %v184
    %v1004 = vunpack.c.h.b16 %v184
    %v1005 = vunpack.c.l.b16 %v185
    %v1006 = vunpack.c.h.b16 %v185
    %v1007 = vunpack.c.l.b16 %v186
    %v1008 = vunpack.c.h.b16 %v186
    %v1009 = vunpack.c.l.b16 %v187
    %v1010 = vunpack.c.h.b16 %v187
    %v1011 = vunpack.c.l.b16 %v188
    %v1012 = vunpack.c.h.b16 %v188
    %v1013 = vunpack.c.l.b16 %v189
    %v1014 = vunpack.c.h.b16 %v189
    %v1015 = vunpack.c.l.b16 %v190
    %v1016 = vunpack.c.h.b16 %v190
    %v1017 = vunpack.c.l.b16 %v191
    %v1018 = vunpack.c.h.b16 %v191
    %v1019 = vunpack.c.l.b16 %v192
    %v1020 = vunpack.c.h.b16 %v192
    %v1021 = vunpack.c.l.b16 %v193
    %v1022 = vunpack.c.h.b16 %v193
    %v1023 = vunpack.c.l.b16 %v194
    %v1024 = vunpack.c.h.b16 %v194
    %v1025 = vunpack.c.l.b16 %v195
    %v1026 = vunpack.c.h.b16 %v195
    %v1027 = vunpack.c.l.b16 %v196
    %v1028 = vunpack.c.h.b16 %v196
    %v1029 = vunpack.c.l.b16 %v197
    %v1030 = vunpack.c.h.b16 %v197
    %v1031 = vunpack.c.l.b16 %v198
    %v1032 = vunpack.c.h.b16 %v198
    %v1033 = vunpack.c.l.b16 %v199
    %v1034 = vunpack.c.h.b16 %v199
    %v1035 = vunpack.c.l.b16 %v200
    %v1036 = vunpack.c.h.b16 %v200
    %v1037 = vunpack.c.l.b16 %v201
    %v1038 = vunpack.c.h.b16 %v201
    %v1039 = vunpack.c.l.b16 %v202
    %v1040 = vunpack.c.h.b16 %v202
    %v1041 = vunpack.c.l.b16 %v203
    %v1042 = vunpack.c.h.b16 %v203
    %v1043 = vunpack.c.l.b16 %v204
    %v1044 = vunpack.c.h.b16 %v204
    %v1045 = vunpack.c.l.b16 %v205
    %v1046 = vunpack.c.h.b16 %v205
    %v1047 = vunpack.c.l.b16 %v206
    %v1048 = vunpack.c.h.b16 %v206
    %v1049 = vunpack.c.l.b16 %v207
    %v1050 = vunpack.c.h.b16 %v207
    %v1051 = vunpack.c.l.b16 %v208
    %v1052 = vunpack.c.h.b16 %v208
    %v1053 = vunpack.c.l.b16 %v209
    %v1054 = vunpack.c.h.b16 %v209
    %v1055 = vunpack.c.l.b16 %v210
    %v1056 = vunpack.c.h.b16 %v210
    %v1057 = vunpack.c.l.b16 %v211
    %v1058 = vunpack.c.h.b16 %v211
    %v1059 = vunpack.c.l.b16 %v212
    %v1060 = vunpack.c.h.b16 %v212
    %v1061 = vunpack.c.l.b16 %v213
    %v1062 = vunpack.c.h.b16 %v213
    %v1063 = vunpack.c.l.b16 %v214
    %v1064 = vunpack.c.h.b16 %v214
    %v1065 = vunpack.c.l.b16 %v215
    %v1066 = vunpack.c.h.b16 %v215
    %v1067 = vunpack.c.l.b16 %v216
    %v1068 = vunpack.c.h.b16 %v216
    %v1069 = vunpack.c.l.b16 %v217
    %v1070 = vunpack.c.h.b16 %v217
    %v1071 = vunpack.c.l.b16 %v218
    %v1072 = vunpack.c.h.b16 %v218
    %v1073 = vunpack.c.l.b16 %v219
    %v1074 = vunpack.c.h.b16 %v219
    %v1075 = vunpack.c.l.b16 %v220
    %v1076 = vunpack.c.h.b16 %v220
    %v1077 = vunpack.c.l.b16 %v221
    %v1078 = vunpack.c.h.b16 %v221
    %v1079 = vunpack.c.l.b16 %v222
    %v1080 = vunpack.c.h.b16 %v222
    %v1081 = vunpack.c.l.b16 %v223
    %v1082 = vunpack.c.h.b16 %v223
    %v1083 = vunpack.c.l.b16 %v224
    %v1084 = vunpack.c.h.b16 %v224
    %v1085 = vunpack.c.l.b16 %v225
    %v1086 = vunpack.c.h.b16 %v225
    %v1087 = vunpack.c.l.b16 %v226
    %v1088 = vunpack.c.h.b16 %v226
    %v1089 = vunpack.c.l.b16 %v227
    %v1090 = vunpack.c.h.b16 %v227
    %v1091 = vunpack.c.l.b16 %v228
    %v1092 = vunpack.c.h.b16 %v228
    %v1093 = vunpack.c.l.b16 %v229
    %v1094 = vunpack.c.h.b16 %v229
    %v1095 = vunpack.c.l.b16 %v230
    %v1096 = vunpack.c.h.b16 %v230
    %v1097 = vunpack.c.l.b16 %v231
    %v1098 = vunpack.c.h.b16 %v231
    %v1099 = vunpack.c.l.b16 %v232
    %v1100 = vunpack.c.h.b16 %v232
    %v1101 = vunpack.c.l.b16 %v233
    %v1102 = vunpack.c.h.b16 %v233
    %v1103 = vunpack.c.l.b16 %v234
    %v1104 = vunpack.c.h.b16 %v234
    %v1105 = vunpack.c.l.b16 %v235
    %v1106 = vunpack.c.h.b16 %v235
    %v1107 = vunpack.c.l.b16 %v236
    %v1108 = vunpack.c.h.b16 %v236
    %v1109 = vunpack.c.l.b16 %v237
    %v1110 = vunpack.c.h.b16 %v237
    %v1111 = vunpack.c.l.b16 %v238
    %v1112 = vunpack.c.h.b16 %v238
    %v1113 = vunpack.c.l.b16 %v239
    %v1114 = vunpack.c.h.b16 %v239
    %v1115 = vunpack.c.l.b16 %v240
    %v1116 = vunpack.c.h.b16 %v240
    %v1117 = vunpack.c.l.b16 %v241
    %v1118 = vunpack.c.h.b16 %v241
    %v1119 = vunpack.c.l.b16 %v242
    %v1120 = vunpack.c.h.b16 %v242
    %v1121 = vunpack.c.l.b16 %v243
    %v1122 = vunpack.c.h.b16 %v243
    %v1123 = vunpack.c.l.b16 %v244
    %v1124 = vunpack.c.h.b16 %v244
    %v1125 = vunpack.c.l.b16 %v245
    %v1126 = vunpack.c.h.b16 %v245
    %v1127 = vunpack.c.l.b16 %v246
    %v1128 = vunpack.c.h.b16 %v246
    %v1129 = vunpack.c.l.b16 %v247
    %v1130 = vunpack.c.h.b16 %v247
    %v1131 = vunpack.c.l.b16 %v248
    %v1132 = vunpack.c.h.b16 %v248
    %v1133 = vunpack.c.l.b16 %v249
    %v1134 = vunpack.c.h.b16 %v249
    %v1135 = vunpack.c.l.b16 %v250
    %v1136 = vunpack.c.h.b16 %v250
    %v1137 = vunpack.c.l.b16 %v251
    %v1138 = vunpack.c.h.b16 %v251
    %v1139 = vunpack.c.l.b16 %v252
    %v1140 = vunpack.c.h.b16 %v252
    %v1141 = vunpack.c.l.b16 %v253
    %v1142 = vunpack.c.h.b16 %v253
    %v1143 = vunpack.c.l.b16 %v254
    %v1144 = vunpack.c.h.b16 %v254
    %v1145 = vunpack.c.l.b16 %v255
    %v1146 = vunpack.c.h.b16 %v255
    %v1147 = vunpack.c.l.b16 %v256
    %v1148 = vunpack.c.h.b16 %v256
    %v1149 = vunpack.c.l.b16 %v257
    %v1150 = vunpack.c.h.b16 %v257
    %v1151 = vunpack.c.l.b16 %v258
    %v1152 = vunpack.c.h.b16 %v258
    %v1153 = vunpack.c.l.b16 %v259
    %v1154 = vunpack.c.h.b16 %v259
    %v1155 = vunpack.c.l.b16 %v260
    %v1156 = vunpack.c.h.b16 %v260
    %v1157 = vunpack.c.l.b16 %v261
    %v1158 = vunpack.c.h.b16 %v261
    %v1159 = vunpack.c.l.b16 %v262
    %v1160 = vunpack.c.h.b16 %v262
    %v1161 = vunpack.c.l.b16 %v263
    %v1162 = vunpack.c.h.b16 %v263
    %v1163 = vunpack.c.l.b16 %v264
    %v1164 = vunpack.c.h.b16 %v264
    %v1165 = vunpack.c.l.b16 %v265
    %v1166 = vunpack.c.h.b16 %v265
    %v1167 = vunpack.c.l.b16 %v266
    %v1168 = vunpack.c.h.b16 %v266
    %v1169 = vunpack.c.l.b16 %v267
    %v1170 = vunpack.c.h.b16 %v267
    %v1171 = vunpack.c.l.b16 %v268
    %v1172 = vunpack.c.h.b16 %v268
    %v1173 = vunpack.c.l.b16 %v269
    %v1174 = vunpack.c.h.b16 %v269
    %v1175 = vunpack.c.l.b16 %v270
    %v1176 = vunpack.c.h.b16 %v270
    %v1177 = vunpack.c.l.b16 %v271
    %v1178 = vunpack.c.h.b16 %v271
    %v1179 = vunpack.c.l.b16 %v272
    %v1180 = vunpack.c.h.b16 %v272
    %v1181 = vunpack.c.l.b16 %v273
    %v1182 = vunpack.c.h.b16 %v273
    %v1183 = vunpack.c.l.b16 %v274
    %v1184 = vunpack.c.h.b16 %v274
    %v1185 = vunpack.c.l.b16 %v275
    %v1186 = vunpack.c.h.b16 %v275
    %v1187 = vunpack.c.l.b16 %v276
    %v1188 = vunpack.c.h.b16 %v276
    %v1189 = vunpack.c.l.b16 %v277
    %v1190 = vunpack.c.h.b16 %v277
    %v1191 = vunpack.c.l.b16 %v278
    %v1192 = vunpack.c.h.b16 %v278
    %v1193 = vunpack.c.l.b16 %v279
    %v1194 = vunpack.c.h.b16 %v279
    %v1195 = vunpack.c.l.b16 %v280
    %v1196 = vunpack.c.h.b16 %v280
    %v1197 = vunpack.c.l.b16 %v281
    %v1198 = vunpack.c.h.b16 %v281
    %v1199 = vunpack.c.l.b16 %v282
    %v1200 = vunpack.c.h.b16 %v282
    %v1201 = vunpack.c.l.b16 %v283
    %v1202 = vunpack.c.h.b16 %v283
    %v1203 = vunpack.c.l.b16 %v284
    %v1204 = vunpack.c.h.b16 %v284
    %v1205 = vunpack.c.l.b16 %v285
    %v1206 = vunpack.c.h.b16 %v285
    %v1207 = vunpack.c.l.b16 %v286
    %v1208 = vunpack.c.h.b16 %v286
    %v1209 = vunpack.c.l.b16 %v287
    %v1210 = vunpack.c.h.b16 %v287
    %v1211 = vunpack.c.l.b16 %v288
    %v1212 = vunpack.c.h.b16 %v288
    %v1213 = vunpack.c.l.b16 %v289
    %v1214 = vunpack.c.h.b16 %v289
    %v1215 = vunpack.c.l.b16 %v290
    %v1216 = vunpack.c.h.b16 %v290
    %v1217 = vunpack.c.l.b16 %v291
    %v1218 = vunpack.c.h.b16 %v291
    %v1219 = vunpack.c.l.b16 %v292
    %v1220 = vunpack.c.h.b16 %v292
    %v1221 = vunpack.c.l.b16 %v293
    %v1222 = vunpack.c.h.b16 %v293
    %v1223 = vunpack.c.l.b16 %v294
    %v1224 = vunpack.c.h.b16 %v294
    %v1225 = vunpack.c.l.b16 %v295
    %v1226 = vunpack.c.h.b16 %v295
    %v1227 = vunpack.c.l.b16 %v296
    %v1228 = vunpack.c.h.b16 %v296
    %v1229 = vunpack.c.l.b16 %v297
    %v1230 = vunpack.c.h.b16 %v297
    %v1231 = vunpack.c.l.b16 %v298
    %v1232 = vunpack.c.h.b16 %v298
    %v1233 = vunpack.c.l.b16 %v299
    %v1234 = vunpack.c.h.b16 %v299
    %v1235 = vunpack.c.l.b16 %v300
    %v1236 = vunpack.c.h.b16 %v300
    %v1237 = vunpack.c.l.b16 %v301
    %v1238 = vunpack.c.h.b16 %v301
    %v1239 = vunpack.c.l.b16 %v302
    %v1240 = vunpack.c.h.b16 %v302
    %v1241 = vunpack.c.l.b16 %v303
    %v1242 = vunpack.c.h.b16 %v303
    %v1243 = vunpack.c.l.b16 %v304
    %v1244 = vunpack.c.h.b16 %v304
    %v1245 = vunpack.c.l.b16 %v305
    %v1246 = vunpack.c.h.b16 %v305
    %v1247 = vunpack.c.l.b16 %v306
    %v1248 = vunpack.c.h.b16 %v306
    %v1249 = vunpack.c.l.b16 %v307
    %v1250 = vunpack.c.h.b16 %v307
    %v1251 = vunpack.c.l.b16 %v308
    %v1252 = vunpack.c.h.b16 %v308
    %v1253 = vunpack.c.l.b16 %v309
    %v1254 = vunpack.c.h.b16 %v309
    %v1255 = vunpack.c.l.b16 %v310
    %v1256 = vunpack.c.h.b16 %v310
    %v1257 = vunpack.c.l.b16 %v311
    %v1258 = vunpack.c.h.b16 %v311
    %v1259 = vunpack.c.l.b16 %v312
    %v1260 = vunpack.c.h.b16 %v312
    %v1261 = vunpack.c.l.b16 %v313
    %v1262 = vunpack.c.h.b16 %v313
    %v1263 = vunpack.c.l.b16 %v314
    %v1264 = vunpack.c.h.b16 %v314
    %v1265 = vunpack.c.l.b16 %v315
    %v1266 = vunpack.c.h.b16 %v315
    %v1267 = vunpack.c.l.b16 %v316
    %v1268 = vunpack.c.h.b16 %v316
    %v1269 = vunpack.c.l.b16 %v317
    %v1270 = vunpack.c.h.b16 %v317
    %v1271 = vunpack.c.l.b16 %v318
    %v1272 = vunpack.c.h.b16 %v318
    %v1273 = vunpack.c.l.b16 %v319
    %v1274 = vunpack.c.h.b16 %v319
    %v1275 = vunpack.c.l.b16 %v320
    %v1276 = vunpack.c.h.b16 %v320
    %v1277 = vunpack.c.l.b16 %v321
    %v1278 = vunpack.c.h.b16 %v321
    %v1279 = vunpack.c.l.b16 %v322
    %v1280 = vunpack.c.h.b16 %v322
    %v1281 = vunpack.c.l.b16 %v323
    %v1282 = vunpack.c.h.b16 %v323
    %v1283 = vunpack.c.l.b16 %v324
    %v1284 = vunpack.c.h.b16 %v324
    %v1285 = vunpack.c.l.b16 %v325
    %v1286 = vunpack.c.h.b16 %v325
    %v1287 = vunpack.c.l.b16 %v326
    %v1288 = vunpack.c.h.b16 %v326
    %v1289 = vunpack.c.l.b16 %v327
    %v1290 = vunpack.c.h.b16 %v327
    %v1291 = vunpack.c.l.b16 %v328
    %v1292 = vunpack.c.h.b16 %v328
    %v1293 = vunpack.c.l.b16 %v329
    %v1294 = vunpack.c.h.b16 %v329
    %v1295 = vunpack.c.l.b16 %v330
    %v1296 = vunpack.c.h.b16 %v330
    %v1297 = vunpack.c.l.b16 %v331
    %v1298 = vunpack.c.h.b16 %v331
    %v1299 = vunpack.c.l.b16 %v332
    %v1300 = vunpack.c.h.b16 %v332
    %v1301 = vunpack.c.l.b16 %v333
    %v1302 = vunpack.c.h.b16 %v333
    %v1303 = vunpack.c.l.b16 %v334
    %v1304 = vunpack.c.h.b16 %v334
    %v1305 = vunpack.c.l.b16 %v335
    %v1306 = vunpack.c.h.b16 %v335
    %v1307 = vunpack.c.l.b16 %v336
    %v1308 = vunpack.c.h.b16 %v336
    %v1309 = vunpack.c.l.b16 %v337
    %v1310 = vunpack.c.h.b16 %v337
    %v1311 = vunpack.c.l.b16 %v338
    %v1312 = vunpack.c.h.b16 %v338
    %v1313 = vunpack.c.l.b16 %v339
    %v1314 = vunpack.c.h.b16 %v339
    %v1315 = vunpack.c.l.b16 %v340
    %v1316 = vunpack.c.h.b16 %v340
    %v1317 = vunpack.c.l.b16 %v341
    %v1318 = vunpack.c.h.b16 %v341
    %v1319 = vunpack.c.l.b16 %v342
    %v1320 = vunpack.c.h.b16 %v342
    %v1321 = vunpack.c.l.b16 %v343
    %v1322 = vunpack.c.h.b16 %v343
    %v1323 = vunpack.c.l.b16 %v344
    %v1324 = vunpack.c.h.b16 %v344
    %v1325 = vunpack.c.l.b16 %v345
    %v1326 = vunpack.c.h.b16 %v345
    %v1327 = vunpack.c.l.b16 %v346
    %v1328 = vunpack.c.h.b16 %v346
    %v1329 = vunpack.c.l.b16 %v347
    %v1330 = vunpack.c.h.b16 %v347
    %v1331 = vunpack.c.l.b16 %v348
    %v1332 = vunpack.c.h.b16 %v348
    %v1333 = vunpack.c.l.b16 %v349
    %v1334 = vunpack.c.h.b16 %v349
    %v1335 = vunpack.c.l.b16 %v350
    %v1336 = vunpack.c.h.b16 %v350
    %v1337 = vunpack.c.l.b16 %v351
    %v1338 = vunpack.c.h.b16 %v351
    %v1339 = vunpack.c.l.b16 %v352
    %v1340 = vunpack.c.h.b16 %v352
    %v1341 = vunpack.c.l.b16 %v353
    %v1342 = vunpack.c.h.b16 %v353
    %v1343 = vunpack.c.l.b16 %v354
    %v1344 = vunpack.c.h.b16 %v354
    %v1345 = vunpack.c.l.b16 %v355
    %v1346 = vunpack.c.h.b16 %v355
    %v1347 = vunpack.c.l.b16 %v356
    %v1348 = vunpack.c.h.b16 %v356
    %v1349 = vunpack.c.l.b16 %v357
    %v1350 = vunpack.c.h.b16 %v357
    %v1351 = vunpack.c.l.b16 %v358
    %v1352 = vunpack.c.h.b16 %v358
    %v1353 = vunpack.c.l.b16 %v359
    %v1354 = vunpack.c.h.b16 %v359
    %v1355 = vunpack.c.l.b16 %v360
    %v1356 = vunpack.c.h.b16 %v360
    %v1357 = vunpack.c.l.b16 %v361
    %v1358 = vunpack.c.h.b16 %v361
    %v1359 = vunpack.c.l.b16 %v362
    %v1360 = vunpack.c.h.b16 %v362
    %v1361 = vunpack.c.l.b16 %v363
    %v1362 = vunpack.c.h.b16 %v363
    %v1363 = vunpack.c.l.b16 %v364
    %v1364 = vunpack.c.h.b16 %v364
    %v1365 = vunpack.c.l.b16 %v365
    %v1366 = vunpack.c.h.b16 %v365
    %v1367 = vunpack.c.l.b16 %v366
    %v1368 = vunpack.c.h.b16 %v366
    %v1369 = vunpack.c.l.b16 %v367
    %v1370 = vunpack.c.h.b16 %v367
    %v1371 = vunpack.c.l.b16 %v368
    %v1372 = vunpack.c.h.b16 %v368
    %v1373 = vunpack.c.l.b16 %v369
    %v1374 = vunpack.c.h.b16 %v369
    %v1375 = vunpack.c.l.b16 %v370
    %v1376 = vunpack.c.h.b16 %v370
    %v1377 = vunpack.c.l.b16 %v371
    %v1378 = vunpack.c.h.b16 %v371
    %v1379 = vunpack.c.l.b16 %v372
    %v1380 = vunpack.c.h.b16 %v372
    %v1381 = vunpack.c.l.b16 %v373
    %v1382 = vunpack.c.h.b16 %v373
    %v1383 = vunpack.c.l.b16 %v374
    %v1384 = vunpack.c.h.b16 %v374
    %v1385 = vunpack.c.l.b16 %v375
    %v1386 = vunpack.c.h.b16 %v375
    %v1387 = vunpack.c.l.b16 %v376
    %v1388 = vunpack.c.h.b16 %v376
    %v1389 = vunpack.c.l.b16 %v377
    %v1390 = vunpack.c.h.b16 %v377
    %v1391 = vunpack.c.l.b16 %v378
    %v1392 = vunpack.c.h.b16 %v378
    %v1393 = vunpack.c.l.b16 %v379
    %v1394 = vunpack.c.h.b16 %v379
    %v1395 = vunpack.c.l.b16 %v380
    %v1396 = vunpack.c.h.b16 %v380
    %v1397 = vunpack.c.l.b16 %v381
    %v1398 = vunpack.c.h.b16 %v381
    %v1399 = vunpack.c.l.b16 %v382
    %v1400 = vunpack.c.h.b16 %v382
    %v1401 = vunpack.c.l.b16 %v383
    %v1402 = vunpack.c.h.b16 %v383
    %v1403 = vunpack.c.l.b16 %v384
    %v1404 = vunpack.c.h.b16 %v384
    %v1405 = vunpack.c.l.b16 %v385
    %v1406 = vunpack.c.h.b16 %v385
    %v1407 = vunpack.c.l.b16 %v386
    %v1408 = vunpack.c.h.b16 %v386
    %v1409 = vunpack.c.l.b16 %v387
    %v1410 = vunpack.c.h.b16 %v387
    %v1411 = vunpack.c.l.b16 %v388
    %v1412 = vunpack.c.h.b16 %v388
    %v1413 = vunpack.c.l.b16 %v389
    %v1414 = vunpack.c.h.b16 %v389
    %v1415 = vunpack.c.l.b16 %v390
    %v1416 = vunpack.c.h.b16 %v390
    %v1417 = vunpack.c.l.b16 %v391
    %v1418 = vunpack.c.h.b16 %v391
    %v1419 = vunpack.c.l.b16 %v392
    %v1420 = vunpack.c.h.b16 %v392
    %v1421 = vunpack.c.l.b16 %v393
    %v1422 = vunpack.c.h.b16 %v393
    %v1423 = vunpack.c.l.b16 %v394
    %v1424 = vunpack.c.h.b16 %v394
    %v1425 = vunpack.c.l.b16 %v395
    %v1426 = vunpack.c.h.b16 %v395
    %v1427 = vunpack.c.l.b16 %v396
    %v1428 = vunpack.c.h.b16 %v396
    %v1429 = vunpack.c.l.b16 %v397
    %v1430 = vunpack.c.h.b16 %v397
    %v1431 = vunpack.c.l.b16 %v398
    %v1432 = vunpack.c.h.b16 %v398
    %v1433 = vunpack.c.l.b16 %v399
    %v1434 = vunpack.c.h.b16 %v399
    %v1435 = vunpack.c.l.b16 %v400
    %v1436 = vunpack.c.h.b16 %v400
    %v1437 = vunpack.c.l.b16 %v401
    %v1438 = vunpack.c.h.b16 %v401
    %v1439 = vunpack.c.l.b16 %v402
    %v1440 = vunpack.c.h.b16 %v402
    %v1441 = vunpack.c.l.b16 %v403
    %v1442 = vunpack.c.h.b16 %v403
    %v1443 = vunpack.c.l.b16 %v404
    %v1444 = vunpack.c.h.b16 %v404
    %v1445 = vunpack.c.l.b16 %v405
    %v1446 = vunpack.c.h.b16 %v405
    %v1447 = vunpack.c.l.b16 %v406
    %v1448 = vunpack.c.h.b16 %v406
    %v1449 = vunpack.c.l.b16 %v407
    %v1450 = vunpack.c.h.b16 %v407
    %v1451 = vunpack.c.l.b16 %v408
    %v1452 = vunpack.c.h.b16 %v408
    %v1453 = vunpack.c.l.b16 %v409
    %v1454 = vunpack.c.h.b16 %v409
    %v1455 = vunpack.c.l.b16 %v410
    %v1456 = vunpack.c.h.b16 %v410
    %v1457 = vunpack.c.l.b16 %v411
    %v1458 = vunpack.c.h.b16 %v411
    %v1459 = vunpack.c.l.b16 %v412
    %v1460 = vunpack.c.h.b16 %v412
    %v1461 = vunpack.c.l.b16 %v413
    %v1462 = vunpack.c.h.b16 %v413
    %v1463 = vunpack.c.l.b16 %v414
    %v1464 = vunpack.c.h.b16 %v414
    %v1465 = vunpack.c.l.b16 %v415
    %v1466 = vunpack.c.h.b16 %v415
    %v1467 = vunpack.c.l.b16 %v416
    %v1468 = vunpack.c.h.b16 %v416
    %v1469 = vunpack.c.l.b16 %v417
    %v1470 = vunpack.c.h.b16 %v417
    %v1471 = vunpack.c.l.b16 %v418
    %v1472 = vunpack.c.h.b16 %v418
    %v1473 = vunpack.c.l.b16 %v419
    %v1474 = vunpack.c.h.b16 %v419
    %v1475 = vunpack.c.l.b16 %v420
    %v1476 = vunpack.c.h.b16 %v420
    %v1477 = vunpack.c.l.b16 %v421
    %v1478 = vunpack.c.h.b16 %v421
    %v1479 = vunpack.c.l.b16 %v422
    %v1480 = vunpack.c.h.b16 %v422
    %v1481 = vunpack.c.l.b16 %v423
    %v1482 = vunpack.c.h.b16 %v423
    %v1483 = vunpack.c.l.b16 %v424
    %v1484 = vunpack.c.h.b16 %v424
    %v1485 = vunpack.c.l.b16 %v425
    %v1486 = vunpack.c.h.b16 %v425
    %v1487 = vunpack.c.l.b16 %v426
    %v1488 = vunpack.c.h.b16 %v426
    %v1489 = vunpack.c.l.b16 %v427
    %v1490 = vunpack.c.h.b16 %v427
    %v1491 = vunpack.c.l.b16 %v428
    %v1492 = vunpack.c.h.b16 %v428
    %v1493 = vunpack.c.l.b16 %v429
    %v1494 = vunpack.c.h.b16 %v429
    %v1495 = vunpack.c.l.b16 %v430
    %v1496 = vunpack.c.h.b16 %v430
    %v1497 = vunpack.c.l.b16 %v431
    %v1498 = vunpack.c.h.b16 %v431
    %v1499 = vunpack.c.l.b16 %v432
    %v1500 = vunpack.c.h.b16 %v432
    %v1501 = vunpack.c.l.b16 %v433
    %v1502 = vunpack.c.h.b16 %v433
    %v1503 = vunpack.c.l.b16 %v434
    %v1504 = vunpack.c.h.b16 %v434
    %v1505 = vunpack.c.l.b16 %v435
    %v1506 = vunpack.c.h.b16 %v435
    %v1507 = vunpack.c.l.b16 %v436
    %v1508 = vunpack.c.h.b16 %v436
    %v1509 = vunpack.c.l.b16 %v437
    %v1510 = vunpack.c.h.b16 %v437
    %v1511 = vunpack.c.l.b16 %v438
    %v1512 = vunpack.c.h.b16 %v438
    %v1513 = vunpack.c.l.b16 %v439
    %v1514 = vunpack.c.h.b16 %v439
    %v1515 = vunpack.c.l.b16 %v440
    %v1516 = vunpack.c.h.b16 %v440
    %v1517 = vunpack.c.l.b16 %v441
    %v1518 = vunpack.c.h.b16 %v441
    %v1519 = vunpack.c.l.b16 %v442
    %v1520 = vunpack.c.h.b16 %v442
    %v1521 = vunpack.c.l.b16 %v443
    %v1522 = vunpack.c.h.b16 %v443
    %v1523 = vunpack.c.l.b16 %v444
    %v1524 = vunpack.c.h.b16 %v444
    %v1525 = vunpack.c.l.b16 %v445
    %v1526 = vunpack.c.h.b16 %v445
    %v1527 = vunpack.c.l.b16 %v446
    %v1528 = vunpack.c.h.b16 %v446
    %v1529 = vunpack.c.l.b16 %v447
    %v1530 = vunpack.c.h.b16 %v447
    %v1531 = vunpack.c.l.b16 %v448
    %v1532 = vunpack.c.h.b16 %v448
    %v1533 = vunpack.c.l.b16 %v449
    %v1534 = vunpack.c.h.b16 %v449
    %v1535 = vunpack.c.l.b16 %v450
    %v1536 = vunpack.c.h.b16 %v450
    %v1537 = vunpack.c.l.b16 %v451
    %v1538 = vunpack.c.h.b16 %v451
    %v1539 = vunpack.c.l.b16 %v452
    %v1540 = vunpack.c.h.b16 %v452
    %v1541 = vunpack.c.l.b16 %v453
    %v1542 = vunpack.c.h.b16 %v453
    %v1543 = vunpack.c.l.b16 %v454
    %v1544 = vunpack.c.h.b16 %v454
    %v1545 = vunpack.c.l.b16 %v455
    %v1546 = vunpack.c.h.b16 %v455
    %v1547 = vunpack.c.l.b16 %v456
    %v1548 = vunpack.c.h.b16 %v456
    %v1549 = vunpack.c.l.b16 %v457
    %v1550 = vunpack.c.h.b16 %v457
    %v1551 = vunpack.c.l.b16 %v458
    %v1552 = vunpack.c.h.b16 %v458
    %v1553 = vunpack.c.l.b16 %v459
    %v1554 = vunpack.c.h.b16 %v459
    %v1555 = vunpack.c.l.b16 %v460
    %v1556 = vunpack.c.h.b16 %v460
    %v1557 = vunpack.c.l.b16 %v461
    %v1558 = vunpack.c.h.b16 %v461
    %v1559 = vunpack.c.l.b16 %v462
    %v1560 = vunpack.c.h.b16 %v462
    %v1561 = vunpack.c.l.b16 %v463
    %v1562 = vunpack.c.h.b16 %v463
    %v1563 = vunpack.c.l.b16 %v464
    %v1564 = vunpack.c.h.b16 %v464
    %v1565 = vunpack.c.l.b16 %v465
    %v1566 = vunpack.c.h.b16 %v465
    %v1567 = vunpack.c.l.b16 %v466
    %v1568 = vunpack.c.h.b16 %v466
    %v1569 = vunpack.c.l.b16 %v467
    %v1570 = vunpack.c.h.b16 %v467
    %v1571 = vunpack.c.l.b16 %v468
    %v1572 = vunpack.c.h.b16 %v468
    %v1573 = vunpack.c.l.b16 %v469
    %v1574 = vunpack.c.h.b16 %v469
    %v1575 = vunpack.c.l.b16 %v470
    %v1576 = vunpack.c.h.b16 %v470
    %v1577 = vunpack.c.l.b16 %v471
    %v1578 = vunpack.c.h.b16 %v471
    %v1579 = vunpack.c.l.b16 %v472
    %v1580 = vunpack.c.h.b16 %v472
    %v1581 = vunpack.c.l.b16 %v473
    %v1582 = vunpack.c.h.b16 %v473
    %v1583 = vunpack.c.l.b16 %v474
    %v1584 = vunpack.c.h.b16 %v474
    %v1585 = vunpack.c.l.b16 %v475
    %v1586 = vunpack.c.h.b16 %v475
    %v1587 = vunpack.c.l.b16 %v476
    %v1588 = vunpack.c.h.b16 %v476
    %v1589 = vunpack.c.l.b16 %v477
    %v1590 = vunpack.c.h.b16 %v477
    %v1591 = vunpack.c.l.b16 %v478
    %v1592 = vunpack.c.h.b16 %v478
    %v1593 = vunpack.c.l.b16 %v479
    %v1594 = vunpack.c.h.b16 %v479
    %v1595 = vunpack.c.l.b16 %v480
    %v1596 = vunpack.c.h.b16 %v480
    %v1597 = vunpack.c.l.b16 %v481
    %v1598 = vunpack.c.h.b16 %v481
    %v1599 = vunpack.c.l.b16 %v482
    %v1600 = vunpack.c.h.b16 %v482
    %v1601 = vunpack.c.l.b16 %v483
    %v1602 = vunpack.c.h.b16 %v483
    %v1603 = vunpack.c.l.b16 %v484
    %v1604 = vunpack.c.h.b16 %v484
    %v1605 = vunpack.c.l.b16 %v485
    %v1606 = vunpack.c.h.b16 %v485
    %v1607 = vunpack.c.l.b16 %v486
    %v1608 = vunpack.c.h.b16 %v486
    %v1609 = vunpack.c.l.b16 %v487
    %v1610 = vunpack.c.h.b16 %v487
    %v1611 = vunpack.c.l.b16 %v488
    %v1612 = vunpack.c.h.b16 %v488
    %v1613 = vunpack.c.l.b16 %v489
    %v1614 = vunpack.c.h.b16 %v489
    %v1615 = vunpack.c.l.b16 %v490
    %v1616 = vunpack.c.h.b16 %v490
    %v1617 = vunpack.c.l.b16 %v491
    %v1618 = vunpack.c.h.b16 %v491
    %v1619 = vunpack.c.l.b16 %v492
    %v1620 = vunpack.c.h.b16 %v492
    %v1621 = vunpack.c.l.b16 %v493
    %v1622 = vunpack.c.h.b16 %v493
    %v1623 = vunpack.c.l.b16 %v494
    %v1624 = vunpack.c.h.b16 %v494
    %v1625 = vunpack.c.l.b16 %v495
    %v1626 = vunpack.c.h.b16 %v495
    %v1627 = vunpack.c.l.b16 %v496
    %v1628 = vunpack.c.h.b16 %v496
    %v1629 = vunpack.c.l.b16 %v497
    %v1630 = vunpack.c.h.b16 %v497
    %v1631 = vunpack.c.l.b16 %v498
    %v1632 = vunpack.c.h.b16 %v498
    %v1633 = vunpack.c.l.b16 %v499
    %v1634 = vunpack.c.h.b16 %v499
    %v1635 = vunpack.c.l.b16 %v500
    %v1636 = vunpack.c.h.b16 %v500
    %v1637 = vunpack.c.l.b16 %v501
    %v1638 = vunpack.c.h.b16 %v501
    %v1639 = vunpack.c.l.b16 %v502
    %v1640 = vunpack.c.h.b16 %v502
    %v1641 = vunpack.c.l.b16 %v503
    %v1642 = vunpack.c.h.b16 %v503
    %v1643 = vunpack.c.l.b16 %v504
    %v1644 = vunpack.c.h.b16 %v504
    %v1645 = vunpack.c.l.b16 %v505
    %v1646 = vunpack.c.h.b16 %v505
    %v1647 = vunpack.c.l.b16 %v506
    %v1648 = vunpack.c.h.b16 %v506
    %v1649 = vunpack.c.l.b16 %v507
    %v1650 = vunpack.c.h.b16 %v507
    %v1651 = vunpack.c.l.b16 %v508
    %v1652 = vunpack.c.h.b16 %v508
    %v1653 = vunpack.c.l.b16 %v509
    %v1654 = vunpack.c.h.b16 %v509
    %v1655 = vunpack.c.l.b16 %v510
    %v1656 = vunpack.c.h.b16 %v510
    %v1657 = vunpack.c.l.b16 %v511
    %v1658 = vunpack.c.h.b16 %v511
    %v1659 = vunpack.c.l.b16 %v512
    %v1660 = vunpack.c.h.b16 %v512
    %v1661 = vunpack.c.l.b16 %v513
    %v1662 = vunpack.c.h.b16 %v513
    %v1663 = vunpack.c.l.b16 %v514
    %v1664 = vunpack.c.h.b16 %v514
    %v1665 = vunpack.c.l.b16 %v515
    %v1666 = vunpack.c.h.b16 %v515
    %v1667 = vunpack.c.l.b16 %v516
    %v1668 = vunpack.c.h.b16 %v516
    %v1669 = vunpack.c.l.b16 %v517
    %v1670 = vunpack.c.h.b16 %v517
    %v1671 = vunpack.c.l.b16 %v518
    %v1672 = vunpack.c.h.b16 %v518
    %v1673 = vunpack.c.l.b16 %v519
    %v1674 = vunpack.c.h.b16 %v519
    %v1675 = vunpack.c.l.b16 %v520
    %v1676 = vunpack.c.h.b16 %v520
    %v1677 = vunpack.c.l.b16 %v521
    %v1678 = vunpack.c.h.b16 %v521
    %v1679 = vunpack.c.l.b16 %v522
    %v1680 = vunpack.c.h.b16 %v522
    %v1681 = vunpack.c.l.b16 %v523
    %v1682 = vunpack.c.h.b16 %v523
    %v1683 = vunpack.c.l.b16 %v524
    %v1684 = vunpack.c.h.b16 %v524
    %v1685 = vunpack.c.l.b16 %v525
    %v1686 = vunpack.c.h.b16 %v525
    %v1687 = vunpack.c.l.b16 %v526
    %v1688 = vunpack.c.h.b16 %v526
    %v1689 = vunpack.c.l.b16 %v527
    %v1690 = vunpack.c.h.b16 %v527
    %v1691 = vunpack.c.l.b16 %v528
    %v1692 = vunpack.c.h.b16 %v528
    %v1693 = vunpack.c.l.b16 %v529
    %v1694 = vunpack.c.h.b16 %v529
    %v1695 = vunpack.c.l.b16 %v530
    %v1696 = vunpack.c.h.b16 %v530
    %v1697 = vunpack.c.l.b16 %v531
    %v1698 = vunpack.c.h.b16 %v531
    %v1699 = vunpack.c.l.b16 %v532
    %v1700 = vunpack.c.h.b16 %v532
    %v1701 = vunpack.c.l.b16 %v533
    %v1702 = vunpack.c.h.b16 %v533
    %v1703 = vunpack.c.l.b16 %v534
    %v1704 = vunpack.c.h.b16 %v534
    %v1705 = vunpack.c.l.b16 %v535
    %v1706 = vunpack.c.h.b16 %v535
    %v1707 = vunpack.c.l.b16 %v536
    %v1708 = vunpack.c.h.b16 %v536
    %v1709 = vunpack.c.l.b16 %v537
    %v1710 = vunpack.c.h.b16 %v537
    %v1711 = vunpack.c.l.b16 %v538
    %v1712 = vunpack.c.h.b16 %v538
    %v1713 = vunpack.c.l.b16 %v539
    %v1714 = vunpack.c.h.b16 %v539
    %v1715 = vunpack.c.l.b16 %v540
    %v1716 = vunpack.c.h.b16 %v540
    %v1717 = vunpack.c.l.b16 %v541
    %v1718 = vunpack.c.h.b16 %v541
    %v1719 = vunpack.c.l.b16 %v542
    %v1720 = vunpack.c.h.b16 %v542
    %v1721 = vunpack.c.l.b16 %v543
    %v1722 = vunpack.c.h.b16 %v543
    %v1723 = vunpack.c.l.b16 %v544
    %v1724 = vunpack.c.h.b16 %v544
    %v1725 = vunpack.c.l.b16 %v545
    %v1726 = vunpack.c.h.b16 %v545
    %v1727 = vunpack.c.l.b16 %v546
    %v1728 = vunpack.c.h.b16 %v546
    %v1729 = vunpack.c.l.b16 %v547
    %v1730 = vunpack.c.h.b16 %v547
    %v1731 = vunpack.c.l.b16 %v548
    %v1732 = vunpack.c.h.b16 %v548
    %v1733 = vunpack.c.l.b16 %v549
    %v1734 = vunpack.c.h.b16 %v549
    %v1735 = vunpack.c.l.b16 %v550
    %v1736 = vunpack.c.h.b16 %v550
    %v1737 = vunpack.c.l.b16 %v551
    %v1738 = vunpack.c.h.b16 %v551
    %v1739 = vunpack.c.l.b16 %v552
    %v1740 = vunpack.c.h.b16 %v552
    %v1741 = vunpack.c.l.b16 %v553
    %v1742 = vunpack.c.h.b16 %v553
    %v1743 = vunpack.c.l.b16 %v554
    %v1744 = vunpack.c.h.b16 %v554
    %v1745 = vunpack.c.l.b16 %v555
    %v1746 = vunpack.c.h.b16 %v555
    %v1747 = vunpack.c.l.b16 %v556
    %v1748 = vunpack.c.h.b16 %v556
    %v1749 = vunpack.c.l.b16 %v557
    %v1750 = vunpack.c.h.b16 %v557
    %v1751 = vunpack.c.l.b16 %v558
    %v1752 = vunpack.c.h.b16 %v558
    %v1753 = vpack.c.b16 %v993, %v985
    %v1754 = vpack.c.b16 %v994, %v986
    %v1755 = vpack.c.b16 %v995, %v987
    %v1756 = vpack.c.b16 %v996, %v988
    %v1757 = vpack.c.b16 %v997, %v989
    %v1758 = vpack.c.b16 %v998, %v990
    %v1759 = vpack.c.b16 %v999, %v991
    %v1760 = vpack.c.b16 %v1000, %v992
    %v1761 = vpack.c.b16 %v1009, %v1001
    %v1762 = vpack.c.b16 %v1010, %v1002
    %v1763 = vpack.c.b16 %v1011, %v1003
    %v1764 = vpack.c.b16 %v1012, %v1004
    %v1765 = vpack.c.b16 %v1013, %v1005
    %v1766 = vpack.c.b16 %v1014, %v1006
    %v1767 = vpack.c.b16 %v1015, %v1007
    %v1768 = vpack.c.b16 %v1016, %v1008
    %v1769 = vpack.c.b16 %v1025, %v1017
    %v1770 = vpack.c.b16 %v1026, %v1018
    %v1771 = vpack.c.b16 %v1027, %v1019
    %v1772 = vpack.c.b16 %v1028, %v1020
    %v1773 = vpack.c.b16 %v1029, %v1021
    %v1774 = vpack.c.b16 %v1030, %v1022
    %v1775 = vpack.c.b16 %v1031, %v1023
    %v1776 = vpack.c.b16 %v1032, %v1024
    %v1777 = vpack.c.b16 %v1041, %v1033
    %v1778 = vpack.c.b16 %v1042, %v1034
    %v1779 = vpack.c.b16 %v1043, %v1035
    %v1780 = vpack.c.b16 %v1044, %v1036
    %v1781 = vpack.c.b16 %v1045, %v1037
    %v1782 = vpack.c.b16 %v1046, %v1038
    %v1783 = vpack.c.b16 %v1047, %v1039
    %v1784 = vpack.c.b16 %v1048, %v1040
    %v1785 = vpack.c.b16 %v1057, %v1049
    %v1786 = vpack.c.b16 %v1058, %v1050
    %v1787 = vpack.c.b16 %v1059, %v1051
    %v1788 = vpack.c.b16 %v1060, %v1052
    %v1789 = vpack.c.b16 %v1061, %v1053
    %v1790 = vpack.c.b16 %v1062, %v1054
    %v1791 = vpack.c.b16 %v1063, %v1055
    %v1792 = vpack.c.b16 %v1064, %v1056
    %v1793 = vpack.c.b16 %v1073, %v1065
    %v1794 = vpack.c.b16 %v1074, %v1066
    %v1795 = vpack.c.b16 %v1075, %v1067
    %v1796 = vpack.c.b16 %v1076, %v1068
    %v1797 = vpack.c.b16 %v1077, %v1069
    %v1798 = vpack.c.b16 %v1078, %v1070
    %v1799 = vpack.c.b16 %v1079, %v1071
    %v1800 = vpack.c.b16 %v1080, %v1072
    %v1801 = vpack.c.b16 %v1089, %v1081
    %v1802 = vpack.c.b16 %v1090, %v1082
    %v1803 = vpack.c.b16 %v1091, %v1083
    %v1804 = vpack.c.b16 %v1092, %v1084
    %v1805 = vpack.c.b16 %v1093, %v1085
    %v1806 = vpack.c.b16 %v1094, %v1086
    %v1807 = vpack.c.b16 %v1095, %v1087
    %v1808 = vpack.c.b16 %v1096, %v1088
    %v1809 = vpack.c.b16 %v1105, %v1097
    %v1810 = vpack.c.b16 %v1106, %v1098
    %v1811 = vpack.c.b16 %v1107, %v1099
    %v1812 = vpack.c.b16 %v1108, %v1100
    %v1813 = vpack.c.b16 %v1109, %v1101
    %v1814 = vpack.c.b16 %v1110, %v1102
    %v1815 = vpack.c.b16 %v1111, %v1103
    %v1816 = vpack.c.b16 %v1112, %v1104
    %v1817 = vpack.c.b16 %v1121, %v1113
    %v1818 = vpack.c.b16 %v1122, %v1114
    %v1819 = vpack.c.b16 %v1123, %v1115
    %v1820 = vpack.c.b16 %v1124, %v1116
    %v1821 = vpack.c.b16 %v1125, %v1117
    %v1822 = vpack.c.b16 %v1126, %v1118
    %v1823 = vpack.c.b16 %v1127, %v1119
    %v1824 = vpack.c.b16 %v1128, %v1120
    %v1825 = vpack.c.b16 %v1137, %v1129
    %v1826 = vpack.c.b16 %v1138, %v1130
    %v1827 = vpack.c.b16 %v1139, %v1131
    %v1828 = vpack.c.b16 %v1140, %v1132
    %v1829 = vpack.c.b16 %v1141, %v1133
    %v1830 = vpack.c.b16 %v1142, %v1134
    %v1831 = vpack.c.b16 %v1143, %v1135
    %v1832 = vpack.c.b16 %v1144, %v1136
    %v1833 = vpack.c.b16 %v1153, %v1145
    %v1834 = vpack.c.b16 %v1154, %v1146
    %v1835 = vpack.c.b16 %v1155, %v1147
    %v1836 = vpack.c.b16 %v1156, %v1148
    %v1837 = vpack.c.b16 %v1157, %v1149
    %v1838 = vpack.c.b16 %v1158, %v1150
    %v1839 = vpack.c.b16 %v1159, %v1151
    %v1840 = vpack.c.b16 %v1160, %v1152
    %v1841 = vpack.c.b16 %v1169, %v1161
    %v1842 = vpack.c.b16 %v1170, %v1162
    %v1843 = vpack.c.b16 %v1171, %v1163
    %v1844 = vpack.c.b16 %v1172, %v1164
    %v1845 = vpack.c.b16 %v1173, %v1165
    %v1846 = vpack.c.b16 %v1174, %v1166
    %v1847 = vpack.c.b16 %v1175, %v1167
    %v1848 = vpack.c.b16 %v1176, %v1168
    %v1849 = vpack.c.b16 %v1185, %v1177
    %v1850 = vpack.c.b16 %v1186, %v1178
    %v1851 = vpack.c.b16 %v1187, %v1179
    %v1852 = vpack.c.b16 %v1188, %v1180
    %v1853 = vpack.c.b16 %v1189, %v1181
    %v1854 = vpack.c.b16 %v1190, %v1182
    %v1855 = vpack.c.b16 %v1191, %v1183
    %v1856 = vpack.c.b16 %v1192, %v1184
    %v1857 = vpack.c.b16 %v1201, %v1193
    %v1858 = vpack.c.b16 %v1202, %v1194
    %v1859 = vpack.c.b16 %v1203, %v1195
    %v1860 = vpack.c.b16 %v1204, %v1196
    %v1861 = vpack.c.b16 %v1205, %v1197
    %v1862 = vpack.c.b16 %v1206, %v1198
    %v1863 = vpack.c.b16 %v1207, %v1199
    %v1864 = vpack.c.b16 %v1208, %v1200
    %v1865 = vpack.c.b16 %v1217, %v1209
    %v1866 = vpack.c.b16 %v1218, %v1210
    %v1867 = vpack.c.b16 %v1219, %v1211
    %v1868 = vpack.c.b16 %v1220, %v1212
    %v1869 = vpack.c.b16 %v1221, %v1213
    %v1870 = vpack.c.b16 %v1222, %v1214
    %v1871 = vpack.c.b16 %v1223, %v1215
    %v1872 = vpack.c.b16 %v1224, %v1216
    %v1873 = vpack.c.b16 %v1233, %v1225
    %v1874 = vpack.c.b16 %v1234, %v1226
    %v1875 = vpack.c.b16 %v1235, %v1227
    %v1876 = vpack.c.b16 %v1236, %v1228
    %v1877 = vpack.c.b16 %v1237, %v1229
    %v1878 = vpack.c.b16 %v1238, %v1230
    %v1879 = vpack.c.b16 %v1239, %v1231
    %v1880 = vpack.c.b16 %v1240, %v1232
    %v1881 = vpack.c.b16 %v1249, %v1241
    %v1882 = vpack.c.b16 %v1250, %v1242
    %v1883 = vpack.c.b16 %v1251, %v1243
    %v1884 = vpack.c.b16 %v1252, %v1244
    %v1885 = vpack.c.b16 %v1253, %v1245
    %v1886 = vpack.c.b16 %v1254, %v1246
    %v1887 = vpack.c.b16 %v1255, %v1247
    %v1888 = vpack.c.b16 %v1256, %v1248
    %v1889 = vpack.c.b16 %v1265, %v1257
    %v1890 = vpack.c.b16 %v1266, %v1258
    %v1891 = vpack.c.b16 %v1267, %v1259
    %v1892 = vpack.c.b16 %v1268, %v1260
    %v1893 = vpack.c.b16 %v1269, %v1261
    %v1894 = vpack.c.b16 %v1270, %v1262
    %v1895 = vpack.c.b16 %v1271, %v1263
    %v1896 = vpack.c.b16 %v1272, %v1264
    %v1897 = vpack.c.b16 %v1281, %v1273
    %v1898 = vpack.c.b16 %v1282, %v1274
    %v1899 = vpack.c.b16 %v1283, %v1275
    %v1900 = vpack.c.b16 %v1284, %v1276
    %v1901 = vpack.c.b16 %v1285, %v1277
    %v1902 = vpack.c.b16 %v1286, %v1278
    %v1903 = vpack.c.b16 %v1287, %v1279
    %v1904 = vpack.c.b16 %v1288, %v1280
    %v1905 = vpack.c.b16 %v1297, %v1289
    %v1906 = vpack.c.b16 %v1298, %v1290
    %v1907 = vpack.c.b16 %v1299, %v1291
    %v1908 = vpack.c.b16 %v1300, %v1292
    %v1909 = vpack.c.b16 %v1301, %v1293
    %v1910 = vpack.c.b16 %v1302, %v1294
    %v1911 = vpack.c.b16 %v1303, %v1295
    %v1912 = vpack.c.b16 %v1304, %v1296
    %v1913 = vpack.c.b16 %v1313, %v1305
    %v1914 = vpack.c.b16 %v1314, %v1306
    %v1915 = vpack.c.b16 %v1315, %v1307
    %v1916 = vpack.c.b16 %v1316, %v1308
    %v1917 = vpack.c.b16 %v1317, %v1309
    %v1918 = vpack.c.b16 %v1318, %v1310
    %v1919 = vpack.c.b16 %v1319, %v1311
    %v1920 = vpack.c.b16 %v1320, %v1312
    %v1921 = vpack.c.b16 %v1329, %v1321
    %v1922 = vpack.c.b16 %v1330, %v1322
    %v1923 = vpack.c.b16 %v1331, %v1323
    %v1924 = vpack.c.b16 %v1332, %v1324
    %v1925 = vpack.c.b16 %v1333, %v1325
    %v1926 = vpack.c.b16 %v1334, %v1326
    %v1927 = vpack.c.b16 %v1335, %v1327
    %v1928 = vpack.c.b16 %v1336, %v1328
    %v1929 = vpack.c.b16 %v1345, %v1337
    %v1930 = vpack.c.b16 %v1346, %v1338
    %v1931 = vpack.c.b16 %v1347, %v1339
    %v1932 = vpack.c.b16 %v1348, %v1340
    %v1933 = vpack.c.b16 %v1349, %v1341
    %v1934 = vpack.c.b16 %v1350, %v1342
    %v1935 = vpack.c.b16 %v1351, %v1343
    %v1936 = vpack.c.b16 %v1352, %v1344
    %v1937 = vpack.c.b16 %v1361, %v1353
    %v1938 = vpack.c.b16 %v1362, %v1354
    %v1939 = vpack.c.b16 %v1363, %v1355
    %v1940 = vpack.c.b16 %v1364, %v1356
    %v1941 = vpack.c.b16 %v1365, %v1357
    %v1942 = vpack.c.b16 %v1366, %v1358
    %v1943 = vpack.c.b16 %v1367, %v1359
    %v1944 = vpack.c.b16 %v1368, %v1360
    %v1945 = vpack.c.b16 %v1377, %v1369
    %v1946 = vpack.c.b16 %v1378, %v1370
    %v1947 = vpack.c.b16 %v1379, %v1371
    %v1948 = vpack.c.b16 %v1380, %v1372
    %v1949 = vpack.c.b16 %v1381, %v1373
    %v1950 = vpack.c.b16 %v1382, %v1374
    %v1951 = vpack.c.b16 %v1383, %v1375
    %v1952 = vpack.c.b16 %v1384, %v1376
    %v1953 = vpack.c.b16 %v1393, %v1385
    %v1954 = vpack.c.b16 %v1394, %v1386
    %v1955 = vpack.c.b16 %v1395, %v1387
    %v1956 = vpack.c.b16 %v1396, %v1388
    %v1957 = vpack.c.b16 %v1397, %v1389
    %v1958 = vpack.c.b16 %v1398, %v1390
    %v1959 = vpack.c.b16 %v1399, %v1391
    %v1960 = vpack.c.b16 %v1400, %v1392
    %v1961 = vpack.c.b16 %v1409, %v1401
    %v1962 = vpack.c.b16 %v1410, %v1402
    %v1963 = vpack.c.b16 %v1411, %v1403
    %v1964 = vpack.c.b16 %v1412, %v1404
    %v1965 = vpack.c.b16 %v1413, %v1405
    %v1966 = vpack.c.b16 %v1414, %v1406
    %v1967 = vpack.c.b16 %v1415, %v1407
    %v1968 = vpack.c.b16 %v1416, %v1408
    %v1969 = vpack.c.b16 %v1425, %v1417
    %v1970 = vpack.c.b16 %v1426, %v1418
    %v1971 = vpack.c.b16 %v1427, %v1419
    %v1972 = vpack.c.b16 %v1428, %v1420
    %v1973 = vpack.c.b16 %v1429, %v1421
    %v1974 = vpack.c.b16 %v1430, %v1422
    %v1975 = vpack.c.b16 %v1431, %v1423
    %v1976 = vpack.c.b16 %v1432, %v1424
    %v1977 = vpack.c.b16 %v1441, %v1433
    %v1978 = vpack.c.b16 %v1442, %v1434
    %v1979 = vpack.c.b16 %v1443, %v1435
    %v1980 = vpack.c.b16 %v1444, %v1436
    %v1981 = vpack.c.b16 %v1445, %v1437
    %v1982 = vpack.c.b16 %v1446, %v1438
    %v1983 = vpack.c.b16 %v1447, %v1439
    %v1984 = vpack.c.b16 %v1448, %v1440
    %v1985 = vpack.c.b16 %v1457, %v1449
    %v1986 = vpack.c.b16 %v1458, %v1450
    %v1987 = vpack.c.b16 %v1459, %v1451
    %v1988 = vpack.c.b16 %v1460, %v1452
    %v1989 = vpack.c.b16 %v1461, %v1453
    %v1990 = vpack.c.b16 %v1462, %v1454
    %v1991 = vpack.c.b16 %v1463, %v1455
    %v1992 = vpack.c.b16 %v1464, %v1456
    %v1993 = vpack.c.b16 %v1473, %v1465
    %v1994 = vpack.c.b16 %v1474, %v1466
    %v1995 = vpack.c.b16 %v1475, %v1467
    %v1996 = vpack.c.b16 %v1476, %v1468
    %v1997 = vpack.c.b16 %v1477, %v1469
    %v1998 = vpack.c.b16 %v1478, %v1470
    %v1999 = vpack.c.b16 %v1479, %v1471
    %v2000 = vpack.c.b16 %v1480, %v1472
    %v2001 = vpack.c.b16 %v1489, %v1481
    %v2002 = vpack.c.b16 %v1490, %v1482
    %v2003 = vpack.c.b16 %v1491, %v1483
    %v2004 = vpack.c.b16 %v1492, %v1484
    %v2005 = vpack.c.b16 %v1493, %v1485
    %v2006 = vpack.c.b16 %v1494, %v1486
    %v2007 = vpack.c.b16 %v1495, %v1487
    %v2008 = vpack.c.b16 %v1496, %v1488
    %v2009 = vpack.c.b16 %v1505, %v1497
    %v2010 = vpack.c.b16 %v1506, %v1498
    %v2011 = vpack.c.b16 %v1507, %v1499
    %v2012 = vpack.c.b16 %v1508, %v1500
    %v2013 = vpack.c.b16 %v1509, %v1501
    %v2014 = vpack.c.b16 %v1510, %v1502
    %v2015 = vpack.c.b16 %v1511, %v1503
    %v2016 = vpack.c.b16 %v1512, %v1504
    %v2017 = vpack.c.b16 %v1521, %v1513
    %v2018 = vpack.c.b16 %v1522, %v1514
    %v2019 = vpack.c.b16 %v1523, %v1515
    %v2020 = vpack.c.b16 %v1524, %v1516
    %v2021 = vpack.c.b16 %v1525, %v1517
    %v2022 = vpack.c.b16 %v1526, %v1518
    %v2023 = vpack.c.b16 %v1527, %v1519
    %v2024 = vpack.c.b16 %v1528, %v1520
    %v2025 = vpack.c.b16 %v1537, %v1529
    %v2026 = vpack.c.b16 %v1538, %v1530
    %v2027 = vpack.c.b16 %v1539, %v1531
    %v2028 = vpack.c.b16 %v1540, %v1532
    %v2029 = vpack.c.b16 %v1541, %v1533
    %v2030 = vpack.c.b16 %v1542, %v1534
    %v2031 = vpack.c.b16 %v1543, %v1535
    %v2032 = vpack.c.b16 %v1544, %v1536
    %v2033 = vpack.c.b16 %v1553, %v1545
    %v2034 = vpack.c.b16 %v1554, %v1546
    %v2035 = vpack.c.b16 %v1555, %v1547
    %v2036 = vpack.c.b16 %v1556, %v1548
    %v2037 = vpack.c.b16 %v1557, %v1549
    %v2038 = vpack.c.b16 %v1558, %v1550
    %v2039 = vpack.c.b16 %v1559, %v1551
    %v2040 = vpack.c.b16 %v1560, %v1552
    %v2041 = vpack.c.b16 %v1569, %v1561
    %v2042 = vpack.c.b16 %v1570, %v1562
    %v2043 = vpack.c.b16 %v1571, %v1563
    %v2044 = vpack.c.b16 %v1572, %v1564
    %v2045 = vpack.c.b16 %v1573, %v1565
    %v2046 = vpack.c.b16 %v1574, %v1566
    %v2047 = vpack.c.b16 %v1575, %v1567
    %v2048 = vpack.c.b16 %v1576, %v1568
    %v2049 = vpack.c.b16 %v1585, %v1577
    %v2050 = vpack.c.b16 %v1586, %v1578
    %v2051 = vpack.c.b16 %v1587, %v1579
    %v2052 = vpack.c.b16 %v1588, %v1580
    %v2053 = vpack.c.b16 %v1589, %v1581
    %v2054 = vpack.c.b16 %v1590, %v1582
    %v2055 = vpack.c.b16 %v1591, %v1583
    %v2056 = vpack.c.b16 %v1592, %v1584
    %v2057 = vpack.c.b16 %v1601, %v1593
    %v2058 = vpack.c.b16 %v1602, %v1594
    %v2059 = vpack.c.b16 %v1603, %v1595
    %v2060 = vpack.c.b16 %v1604, %v1596
    %v2061 = vpack.c.b16 %v1605, %v1597
    %v2062 = vpack.c.b16 %v1606, %v1598
    %v2063 = vpack.c.b16 %v1607, %v1599
    %v2064 = vpack.c.b16 %v1608, %v1600
    %v2065 = vpack.c.b16 %v1617, %v1609
    %v2066 = vpack.c.b16 %v1618, %v1610
    %v2067 = vpack.c.b16 %v1619, %v1611
    %v2068 = vpack.c.b16 %v1620, %v1612
    %v2069 = vpack.c.b16 %v1621, %v1613
    %v2070 = vpack.c.b16 %v1622, %v1614
    %v2071 = vpack.c.b16 %v1623, %v1615
    %v2072 = vpack.c.b16 %v1624, %v1616
    %v2073 = vpack.c.b16 %v1633, %v1625
    %v2074 = vpack.c.b16 %v1634, %v1626
    %v2075 = vpack.c.b16 %v1635, %v1627
    %v2076 = vpack.c.b16 %v1636, %v1628
    %v2077 = vpack.c.b16 %v1637, %v1629
    %v2078 = vpack.c.b16 %v1638, %v1630
    %v2079 = vpack.c.b16 %v1639, %v1631
    %v2080 = vpack.c.b16 %v1640, %v1632
    %v2081 = vpack.c.b16 %v1649, %v1641
    %v2082 = vpack.c.b16 %v1650, %v1642
    %v2083 = vpack.c.b16 %v1651, %v1643
    %v2084 = vpack.c.b16 %v1652, %v1644
    %v2085 = vpack.c.b16 %v1653, %v1645
    %v2086 = vpack.c.b16 %v1654, %v1646
    %v2087 = vpack.c.b16 %v1655, %v1647
    %v2088 = vpack.c.b16 %v1656, %v1648
    %v2089 = vpack.c.b16 %v1665, %v1657
    %v2090 = vpack.c.b16 %v1666, %v1658
    %v2091 = vpack.c.b16 %v1667, %v1659
    %v2092 = vpack.c.b16 %v1668, %v1660
    %v2093 = vpack.c.b16 %v1669, %v1661
    %v2094 = vpack.c.b16 %v1670, %v1662
    %v2095 = vpack.c.b16 %v1671, %v1663
    %v2096 = vpack.c.b16 %v1672, %v1664
    %v2097 = vpack.c.b16 %v1681, %v1673
    %v2098 = vpack.c.b16 %v1682, %v1674
    %v2099 = vpack.c.b16 %v1683, %v1675
    %v2100 = vpack.c.b16 %v1684, %v1676
    %v2101 = vpack.c.b16 %v1685, %v1677
    %v2102 = vpack.c.b16 %v1686, %v1678
    %v2103 = vpack.c.b16 %v1687, %v1679
    %v2104 = vpack.c.b16 %v1688, %v1680
    %v2105 = vpack.c.b16 %v1697, %v1689
    %v2106 = vpack.c.b16 %v1698, %v1690
    %v2107 = vpack.c.b16 %v1699, %v1691
    %v2108 = vpack.c.b16 %v1700, %v1692
    %v2109 = vpack.c.b16 %v1701, %v1693
    %v2110 = vpack.c.b16 %v1702, %v1694
    %v2111 = vpack.c.b16 %v1703, %v1695
    %v2112 = vpack.c.b16 %v1704, %v1696
    %v2113 = vpack.c.b16 %v1713, %v1705
    %v2114 = vpack.c.b16 %v1714, %v1706
    %v2115 = vpack.c.b16 %v1715, %v1707
    %v2116 = vpack.c.b16 %v1716, %v1708
    %v2117 = vpack.c.b16 %v1717, %v1709
    %v2118 = vpack.c.b16 %v1718, %v1710
    %v2119 = vpack.c.b16 %v1719, %v1711
    %v2120 = vpack.c.b16 %v1720, %v1712
    %v2121 = vpack.c.b16 %v1729, %v1721
    %v2122 = vpack.c.b16 %v1730, %v1722
    %v2123 = vpack.c.b16 %v1731, %v1723
    %v2124 = vpack.c.b16 %v1732, %v1724
    %v2125 = vpack.c.b16 %v1733, %v1725
    %v2126 = vpack.c.b16 %v1734, %v1726
    %v2127 = vpack.c.b16 %v1735, %v1727
    %v2128 = vpack.c.b16 %v1736, %v1728
    %v2129 = vpack.c.b16 %v1745, %v1737
    %v2130 = vpack.c.b16 %v1746, %v1738
    %v2131 = vpack.c.b16 %v1747, %v1739
    %v2132 = vpack.c.b16 %v1748, %v1740
    %v2133 = vpack.c.b16 %v1749, %v1741
    %v2134 = vpack.c.b16 %v1750, %v1742
    %v2135 = vpack.c.b16 %v1751, %v1743
    %v2136 = vpack.c.b16 %v1752, %v1744
    %2521 = vmatprep.subr.bf16.mxu0 %v1810
    %2522 = vmatpush1.bf16.msra.mxu0 %v1809
    %2523 = vmatprep.subr.bf16.mxu0 %v1802
    %2524 = vmatpush1.bf16.msra.mxu0 %v1801
    %2525 = vmatprep.subr.bf16.mxu0 %v1794
    %2526 = vmatpush1.bf16.msra.mxu0 %v1793
    %2527 = vmatprep.subr.bf16.mxu0 %v1786
    %2528 = vmatpush1.bf16.msra.mxu0 %v1785
    %2529 = vmatprep.subr.bf16.mxu0 %v1778
    %2530 = vmatpush1.bf16.msra.mxu0 %v1777
    %2531 = vmatprep.subr.bf16.mxu0 %v1770
    %2532 = vmatpush1.bf16.msra.mxu0 %v1769
    %2533 = vmatprep.subr.bf16.mxu0 %v1762
    %2534 = vmatpush1.bf16.msra.mxu0 %v1761
    %2535 = vmatprep.subr.bf16.mxu0 %v1754
    %2536 = vmatpush1.bf16.msra.mxu0 %v1753
    %2537 = vmatprep.subr.bf16.mxu0 %v1874
    %2538 = vmatpush2.bf16.msra.mxu0 %v1873
    %2539 = vmatprep.subr.bf16.mxu0 %v1866
    %2540 = vmatpush2.bf16.msra.mxu0 %v1865
    %2541 = vmatprep.subr.bf16.mxu0 %v1858
    %2542 = vmatpush2.bf16.msra.mxu0 %v1857
    %2543 = vmatprep.subr.bf16.mxu0 %v1850
    %2544 = vmatpush2.bf16.msra.mxu0 %v1849
    %2545 = vmatprep.subr.bf16.mxu0 %v1842
    %2546 = vmatpush2.bf16.msra.mxu0 %v1841
    %2547 = vmatprep.subr.bf16.mxu0 %v1834
    %2548 = vmatpush2.bf16.msra.mxu0 %v1833
    %2549 = vmatprep.subr.bf16.mxu0 %v1826
    %2550 = vmatpush2.bf16.msra.mxu0 %v1825
    %2551 = vmatprep.subr.bf16.mxu0 %v1818
    %2552 = vmatpush2.bf16.msra.mxu0 %v1817
    %2553 = vmatprep.mubr.bf16.mxu0 %v170
    %2554 = vmatmul.mubr.bf16.gmra.mxu0 %v169
    %v2555 = vpop.f32.mrf.mxu0
    %v2556 = vadd.f32 %v564, %v2555
    %v2557 = vpop.f32.mrf.mxu0
    %v2558 = vadd.f32 %v568, %v2557
    %v2559 = vpop.f32.mrf.mxu0
    %v2560 = vpop.f32.mrf.mxu0
    %2561 = vdwg.mxu0
    %2562 = vmatprep.subr.bf16.mxu0 %v1938
    %2563 = vmatpush1.bf16.msra.mxu0 %v1937
    %2564 = vmatprep.subr.bf16.mxu0 %v1930
    %2565 = vmatpush1.bf16.msra.mxu0 %v1929
    %2566 = vmatprep.subr.bf16.mxu0 %v1922
    %2567 = vmatpush1.bf16.msra.mxu0 %v1921
    %2568 = vmatprep.subr.bf16.mxu0 %v1914
    %2569 = vmatpush1.bf16.msra.mxu0 %v1913
    %2570 = vmatprep.subr.bf16.mxu0 %v1906
    %2571 = vmatpush1.bf16.msra.mxu0 %v1905
    %2572 = vmatprep.subr.bf16.mxu0 %v1898
    %2573 = vmatpush1.bf16.msra.mxu0 %v1897
    %2574 = vmatprep.subr.bf16.mxu0 %v1890
    %2575 = vmatpush1.bf16.msra.mxu0 %v1889
    %2576 = vmatprep.subr.bf16.mxu0 %v1882
    %2577 = vmatpush1.bf16.msra.mxu0 %v1881
    %2578 = vmatprep.subr.bf16.mxu0 %v2002
    %2579 = vmatpush2.bf16.msra.mxu0 %v2001
    %2580 = vmatprep.subr.bf16.mxu0 %v1994
    %2581 = vmatpush2.bf16.msra.mxu0 %v1993
    %2582 = vmatprep.subr.bf16.mxu0 %v1986
    %2583 = vmatpush2.bf16.msra.mxu0 %v1985
    %2584 = vmatprep.subr.bf16.mxu0 %v1978
    %2585 = vmatpush2.bf16.msra.mxu0 %v1977
    %2586 = vmatprep.subr.bf16.mxu0 %v1970
    %2587 = vmatpush2.bf16.msra.mxu0 %v1969
    %2588 = vmatprep.subr.bf16.mxu0 %v1962
    %2589 = vmatpush2.bf16.msra.mxu0 %v1961
    %2590 = vmatprep.subr.bf16.mxu0 %v1954
    %2591 = vmatpush2.bf16.msra.mxu0 %v1953
    %2592 = vmatprep.subr.bf16.mxu0 %v1946
    %2593 = vmatpush2.bf16.msra.mxu0 %v1945
    %2594 = vmatprep.mubr.bf16.mxu0 %v172
    %2595 = vmatmul.mubr.bf16.gmra.mxu0 %v171
    %v2596 = vpop.f32.mrf.mxu0
    %v2597 = vadd.f32 %v2556, %v2596
    %v2598 = vpop.f32.mrf.mxu0
    %v2599 = vadd.f32 %v2558, %v2598
    %v2600 = vpop.f32.mrf.mxu0
    %v2601 = vpop.f32.mrf.mxu0
    %2602 = vdwg.mxu0
    %2603 = vmatprep.subr.bf16.mxu0 %v2066
    %2604 = vmatpush1.bf16.msra.mxu0 %v2065
    %2605 = vmatprep.subr.bf16.mxu0 %v2058
    %2606 = vmatpush1.bf16.msra.mxu0 %v2057
    %2607 = vmatprep.subr.bf16.mxu0 %v2050
    %2608 = vmatpush1.bf16.msra.mxu0 %v2049
    %2609 = vmatprep.subr.bf16.mxu0 %v2042
    %2610 = vmatpush1.bf16.msra.mxu0 %v2041
    %2611 = vmatprep.subr.bf16.mxu0 %v2034
    %2612 = vmatpush1.bf16.msra.mxu0 %v2033
    %2613 = vmatprep.subr.bf16.mxu0 %v2026
    %2614 = vmatpush1.bf16.msra.mxu0 %v2025
    %2615 = vmatprep.subr.bf16.mxu0 %v2018
    %2616 = vmatpush1.bf16.msra.mxu0 %v2017
    %2617 = vmatprep.subr.bf16.mxu0 %v2010
    %2618 = vmatpush1.bf16.msra.mxu0 %v2009
    %2619 = vmatprep.subr.bf16.mxu0 %v2130
    %2620 = vmatpush2.bf16.msra.mxu0 %v2129
    %2621 = vmatprep.subr.bf16.mxu0 %v2122
    %2622 = vmatpush2.bf16.msra.mxu0 %v2121
    %2623 = vmatprep.subr.bf16.mxu0 %v2114
    %2624 = vmatpush2.bf16.msra.mxu0 %v2113
    %2625 = vmatprep.subr.bf16.mxu0 %v2106
    %2626 = vmatpush2.bf16.msra.mxu0 %v2105
    %2627 = vmatprep.subr.bf16.mxu0 %v2098
    %2628 = vmatpush2.bf16.msra.mxu0 %v2097
    %2629 = vmatprep.subr.bf16.mxu0 %v2090
    %2630 = vmatpush2.bf16.msra.mxu0 %v2089
    %2631 = vmatprep.subr.bf16.mxu0 %v2082
    %2632 = vmatpush2.bf16.msra.mxu0 %v2081
    %2633 = vmatprep.subr.bf16.mxu0 %v2074
    %2634 = vmatpush2.bf16.msra.mxu0 %v2073
    %2635 = vmatprep.mubr.bf16.mxu0 %v174
    %2636 = vmatmul.mubr.bf16.gmra.mxu0 %v173
    %v2637 = vpop.f32.mrf.mxu0
    %v2638 = vadd.f32 %v2597, %v2637
    %v2639 = vpop.f32.mrf.mxu0
    %v2640 = vadd.f32 %v2599, %v2639
    %v2641 = vpop.f32.mrf.mxu0
    %v2642 = vpop.f32.mrf.mxu0
    %2643 = vdwg.mxu0
    %2644 = vmatprep.subr.bf16.mxu0 %v1812
    %2645 = vmatpush1.bf16.msra.mxu0 %v1811
    %2646 = vmatprep.subr.bf16.mxu0 %v1804
    %2647 = vmatpush1.bf16.msra.mxu0 %v1803
    %2648 = vmatprep.subr.bf16.mxu0 %v1796
    %2649 = vmatpush1.bf16.msra.mxu0 %v1795
    %2650 = vmatprep.subr.bf16.mxu0 %v1788
    %2651 = vmatpush1.bf16.msra.mxu0 %v1787
    %2652 = vmatprep.subr.bf16.mxu0 %v1780
    %2653 = vmatpush1.bf16.msra.mxu0 %v1779
    %2654 = vmatprep.subr.bf16.mxu0 %v1772
    %2655 = vmatpush1.bf16.msra.mxu0 %v1771
    %2656 = vmatprep.subr.bf16.mxu0 %v1764
    %2657 = vmatpush1.bf16.msra.mxu0 %v1763
    %2658 = vmatprep.subr.bf16.mxu0 %v1756
    %2659 = vmatpush1.bf16.msra.mxu0 %v1755
    %2660 = vmatprep.subr.bf16.mxu0 %v1876
    %2661 = vmatpush2.bf16.msra.mxu0 %v1875
    %2662 = vmatprep.subr.bf16.mxu0 %v1868
    %2663 = vmatpush2.bf16.msra.mxu0 %v1867
    %2664 = vmatprep.subr.bf16.mxu0 %v1860
    %2665 = vmatpush2.bf16.msra.mxu0 %v1859
    %2666 = vmatprep.subr.bf16.mxu0 %v1852
    %2667 = vmatpush2.bf16.msra.mxu0 %v1851
    %2668 = vmatprep.subr.bf16.mxu0 %v1844
    %2669 = vmatpush2.bf16.msra.mxu0 %v1843
    %2670 = vmatprep.subr.bf16.mxu0 %v1836
    %2671 = vmatpush2.bf16.msra.mxu0 %v1835
    %2672 = vmatprep.subr.bf16.mxu0 %v1828
    %2673 = vmatpush2.bf16.msra.mxu0 %v1827
    %2674 = vmatprep.subr.bf16.mxu0 %v1820
    %2675 = vmatpush2.bf16.msra.mxu0 %v1819
    %2676 = vmatprep.mubr.bf16.mxu0 %v170
    %2677 = vmatmul.mubr.bf16.gmra.mxu0 %v169
    %v2678 = vpop.f32.mrf.mxu0
    %v2679 = vadd.f32 %v572, %v2678
    %v2680 = vpop.f32.mrf.mxu0
    %v2681 = vadd.f32 %v576, %v2680
    %v2682 = vpop.f32.mrf.mxu0
    %v2683 = vpop.f32.mrf.mxu0
    %2684 = vdwg.mxu0
    %2685 = vmatprep.subr.bf16.mxu0 %v1940
    %2686 = vmatpush1.bf16.msra.mxu0 %v1939
    %2687 = vmatprep.subr.bf16.mxu0 %v1932
    %2688 = vmatpush1.bf16.msra.mxu0 %v1931
    %2689 = vmatprep.subr.bf16.mxu0 %v1924
    %2690 = vmatpush1.bf16.msra.mxu0 %v1923
    %2691 = vmatprep.subr.bf16.mxu0 %v1916
    %2692 = vmatpush1.bf16.msra.mxu0 %v1915
    %2693 = vmatprep.subr.bf16.mxu0 %v1908
    %2694 = vmatpush1.bf16.msra.mxu0 %v1907
    %2695 = vmatprep.subr.bf16.mxu0 %v1900
    %2696 = vmatpush1.bf16.msra.mxu0 %v1899
    %2697 = vmatprep.subr.bf16.mxu0 %v1892
    %2698 = vmatpush1.bf16.msra.mxu0 %v1891
    %2699 = vmatprep.subr.bf16.mxu0 %v1884
    %2700 = vmatpush1.bf16.msra.mxu0 %v1883
    %2701 = vmatprep.subr.bf16.mxu0 %v2004
    %2702 = vmatpush2.bf16.msra.mxu0 %v2003
    %2703 = vmatprep.subr.bf16.mxu0 %v1996
    %2704 = vmatpush2.bf16.msra.mxu0 %v1995
    %2705 = vmatprep.subr.bf16.mxu0 %v1988
    %2706 = vmatpush2.bf16.msra.mxu0 %v1987
    %2707 = vmatprep.subr.bf16.mxu0 %v1980
    %2708 = vmatpush2.bf16.msra.mxu0 %v1979
    %2709 = vmatprep.subr.bf16.mxu0 %v1972
    %2710 = vmatpush2.bf16.msra.mxu0 %v1971
    %2711 = vmatprep.subr.bf16.mxu0 %v1964
    %2712 = vmatpush2.bf16.msra.mxu0 %v1963
    %2713 = vmatprep.subr.bf16.mxu0 %v1956
    %2714 = vmatpush2.bf16.msra.mxu0 %v1955
    %2715 = vmatprep.subr.bf16.mxu0 %v1948
    %2716 = vmatpush2.bf16.msra.mxu0 %v1947
    %2717 = vmatprep.mubr.bf16.mxu0 %v172
    %2718 = vmatmul.mubr.bf16.gmra.mxu0 %v171
    %v2719 = vpop.f32.mrf.mxu0
    %v2720 = vadd.f32 %v2679, %v2719
    %v2721 = vpop.f32.mrf.mxu0
    %v2722 = vadd.f32 %v2681, %v2721
    %v2723 = vpop.f32.mrf.mxu0
    %v2724 = vpop.f32.mrf.mxu0
    %2725 = vdwg.mxu0
    %2726 = vmatprep.subr.bf16.mxu0 %v2068
    %2727 = vmatpush1.bf16.msra.mxu0 %v2067
    %2728 = vmatprep.subr.bf16.mxu0 %v2060
    %2729 = vmatpush1.bf16.msra.mxu0 %v2059
    %2730 = vmatprep.subr.bf16.mxu0 %v2052
    %2731 = vmatpush1.bf16.msra.mxu0 %v2051
    %2732 = vmatprep.subr.bf16.mxu0 %v2044
    %2733 = vmatpush1.bf16.msra.mxu0 %v2043
    %2734 = vmatprep.subr.bf16.mxu0 %v2036
    %2735 = vmatpush1.bf16.msra.mxu0 %v2035
    %2736 = vmatprep.subr.bf16.mxu0 %v2028
    %2737 = vmatpush1.bf16.msra.mxu0 %v2027
    %2738 = vmatprep.subr.bf16.mxu0 %v2020
    %2739 = vmatpush1.bf16.msra.mxu0 %v2019
    %2740 = vmatprep.subr.bf16.mxu0 %v2012
    %2741 = vmatpush1.bf16.msra.mxu0 %v2011
    %2742 = vmatprep.subr.bf16.mxu0 %v2132
    %2743 = vmatpush2.bf16.msra.mxu0 %v2131
    %2744 = vmatprep.subr.bf16.mxu0 %v2124
    %2745 = vmatpush2.bf16.msra.mxu0 %v2123
    %2746 = vmatprep.subr.bf16.mxu0 %v2116
    %2747 = vmatpush2.bf16.msra.mxu0 %v2115
    %2748 = vmatprep.subr.bf16.mxu0 %v2108
    %2749 = vmatpush2.bf16.msra.mxu0 %v2107
    %2750 = vmatprep.subr.bf16.mxu0 %v2100
    %2751 = vmatpush2.bf16.msra.mxu0 %v2099
    %2752 = vmatprep.subr.bf16.mxu0 %v2092
    %2753 = vmatpush2.bf16.msra.mxu0 %v2091
    %2754 = vmatprep.subr.bf16.mxu0 %v2084
    %2755 = vmatpush2.bf16.msra.mxu0 %v2083
    %2756 = vmatprep.subr.bf16.mxu0 %v2076
    %2757 = vmatpush2.bf16.msra.mxu0 %v2075
    %2758 = vmatprep.mubr.bf16.mxu0 %v174
    %2759 = vmatmul.mubr.bf16.gmra.mxu0 %v173
    %v2760 = vpop.f32.mrf.mxu0
    %v2761 = vadd.f32 %v2720, %v2760
    %v2762 = vpop.f32.mrf.mxu0
    %v2763 = vadd.f32 %v2722, %v2762
    %v2764 = vpop.f32.mrf.mxu0
    %v2765 = vpop.f32.mrf.mxu0
    %2766 = vdwg.mxu0
    %2767 = vmatprep.subr.bf16.mxu0 %v1814
    %2768 = vmatpush1.bf16.msra.mxu0 %v1813
    %2769 = vmatprep.subr.bf16.mxu0 %v1806
    %2770 = vmatpush1.bf16.msra.mxu0 %v1805
    %2771 = vmatprep.subr.bf16.mxu0 %v1798
    %2772 = vmatpush1.bf16.msra.mxu0 %v1797
    %2773 = vmatprep.subr.bf16.mxu0 %v1790
    %2774 = vmatpush1.bf16.msra.mxu0 %v1789
    %2775 = vmatprep.subr.bf16.mxu0 %v1782
    %2776 = vmatpush1.bf16.msra.mxu0 %v1781
    %2777 = vmatprep.subr.bf16.mxu0 %v1774
    %2778 = vmatpush1.bf16.msra.mxu0 %v1773
    %2779 = vmatprep.subr.bf16.mxu0 %v1766
    %2780 = vmatpush1.bf16.msra.mxu0 %v1765
    %2781 = vmatprep.subr.bf16.mxu0 %v1758
    %2782 = vmatpush1.bf16.msra.mxu0 %v1757
    %2783 = vmatprep.subr.bf16.mxu0 %v1878
    %2784 = vmatpush2.bf16.msra.mxu0 %v1877
    %2785 = vmatprep.subr.bf16.mxu0 %v1870
    %2786 = vmatpush2.bf16.msra.mxu0 %v1869
    %2787 = vmatprep.subr.bf16.mxu0 %v1862
    %2788 = vmatpush2.bf16.msra.mxu0 %v1861
    %2789 = vmatprep.subr.bf16.mxu0 %v1854
    %2790 = vmatpush2.bf16.msra.mxu0 %v1853
    %2791 = vmatprep.subr.bf16.mxu0 %v1846
    %2792 = vmatpush2.bf16.msra.mxu0 %v1845
    %2793 = vmatprep.subr.bf16.mxu0 %v1838
    %2794 = vmatpush2.bf16.msra.mxu0 %v1837
    %2795 = vmatprep.subr.bf16.mxu0 %v1830
    %2796 = vmatpush2.bf16.msra.mxu0 %v1829
    %2797 = vmatprep.subr.bf16.mxu0 %v1822
    %2798 = vmatpush2.bf16.msra.mxu0 %v1821
    %2799 = vmatprep.mubr.bf16.mxu0 %v170
    %2800 = vmatmul.mubr.bf16.gmra.mxu0 %v169
    %v2801 = vpop.f32.mrf.mxu0
    %v2802 = vadd.f32 %v580, %v2801
    %v2803 = vpop.f32.mrf.mxu0
    %v2804 = vadd.f32 %v584, %v2803
    %v2805 = vpop.f32.mrf.mxu0
    %v2806 = vpop.f32.mrf.mxu0
    %2807 = vdwg.mxu0
    %2808 = vmatprep.subr.bf16.mxu0 %v1942
    %2809 = vmatpush1.bf16.msra.mxu0 %v1941
    %2810 = vmatprep.subr.bf16.mxu0 %v1934
    %2811 = vmatpush1.bf16.msra.mxu0 %v1933
    %2812 = vmatprep.subr.bf16.mxu0 %v1926
    %2813 = vmatpush1.bf16.msra.mxu0 %v1925
    %2814 = vmatprep.subr.bf16.mxu0 %v1918
    %2815 = vmatpush1.bf16.msra.mxu0 %v1917
    %2816 = vmatprep.subr.bf16.mxu0 %v1910
    %2817 = vmatpush1.bf16.msra.mxu0 %v1909
    %2818 = vmatprep.subr.bf16.mxu0 %v1902
    %2819 = vmatpush1.bf16.msra.mxu0 %v1901
    %2820 = vmatprep.subr.bf16.mxu0 %v1894
    %2821 = vmatpush1.bf16.msra.mxu0 %v1893
    %2822 = vmatprep.subr.bf16.mxu0 %v1886
    %2823 = vmatpush1.bf16.msra.mxu0 %v1885
    %2824 = vmatprep.subr.bf16.mxu0 %v2006
    %2825 = vmatpush2.bf16.msra.mxu0 %v2005
    %2826 = vmatprep.subr.bf16.mxu0 %v1998
    %2827 = vmatpush2.bf16.msra.mxu0 %v1997
    %2828 = vmatprep.subr.bf16.mxu0 %v1990
    %2829 = vmatpush2.bf16.msra.mxu0 %v1989
    %2830 = vmatprep.subr.bf16.mxu0 %v1982
    %2831 = vmatpush2.bf16.msra.mxu0 %v1981
    %2832 = vmatprep.subr.bf16.mxu0 %v1974
    %2833 = vmatpush2.bf16.msra.mxu0 %v1973
    %2834 = vmatprep.subr.bf16.mxu0 %v1966
    %2835 = vmatpush2.bf16.msra.mxu0 %v1965
    %2836 = vmatprep.subr.bf16.mxu0 %v1958
    %2837 = vmatpush2.bf16.msra.mxu0 %v1957
    %2838 = vmatprep.subr.bf16.mxu0 %v1950
    %2839 = vmatpush2.bf16.msra.mxu0 %v1949
    %2840 = vmatprep.mubr.bf16.mxu0 %v172
    %2841 = vmatmul.mubr.bf16.gmra.mxu0 %v171
    %v2842 = vpop.f32.mrf.mxu0
    %v2843 = vadd.f32 %v2802, %v2842
    %v2844 = vpop.f32.mrf.mxu0
    %v2845 = vadd.f32 %v2804, %v2844
    %v2846 = vpop.f32.mrf.mxu0
    %v2847 = vpop.f32.mrf.mxu0
    %2848 = vdwg.mxu0
    %2849 = vmatprep.subr.bf16.mxu0 %v2070
    %2850 = vmatpush1.bf16.msra.mxu0 %v2069
    %2851 = vmatprep.subr.bf16.mxu0 %v2062
    %2852 = vmatpush1.bf16.msra.mxu0 %v2061
    %2853 = vmatprep.subr.bf16.mxu0 %v2054
    %2854 = vmatpush1.bf16.msra.mxu0 %v2053
    %2855 = vmatprep.subr.bf16.mxu0 %v2046
    %2856 = vmatpush1.bf16.msra.mxu0 %v2045
    %2857 = vmatprep.subr.bf16.mxu0 %v2038
    %2858 = vmatpush1.bf16.msra.mxu0 %v2037
    %2859 = vmatprep.subr.bf16.mxu0 %v2030
    %2860 = vmatpush1.bf16.msra.mxu0 %v2029
    %2861 = vmatprep.subr.bf16.mxu0 %v2022
    %2862 = vmatpush1.bf16.msra.mxu0 %v2021
    %2863 = vmatprep.subr.bf16.mxu0 %v2014
    %2864 = vmatpush1.bf16.msra.mxu0 %v2013
    %2865 = vmatprep.subr.bf16.mxu0 %v2134
    %2866 = vmatpush2.bf16.msra.mxu0 %v2133
    %2867 = vmatprep.subr.bf16.mxu0 %v2126
    %2868 = vmatpush2.bf16.msra.mxu0 %v2125
    %2869 = vmatprep.subr.bf16.mxu0 %v2118
    %2870 = vmatpush2.bf16.msra.mxu0 %v2117
    %2871 = vmatprep.subr.bf16.mxu0 %v2110
    %2872 = vmatpush2.bf16.msra.mxu0 %v2109
    %2873 = vmatprep.subr.bf16.mxu0 %v2102
    %2874 = vmatpush2.bf16.msra.mxu0 %v2101
    %2875 = vmatprep.subr.bf16.mxu0 %v2094
    %2876 = vmatpush2.bf16.msra.mxu0 %v2093
    %2877 = vmatprep.subr.bf16.mxu0 %v2086
    %2878 = vmatpush2.bf16.msra.mxu0 %v2085
    %2879 = vmatprep.subr.bf16.mxu0 %v2078
    %2880 = vmatpush2.bf16.msra.mxu0 %v2077
    %2881 = vmatprep.mubr.bf16.mxu0 %v174
    %2882 = vmatmul.mubr.bf16.gmra.mxu0 %v173
    %v2883 = vpop.f32.mrf.mxu0
    %v2884 = vadd.f32 %v2843, %v2883
    %v2885 = vpop.f32.mrf.mxu0
    %v2886 = vadd.f32 %v2845, %v2885
    %v2887 = vpop.f32.mrf.mxu0
    %v2888 = vpop.f32.mrf.mxu0
    %2889 = vdwg.mxu0
    %2890 = vmatprep.subr.bf16.mxu0 %v1816
    %2891 = vmatpush1.bf16.msra.mxu0 %v1815
    %2892 = vmatprep.subr.bf16.mxu0 %v1808
    %2893 = vmatpush1.bf16.msra.mxu0 %v1807
    %2894 = vmatprep.subr.bf16.mxu0 %v1800
    %2895 = vmatpush1.bf16.msra.mxu0 %v1799
    %2896 = vmatprep.subr.bf16.mxu0 %v1792
    %2897 = vmatpush1.bf16.msra.mxu0 %v1791
    %2898 = vmatprep.subr.bf16.mxu0 %v1784
    %2899 = vmatpush1.bf16.msra.mxu0 %v1783
    %2900 = vmatprep.subr.bf16.mxu0 %v1776
    %2901 = vmatpush1.bf16.msra.mxu0 %v1775
    %2902 = vmatprep.subr.bf16.mxu0 %v1768
    %2903 = vmatpush1.bf16.msra.mxu0 %v1767
    %2904 = vmatprep.subr.bf16.mxu0 %v1760
    %2905 = vmatpush1.bf16.msra.mxu0 %v1759
    %2906 = vmatprep.subr.bf16.mxu0 %v1880
    %2907 = vmatpush2.bf16.msra.mxu0 %v1879
    %2908 = vmatprep.subr.bf16.mxu0 %v1872
    %2909 = vmatpush2.bf16.msra.mxu0 %v1871
    %2910 = vmatprep.subr.bf16.mxu0 %v1864
    %2911 = vmatpush2.bf16.msra.mxu0 %v1863
    %2912 = vmatprep.subr.bf16.mxu0 %v1856
    %2913 = vmatpush2.bf16.msra.mxu0 %v1855
    %2914 = vmatprep.subr.bf16.mxu0 %v1848
    %2915 = vmatpush2.bf16.msra.mxu0 %v1847
    %2916 = vmatprep.subr.bf16.mxu0 %v1840
    %2917 = vmatpush2.bf16.msra.mxu0 %v1839
    %2918 = vmatprep.subr.bf16.mxu0 %v1832
    %2919 = vmatpush2.bf16.msra.mxu0 %v1831
    %2920 = vmatprep.subr.bf16.mxu0 %v1824
    %2921 = vmatpush2.bf16.msra.mxu0 %v1823
    %2922 = vmatprep.mubr.bf16.mxu0 %v170
    %2923 = vmatmul.mubr.bf16.gmra.mxu0 %v169
    %v2924 = vpop.f32.mrf.mxu0
    %v2925 = vadd.f32 %v588, %v2924
    %v2926 = vpop.f32.mrf.mxu0
    %v2927 = vadd.f32 %v592, %v2926
    %v2928 = vpop.f32.mrf.mxu0
    %v2929 = vpop.f32.mrf.mxu0
    %2930 = vdwg.mxu0
    %2931 = vmatprep.subr.bf16.mxu0 %v1944
    %2932 = vmatpush1.bf16.msra.mxu0 %v1943
    %2933 = vmatprep.subr.bf16.mxu0 %v1936
    %2934 = vmatpush1.bf16.msra.mxu0 %v1935
    %2935 = vmatprep.subr.bf16.mxu0 %v1928
    %2936 = vmatpush1.bf16.msra.mxu0 %v1927
    %2937 = vmatprep.subr.bf16.mxu0 %v1920
    %2938 = vmatpush1.bf16.msra.mxu0 %v1919
    %2939 = vmatprep.subr.bf16.mxu0 %v1912
    %2940 = vmatpush1.bf16.msra.mxu0 %v1911
    %2941 = vmatprep.subr.bf16.mxu0 %v1904
    %2942 = vmatpush1.bf16.msra.mxu0 %v1903
    %2943 = vmatprep.subr.bf16.mxu0 %v1896
    %2944 = vmatpush1.bf16.msra.mxu0 %v1895
    %2945 = vmatprep.subr.bf16.mxu0 %v1888
    %2946 = vmatpush1.bf16.msra.mxu0 %v1887
    %2947 = vmatprep.subr.bf16.mxu0 %v2008
    %2948 = vmatpush2.bf16.msra.mxu0 %v2007
    %2949 = vmatprep.subr.bf16.mxu0 %v2000
    %2950 = vmatpush2.bf16.msra.mxu0 %v1999
    %2951 = vmatprep.subr.bf16.mxu0 %v1992
    %2952 = vmatpush2.bf16.msra.mxu0 %v1991
    %2953 = vmatprep.subr.bf16.mxu0 %v1984
    %2954 = vmatpush2.bf16.msra.mxu0 %v1983
    %2955 = vmatprep.subr.bf16.mxu0 %v1976
    %2956 = vmatpush2.bf16.msra.mxu0 %v1975
    %2957 = vmatprep.subr.bf16.mxu0 %v1968
    %2958 = vmatpush2.bf16.msra.mxu0 %v1967
    %2959 = vmatprep.subr.bf16.mxu0 %v1960
    %2960 = vmatpush2.bf16.msra.mxu0 %v1959
    %2961 = vmatprep.subr.bf16.mxu0 %v1952
    %2962 = vmatpush2.bf16.msra.mxu0 %v1951
    %2963 = vmatprep.mubr.bf16.mxu0 %v172
    %2964 = vmatmul.mubr.bf16.gmra.mxu0 %v171
    %v2965 = vpop.f32.mrf.mxu0
    %v2966 = vadd.f32 %v2925, %v2965
    %v2967 = vpop.f32.mrf.mxu0
    %v2968 = vadd.f32 %v2927, %v2967
    %v2969 = vpop.f32.mrf.mxu0
    %v2970 = vpop.f32.mrf.mxu0
    %2971 = vdwg.mxu0
    %2972 = vmatprep.subr.bf16.mxu0 %v2072
    %2973 = vmatpush1.bf16.msra.mxu0 %v2071
    %2974 = vmatprep.subr.bf16.mxu0 %v2064
    %2975 = vmatpush1.bf16.msra.mxu0 %v2063
    %2976 = vmatprep.subr.bf16.mxu0 %v2056
    %2977 = vmatpush1.bf16.msra.mxu0 %v2055
    %2978 = vmatprep.subr.bf16.mxu0 %v2048
    %2979 = vmatpush1.bf16.msra.mxu0 %v2047
    %2980 = vmatprep.subr.bf16.mxu0 %v2040
    %2981 = vmatpush1.bf16.msra.mxu0 %v2039
    %2982 = vmatprep.subr.bf16.mxu0 %v2032
    %2983 = vmatpush1.bf16.msra.mxu0 %v2031
    %2984 = vmatprep.subr.bf16.mxu0 %v2024
    %2985 = vmatpush1.bf16.msra.mxu0 %v2023
    %2986 = vmatprep.subr.bf16.mxu0 %v2016
    %2987 = vmatpush1.bf16.msra.mxu0 %v2015
    %2988 = vmatprep.subr.bf16.mxu0 %v2136
    %2989 = vmatpush2.bf16.msra.mxu0 %v2135
    %2990 = vmatprep.subr.bf16.mxu0 %v2128
    %2991 = vmatpush2.bf16.msra.mxu0 %v2127
    %2992 = vmatprep.subr.bf16.mxu0 %v2120
    %2993 = vmatpush2.bf16.msra.mxu0 %v2119
    %2994 = vmatprep.subr.bf16.mxu0 %v2112
    %2995 = vmatpush2.bf16.msra.mxu0 %v2111
    %2996 = vmatprep.subr.bf16.mxu0 %v2104
    %2997 = vmatpush2.bf16.msra.mxu0 %v2103
    %2998 = vmatprep.subr.bf16.mxu0 %v2096
    %2999 = vmatpush2.bf16.msra.mxu0 %v2095
    %3000 = vmatprep.subr.bf16.mxu0 %v2088
    %3001 = vmatpush2.bf16.msra.mxu0 %v2087
    %3002 = vmatprep.subr.bf16.mxu0 %v2080
    %3003 = vmatpush2.bf16.msra.mxu0 %v2079
    %3004 = vmatprep.mubr.bf16.mxu0 %v174
    %3005 = vmatmul.mubr.bf16.gmra.mxu0 %v173
    %v3006 = vpop.f32.mrf.mxu0
    %v3007 = vadd.f32 %v2966, %v3006
    %v3008 = vpop.f32.mrf.mxu0
    %v3009 = vadd.f32 %v2968, %v3008
    %v3010 = vpop.f32.mrf.mxu0
    %v3011 = vpop.f32.mrf.mxu0
    %3012 = vdwg.mxu0
    %v3013 = vld [vmem:[%s3] sm:$0xff]
    %v3014 = vld [vmem:[%s3 + $0x8] sm:$0xff]
    %v3015 = vld [vmem:[%s3 + $0x10] sm:$0xff]
    %v3016 = vld [vmem:[%s3 + $0x18] sm:$0xff]
    %v3017 = vld [vmem:[%s3 + $0x20] sm:$0xff]
    %v3018 = vld [vmem:[%s3 + $0x28] sm:$0xff]
    %v3019 = vld [vmem:[%s3 + $0x30] sm:$0xff]
    %v3020 = vld [vmem:[%s3 + $0x38] sm:$0xff]
    %v3021 = vld [vmem:[%s3 + $0x40] sm:$0xff]
    %v3022 = vld [vmem:[%s3 + $0x48] sm:$0xff]
    %v3023 = vld [vmem:[%s3 + $0x50] sm:$0xff]
    %v3024 = vld [vmem:[%s3 + $0x58] sm:$0xff]
    %v3025 = vld [vmem:[%s3 + $0x60] sm:$0xff]
    %v3026 = vld [vmem:[%s3 + $0x68] sm:$0xff]
    %v3027 = vld [vmem:[%s3 + $0x70] sm:$0xff]
    %v3028 = vld [vmem:[%s3 + $0x78] sm:$0xff]
    %v3029 = vld [vmem:[%s3 + $0x80] sm:$0xff]
    %v3030 = vld [vmem:[%s3 + $0x88] sm:$0xff]
    %v3031 = vld [vmem:[%s3 + $0x90] sm:$0xff]
    %v3032 = vld [vmem:[%s3 + $0x98] sm:$0xff]
    %v3033 = vld [vmem:[%s3 + $0xa0] sm:$0xff]
    %v3034 = vld [vmem:[%s3 + $0xa8] sm:$0xff]
    %v3035 = vld [vmem:[%s3 + $0xb0] sm:$0xff]
    %v3036 = vld [vmem:[%s3 + $0xb8] sm:$0xff]
    %v3037 = vld [vmem:[%s3 + $0xc0] sm:$0xff]
    %v3038 = vld [vmem:[%s3 + $0xc8] sm:$0xff]
    %v3039 = vld [vmem:[%s3 + $0xd0] sm:$0xff]
    %v3040 = vld [vmem:[%s3 + $0xd8] sm:$0xff]
    %v3041 = vld [vmem:[%s3 + $0xe0] sm:$0xff]
    %v3042 = vld [vmem:[%s3 + $0xe8] sm:$0xff]
    %v3043 = vld [vmem:[%s3 + $0xf0] sm:$0xff]
    %v3044 = vld [vmem:[%s3 + $0xf8] sm:$0xff]
    %v3045 = vld [vmem:[%s3 + $0x100] sm:$0xff]
    %v3046 = vld [vmem:[%s3 + $0x108] sm:$0xff]
    %v3047 = vld [vmem:[%s3 + $0x110] sm:$0xff]
    %v3048 = vld [vmem:[%s3 + $0x118] sm:$0xff]
    %v3049 = vld [vmem:[%s3 + $0x120] sm:$0xff]
    %v3050 = vld [vmem:[%s3 + $0x128] sm:$0xff]
    %v3051 = vld [vmem:[%s3 + $0x130] sm:$0xff]
    %v3052 = vld [vmem:[%s3 + $0x138] sm:$0xff]
    %v3053 = vld [vmem:[%s3 + $0x140] sm:$0xff]
    %v3054 = vld [vmem:[%s3 + $0x148] sm:$0xff]
    %v3055 = vld [vmem:[%s3 + $0x150] sm:$0xff]
    %v3056 = vld [vmem:[%s3 + $0x158] sm:$0xff]
    %v3057 = vld [vmem:[%s3 + $0x160] sm:$0xff]
    %v3058 = vld [vmem:[%s3 + $0x168] sm:$0xff]
    %v3059 = vld [vmem:[%s3 + $0x170] sm:$0xff]
    %v3060 = vld [vmem:[%s3 + $0x178] sm:$0xff]
    %v3061 = vld [vmem:[%s3 + $0x180] sm:$0xff]
    %v3062 = vld [vmem:[%s3 + $0x188] sm:$0xff]
    %v3063 = vld [vmem:[%s3 + $0x190] sm:$0xff]
    %v3064 = vld [vmem:[%s3 + $0x198] sm:$0xff]
    %v3065 = vld [vmem:[%s3 + $0x1a0] sm:$0xff]
    %v3066 = vld [vmem:[%s3 + $0x1a8] sm:$0xff]
    %v3067 = vld [vmem:[%s3 + $0x1b0] sm:$0xff]
    %v3068 = vld [vmem:[%s3 + $0x1b8] sm:$0xff]
    %v3069 = vld [vmem:[%s3 + $0x1c0] sm:$0xff]
    %v3070 = vld [vmem:[%s3 + $0x1c8] sm:$0xff]
    %v3071 = vld [vmem:[%s3 + $0x1d0] sm:$0xff]
    %v3072 = vld [vmem:[%s3 + $0x1d8] sm:$0xff]
    %v3073 = vld [vmem:[%s3 + $0x1e0] sm:$0xff]
    %v3074 = vld [vmem:[%s3 + $0x1e8] sm:$0xff]
    %v3075 = vld [vmem:[%s3 + $0x1f0] sm:$0xff]
    %v3076 = vld [vmem:[%s3 + $0x1f8] sm:$0xff]
    %v3077 = vld [vmem:[%s3 + $0x200] sm:$0xff]
    %v3078 = vld [vmem:[%s3 + $0x208] sm:$0xff]
    %v3079 = vld [vmem:[%s3 + $0x210] sm:$0xff]
    %v3080 = vld [vmem:[%s3 + $0x218] sm:$0xff]
    %v3081 = vld [vmem:[%s3 + $0x220] sm:$0xff]
    %v3082 = vld [vmem:[%s3 + $0x228] sm:$0xff]
    %v3083 = vld [vmem:[%s3 + $0x230] sm:$0xff]
    %v3084 = vld [vmem:[%s3 + $0x238] sm:$0xff]
    %v3085 = vld [vmem:[%s3 + $0x240] sm:$0xff]
    %v3086 = vld [vmem:[%s3 + $0x248] sm:$0xff]
    %v3087 = vld [vmem:[%s3 + $0x250] sm:$0xff]
    %v3088 = vld [vmem:[%s3 + $0x258] sm:$0xff]
    %v3089 = vld [vmem:[%s3 + $0x260] sm:$0xff]
    %v3090 = vld [vmem:[%s3 + $0x268] sm:$0xff]
    %v3091 = vld [vmem:[%s3 + $0x270] sm:$0xff]
    %v3092 = vld [vmem:[%s3 + $0x278] sm:$0xff]
    %v3093 = vld [vmem:[%s3 + $0x280] sm:$0xff]
    %v3094 = vld [vmem:[%s3 + $0x288] sm:$0xff]
    %v3095 = vld [vmem:[%s3 + $0x290] sm:$0xff]
    %v3096 = vld [vmem:[%s3 + $0x298] sm:$0xff]
    %v3097 = vld [vmem:[%s3 + $0x2a0] sm:$0xff]
    %v3098 = vld [vmem:[%s3 + $0x2a8] sm:$0xff]
    %v3099 = vld [vmem:[%s3 + $0x2b0] sm:$0xff]
    %v3100 = vld [vmem:[%s3 + $0x2b8] sm:$0xff]
    %v3101 = vld [vmem:[%s3 + $0x2c0] sm:$0xff]
    %v3102 = vld [vmem:[%s3 + $0x2c8] sm:$0xff]
    %v3103 = vld [vmem:[%s3 + $0x2d0] sm:$0xff]
    %v3104 = vld [vmem:[%s3 + $0x2d8] sm:$0xff]
    %v3105 = vld [vmem:[%s3 + $0x2e0] sm:$0xff]
    %v3106 = vld [vmem:[%s3 + $0x2e8] sm:$0xff]
    %v3107 = vld [vmem:[%s3 + $0x2f0] sm:$0xff]
    %v3108 = vld [vmem:[%s3 + $0x2f8] sm:$0xff]
    %v3109 = vld [vmem:[%s3 + $0x300] sm:$0xff]
    %v3110 = vld [vmem:[%s3 + $0x308] sm:$0xff]
    %v3111 = vld [vmem:[%s3 + $0x310] sm:$0xff]
    %v3112 = vld [vmem:[%s3 + $0x318] sm:$0xff]
    %v3113 = vld [vmem:[%s3 + $0x320] sm:$0xff]
    %v3114 = vld [vmem:[%s3 + $0x328] sm:$0xff]
    %v3115 = vld [vmem:[%s3 + $0x330] sm:$0xff]
    %v3116 = vld [vmem:[%s3 + $0x338] sm:$0xff]
    %v3117 = vld [vmem:[%s3 + $0x340] sm:$0xff]
    %v3118 = vld [vmem:[%s3 + $0x348] sm:$0xff]
    %v3119 = vld [vmem:[%s3 + $0x350] sm:$0xff]
    %v3120 = vld [vmem:[%s3 + $0x358] sm:$0xff]
    %v3121 = vld [vmem:[%s3 + $0x360] sm:$0xff]
    %v3122 = vld [vmem:[%s3 + $0x368] sm:$0xff]
    %v3123 = vld [vmem:[%s3 + $0x370] sm:$0xff]
    %v3124 = vld [vmem:[%s3 + $0x378] sm:$0xff]
    %v3125 = vld [vmem:[%s3 + $0x380] sm:$0xff]
    %v3126 = vld [vmem:[%s3 + $0x388] sm:$0xff]
    %v3127 = vld [vmem:[%s3 + $0x390] sm:$0xff]
    %v3128 = vld [vmem:[%s3 + $0x398] sm:$0xff]
    %v3129 = vld [vmem:[%s3 + $0x3a0] sm:$0xff]
    %v3130 = vld [vmem:[%s3 + $0x3a8] sm:$0xff]
    %v3131 = vld [vmem:[%s3 + $0x3b0] sm:$0xff]
    %v3132 = vld [vmem:[%s3 + $0x3b8] sm:$0xff]
    %v3133 = vld [vmem:[%s3 + $0x3c0] sm:$0xff]
    %v3134 = vld [vmem:[%s3 + $0x3c8] sm:$0xff]
    %v3135 = vld [vmem:[%s3 + $0x3d0] sm:$0xff]
    %v3136 = vld [vmem:[%s3 + $0x3d8] sm:$0xff]
    %v3137 = vld [vmem:[%s3 + $0x3e0] sm:$0xff]
    %v3138 = vld [vmem:[%s3 + $0x3e8] sm:$0xff]
    %v3139 = vld [vmem:[%s3 + $0x3f0] sm:$0xff]
    %v3140 = vld [vmem:[%s3 + $0x3f8] sm:$0xff]
    %v3141 = vld [vmem:[#allocation8] sm:$0x1]
    %v3143 = vlaneseq
    %v3144 = vshrl.u32 %v3143, 7
    %v3145 = vsub.s32 0, %v3144
    %v3146 = vrot.slane %v3141, %v3145
    %3148 = vmatprep.subr.mxu0 0.0
    %3149 = vmatpush1.msra.mxu0 %v3028
    %3150 = vmatprep.subr.mxu0 0.0
    %3151 = vmatpush1.msra.mxu0 %v3027
    %3152 = vmatprep.subr.mxu0 0.0
    %3153 = vmatpush1.msra.mxu0 %v3026
    %3154 = vmatprep.subr.mxu0 0.0
    %3155 = vmatpush1.msra.mxu0 %v3025
    %3156 = vmatprep.subr.mxu0 0.0
    %3157 = vmatpush1.msra.mxu0 %v3024
    %3158 = vmatprep.subr.mxu0 0.0
    %3159 = vmatpush1.msra.mxu0 %v3023
    %3160 = vmatprep.subr.mxu0 0.0
    %3161 = vmatpush1.msra.mxu0 %v3022
    %3162 = vmatprep.subr.mxu0 0.0
    %3163 = vmatpush1.msra.mxu0 %v3021
    %3164 = vmatprep.subr.mxu0 0.0
    %3165 = vmatpush1.msra.mxu0 %v3020
    %3166 = vmatprep.subr.mxu0 0.0
    %3167 = vmatpush1.msra.mxu0 %v3019
    %3168 = vmatprep.subr.mxu0 0.0
    %3169 = vmatpush1.msra.mxu0 %v3018
    %3170 = vmatprep.subr.mxu0 0.0
    %3171 = vmatpush1.msra.mxu0 %v3017
    %3172 = vmatprep.subr.mxu0 0.0
    %3173 = vmatpush1.msra.mxu0 %v3016
    %3174 = vmatprep.subr.mxu0 0.0
    %3175 = vmatpush1.msra.mxu0 %v3015
    %3176 = vmatprep.subr.mxu0 0.0
    %3177 = vmatpush1.msra.mxu0 %v3014
    %3178 = vmatprep.subr.mxu0 0.0
    %3179 = vmatpush1.msra.mxu0 %v3013
    %3180 = vmatprep.subr.mxu0 0.0
    %3181 = vmatpush2.msra.mxu0 %v3044
    %3182 = vmatprep.subr.mxu0 0.0
    %3183 = vmatpush2.msra.mxu0 %v3043
    %3184 = vmatprep.subr.mxu0 0.0
    %3185 = vmatpush2.msra.mxu0 %v3042
    %3186 = vmatprep.subr.mxu0 0.0
    %3187 = vmatpush2.msra.mxu0 %v3041
    %3188 = vmatprep.subr.mxu0 0.0
    %3189 = vmatpush2.msra.mxu0 %v3040
    %3190 = vmatprep.subr.mxu0 0.0
    %3191 = vmatpush2.msra.mxu0 %v3039
    %3192 = vmatprep.subr.mxu0 0.0
    %3193 = vmatpush2.msra.mxu0 %v3038
    %3194 = vmatprep.subr.mxu0 0.0
    %3195 = vmatpush2.msra.mxu0 %v3037
    %3196 = vmatprep.subr.mxu0 0.0
    %3197 = vmatpush2.msra.mxu0 %v3036
    %3198 = vmatprep.subr.mxu0 0.0
    %3199 = vmatpush2.msra.mxu0 %v3035
    %3200 = vmatprep.subr.mxu0 0.0
    %3201 = vmatpush2.msra.mxu0 %v3034
    %3202 = vmatprep.subr.mxu0 0.0
    %3203 = vmatpush2.msra.mxu0 %v3033
    %3204 = vmatprep.subr.mxu0 0.0
    %3205 = vmatpush2.msra.mxu0 %v3032
    %3206 = vmatprep.subr.mxu0 0.0
    %3207 = vmatpush2.msra.mxu0 %v3031
    %3208 = vmatprep.subr.mxu0 0.0
    %3209 = vmatpush2.msra.mxu0 %v3030
    %3210 = vmatprep.subr.mxu0 0.0
    %3211 = vmatpush2.msra.mxu0 %v3029
    %3212 = vmatprep.mubr.f32.mxu0 %v2640
    %3213 = vmatmul.mubr.f32.gmra.mxu0 %v2638
    %v3214 = vpop.f32.mrf.mxu0
    %v3215 = vadd.f32 %v3146, %v3214
    %v3216 = vpop.f32.mrf.mxu0
    %3217 = vdwg.mxu0
    %3218 = vmatprep.subr.mxu0 0.0
    %3219 = vmatpush1.msra.mxu0 %v3060
    %3220 = vmatprep.subr.mxu0 0.0
    %3221 = vmatpush1.msra.mxu0 %v3059
    %3222 = vmatprep.subr.mxu0 0.0
    %3223 = vmatpush1.msra.mxu0 %v3058
    %3224 = vmatprep.subr.mxu0 0.0
    %3225 = vmatpush1.msra.mxu0 %v3057
    %3226 = vmatprep.subr.mxu0 0.0
    %3227 = vmatpush1.msra.mxu0 %v3056
    %3228 = vmatprep.subr.mxu0 0.0
    %3229 = vmatpush1.msra.mxu0 %v3055
    %3230 = vmatprep.subr.mxu0 0.0
    %3231 = vmatpush1.msra.mxu0 %v3054
    %3232 = vmatprep.subr.mxu0 0.0
    %3233 = vmatpush1.msra.mxu0 %v3053
    %3234 = vmatprep.subr.mxu0 0.0
    %3235 = vmatpush1.msra.mxu0 %v3052
    %3236 = vmatprep.subr.mxu0 0.0
    %3237 = vmatpush1.msra.mxu0 %v3051
    %3238 = vmatprep.subr.mxu0 0.0
    %3239 = vmatpush1.msra.mxu0 %v3050
    %3240 = vmatprep.subr.mxu0 0.0
    %3241 = vmatpush1.msra.mxu0 %v3049
    %3242 = vmatprep.subr.mxu0 0.0
    %3243 = vmatpush1.msra.mxu0 %v3048
    %3244 = vmatprep.subr.mxu0 0.0
    %3245 = vmatpush1.msra.mxu0 %v3047
    %3246 = vmatprep.subr.mxu0 0.0
    %3247 = vmatpush1.msra.mxu0 %v3046
    %3248 = vmatprep.subr.mxu0 0.0
    %3249 = vmatpush1.msra.mxu0 %v3045
    %3250 = vmatprep.subr.mxu0 0.0
    %3251 = vmatpush2.msra.mxu0 %v3076
    %3252 = vmatprep.subr.mxu0 0.0
    %3253 = vmatpush2.msra.mxu0 %v3075
    %3254 = vmatprep.subr.mxu0 0.0
    %3255 = vmatpush2.msra.mxu0 %v3074
    %3256 = vmatprep.subr.mxu0 0.0
    %3257 = vmatpush2.msra.mxu0 %v3073
    %3258 = vmatprep.subr.mxu0 0.0
    %3259 = vmatpush2.msra.mxu0 %v3072
    %3260 = vmatprep.subr.mxu0 0.0
    %3261 = vmatpush2.msra.mxu0 %v3071
    %3262 = vmatprep.subr.mxu0 0.0
    %3263 = vmatpush2.msra.mxu0 %v3070
    %3264 = vmatprep.subr.mxu0 0.0
    %3265 = vmatpush2.msra.mxu0 %v3069
    %3266 = vmatprep.subr.mxu0 0.0
    %3267 = vmatpush2.msra.mxu0 %v3068
    %3268 = vmatprep.subr.mxu0 0.0
    %3269 = vmatpush2.msra.mxu0 %v3067
    %3270 = vmatprep.subr.mxu0 0.0
    %3271 = vmatpush2.msra.mxu0 %v3066
    %3272 = vmatprep.subr.mxu0 0.0
    %3273 = vmatpush2.msra.mxu0 %v3065
    %3274 = vmatprep.subr.mxu0 0.0
    %3275 = vmatpush2.msra.mxu0 %v3064
    %3276 = vmatprep.subr.mxu0 0.0
    %3277 = vmatpush2.msra.mxu0 %v3063
    %3278 = vmatprep.subr.mxu0 0.0
    %3279 = vmatpush2.msra.mxu0 %v3062
    %3280 = vmatprep.subr.mxu0 0.0
    %3281 = vmatpush2.msra.mxu0 %v3061
    %3282 = vmatprep.mubr.f32.mxu0 %v2763
    %3283 = vmatmul.mubr.f32.gmra.mxu0 %v2761
    %v3284 = vpop.f32.mrf.mxu0
    %v3285 = vadd.f32 %v3215, %v3284
    %v3286 = vpop.f32.mrf.mxu0
    %3287 = vdwg.mxu0
    %3288 = vmatprep.subr.mxu0 0.0
    %3289 = vmatpush1.msra.mxu0 %v3092
    %3290 = vmatprep.subr.mxu0 0.0
    %3291 = vmatpush1.msra.mxu0 %v3091
    %3292 = vmatprep.subr.mxu0 0.0
    %3293 = vmatpush1.msra.mxu0 %v3090
    %3294 = vmatprep.subr.mxu0 0.0
    %3295 = vmatpush1.msra.mxu0 %v3089
    %3296 = vmatprep.subr.mxu0 0.0
    %3297 = vmatpush1.msra.mxu0 %v3088
    %3298 = vmatprep.subr.mxu0 0.0
    %3299 = vmatpush1.msra.mxu0 %v3087
    %3300 = vmatprep.subr.mxu0 0.0
    %3301 = vmatpush1.msra.mxu0 %v3086
    %3302 = vmatprep.subr.mxu0 0.0
    %3303 = vmatpush1.msra.mxu0 %v3085
    %3304 = vmatprep.subr.mxu0 0.0
    %3305 = vmatpush1.msra.mxu0 %v3084
    %3306 = vmatprep.subr.mxu0 0.0
    %3307 = vmatpush1.msra.mxu0 %v3083
    %3308 = vmatprep.subr.mxu0 0.0
    %3309 = vmatpush1.msra.mxu0 %v3082
    %3310 = vmatprep.subr.mxu0 0.0
    %3311 = vmatpush1.msra.mxu0 %v3081
    %3312 = vmatprep.subr.mxu0 0.0
    %3313 = vmatpush1.msra.mxu0 %v3080
    %3314 = vmatprep.subr.mxu0 0.0
    %3315 = vmatpush1.msra.mxu0 %v3079
    %3316 = vmatprep.subr.mxu0 0.0
    %3317 = vmatpush1.msra.mxu0 %v3078
    %3318 = vmatprep.subr.mxu0 0.0
    %3319 = vmatpush1.msra.mxu0 %v3077
    %3320 = vmatprep.subr.mxu0 0.0
    %3321 = vmatpush2.msra.mxu0 %v3108
    %3322 = vmatprep.subr.mxu0 0.0
    %3323 = vmatpush2.msra.mxu0 %v3107
    %3324 = vmatprep.subr.mxu0 0.0
    %3325 = vmatpush2.msra.mxu0 %v3106
    %3326 = vmatprep.subr.mxu0 0.0
    %3327 = vmatpush2.msra.mxu0 %v3105
    %3328 = vmatprep.subr.mxu0 0.0
    %3329 = vmatpush2.msra.mxu0 %v3104
    %3330 = vmatprep.subr.mxu0 0.0
    %3331 = vmatpush2.msra.mxu0 %v3103
    %3332 = vmatprep.subr.mxu0 0.0
    %3333 = vmatpush2.msra.mxu0 %v3102
    %3334 = vmatprep.subr.mxu0 0.0
    %3335 = vmatpush2.msra.mxu0 %v3101
    %3336 = vmatprep.subr.mxu0 0.0
    %3337 = vmatpush2.msra.mxu0 %v3100
    %3338 = vmatprep.subr.mxu0 0.0
    %3339 = vmatpush2.msra.mxu0 %v3099
    %3340 = vmatprep.subr.mxu0 0.0
    %3341 = vmatpush2.msra.mxu0 %v3098
    %3342 = vmatprep.subr.mxu0 0.0
    %3343 = vmatpush2.msra.mxu0 %v3097
    %3344 = vmatprep.subr.mxu0 0.0
    %3345 = vmatpush2.msra.mxu0 %v3096
    %3346 = vmatprep.subr.mxu0 0.0
    %3347 = vmatpush2.msra.mxu0 %v3095
    %3348 = vmatprep.subr.mxu0 0.0
    %3349 = vmatpush2.msra.mxu0 %v3094
    %3350 = vmatprep.subr.mxu0 0.0
    %3351 = vmatpush2.msra.mxu0 %v3093
    %3352 = vmatprep.mubr.f32.mxu0 %v2886
    %3353 = vmatmul.mubr.f32.gmra.mxu0 %v2884
    %v3354 = vpop.f32.mrf.mxu0
    %v3355 = vadd.f32 %v3285, %v3354
    %v3356 = vpop.f32.mrf.mxu0
    %3357 = vdwg.mxu0
    %3358 = vmatprep.subr.mxu0 0.0
    %3359 = vmatpush1.msra.mxu0 %v3124
    %3360 = vmatprep.subr.mxu0 0.0
    %3361 = vmatpush1.msra.mxu0 %v3123
    %3362 = vmatprep.subr.mxu0 0.0
    %3363 = vmatpush1.msra.mxu0 %v3122
    %3364 = vmatprep.subr.mxu0 0.0
    %3365 = vmatpush1.msra.mxu0 %v3121
    %3366 = vmatprep.subr.mxu0 0.0
    %3367 = vmatpush1.msra.mxu0 %v3120
    %3368 = vmatprep.subr.mxu0 0.0
    %3369 = vmatpush1.msra.mxu0 %v3119
    %3370 = vmatprep.subr.mxu0 0.0
    %3371 = vmatpush1.msra.mxu0 %v3118
    %3372 = vmatprep.subr.mxu0 0.0
    %3373 = vmatpush1.msra.mxu0 %v3117
    %3374 = vmatprep.subr.mxu0 0.0
    %3375 = vmatpush1.msra.mxu0 %v3116
    %3376 = vmatprep.subr.mxu0 0.0
    %3377 = vmatpush1.msra.mxu0 %v3115
    %3378 = vmatprep.subr.mxu0 0.0
    %3379 = vmatpush1.msra.mxu0 %v3114
    %3380 = vmatprep.subr.mxu0 0.0
    %3381 = vmatpush1.msra.mxu0 %v3113
    %3382 = vmatprep.subr.mxu0 0.0
    %3383 = vmatpush1.msra.mxu0 %v3112
    %3384 = vmatprep.subr.mxu0 0.0
    %3385 = vmatpush1.msra.mxu0 %v3111
    %3386 = vmatprep.subr.mxu0 0.0
    %3387 = vmatpush1.msra.mxu0 %v3110
    %3388 = vmatprep.subr.mxu0 0.0
    %3389 = vmatpush1.msra.mxu0 %v3109
    %3390 = vmatprep.subr.mxu0 0.0
    %3391 = vmatpush2.msra.mxu0 %v3140
    %3392 = vmatprep.subr.mxu0 0.0
    %3393 = vmatpush2.msra.mxu0 %v3139
    %3394 = vmatprep.subr.mxu0 0.0
    %3395 = vmatpush2.msra.mxu0 %v3138
    %3396 = vmatprep.subr.mxu0 0.0
    %3397 = vmatpush2.msra.mxu0 %v3137
    %3398 = vmatprep.subr.mxu0 0.0
    %3399 = vmatpush2.msra.mxu0 %v3136
    %3400 = vmatprep.subr.mxu0 0.0
    %3401 = vmatpush2.msra.mxu0 %v3135
    %3402 = vmatprep.subr.mxu0 0.0
    %3403 = vmatpush2.msra.mxu0 %v3134
    %3404 = vmatprep.subr.mxu0 0.0
    %3405 = vmatpush2.msra.mxu0 %v3133
    %3406 = vmatprep.subr.mxu0 0.0
    %3407 = vmatpush2.msra.mxu0 %v3132
    %3408 = vmatprep.subr.mxu0 0.0
    %3409 = vmatpush2.msra.mxu0 %v3131
    %3410 = vmatprep.subr.mxu0 0.0
    %3411 = vmatpush2.msra.mxu0 %v3130
    %3412 = vmatprep.subr.mxu0 0.0
    %3413 = vmatpush2.msra.mxu0 %v3129
    %3414 = vmatprep.subr.mxu0 0.0
    %3415 = vmatpush2.msra.mxu0 %v3128
    %3416 = vmatprep.subr.mxu0 0.0
    %3417 = vmatpush2.msra.mxu0 %v3127
    %3418 = vmatprep.subr.mxu0 0.0
    %3419 = vmatpush2.msra.mxu0 %v3126
    %3420 = vmatprep.subr.mxu0 0.0
    %3421 = vmatpush2.msra.mxu0 %v3125
    %3422 = vmatprep.mubr.f32.mxu0 %v3009
    %3423 = vmatmul.mubr.f32.gmra.mxu0 %v3007
    %v3424 = vpop.f32.mrf.mxu0
    %v3425 = vadd.f32 %v3355, %v3424
    %v3426 = vpop.f32.mrf.mxu0
    %3427 = vdwg.mxu0
    %v3428 = vmul.f32 %v3425, 1.702
    %v3429 = vxor.u32 %v3428, 2147483648
    %v3430 = vmul.f32 %v3429, 1.442695
    %v3431 = vpow.pop %v3430
    %v3432 = vadd.f32 %v3431, 1.0
    %v3433 = vrcp.pop %v3432
    %v3434 = vmul.f32 1.0, %v3433
    %v3435 = vmul.f32 %v3425, %v3434
    %v3436 = vld [vmem:[%s5] sm:$0xff]
    %v3437 = vld [vmem:[%s5 + $0x8] sm:$0xff]
    %v3438 = vld [vmem:[%s5 + $0x10] sm:$0xff]
    %v3439 = vld [vmem:[%s5 + $0x18] sm:$0xff]
    %v3440 = vld [vmem:[#allocation10] sm:$0x1]
    %v3442 = vlaneseq
    %v3443 = vshrl.u32 %v3442, 7
    %v3444 = vsub.s32 0, %v3443
    %v3445 = vrot.slane %v3440, %v3444
    %vm3447 = vcmask 261120
    %v3449 = vsel %vm3447, %v3435, 0
    %3451 = vmatprep.subr.mxu0 0.0
    %3452 = vmatpush1.msra.mxu0 0.0
    %3453 = vmatprep.subr.mxu0 0.0
    %3454 = vmatpush1.msra.mxu0 0.0
    %3455 = vmatprep.subr.mxu0 0.0
    %3456 = vmatpush1.msra.mxu0 0.0
    %3457 = vmatprep.subr.mxu0 0.0
    %3458 = vmatpush1.msra.mxu0 0.0
    %3459 = vmatprep.subr.mxu0 0.0
    %3460 = vmatpush1.msra.mxu0 0.0
    %3461 = vmatprep.subr.mxu0 0.0
    %3462 = vmatpush1.msra.mxu0 0.0
    %3463 = vmatprep.subr.mxu0 0.0
    %3464 = vmatpush1.msra.mxu0 0.0
    %3465 = vmatprep.subr.mxu0 0.0
    %3466 = vmatpush1.msra.mxu0 0.0
    %3467 = vmatprep.subr.mxu0 0.0
    %3468 = vmatpush1.msra.mxu0 0.0
    %3469 = vmatprep.subr.mxu0 0.0
    %3470 = vmatpush1.msra.mxu0 0.0
    %3471 = vmatprep.subr.mxu0 0.0
    %3472 = vmatpush1.msra.mxu0 0.0
    %3473 = vmatprep.subr.mxu0 0.0
    %3474 = vmatpush1.msra.mxu0 0.0
    %3475 = vmatprep.subr.mxu0 0.0
    %3476 = vmatpush1.msra.mxu0 %v3439
    %3477 = vmatprep.subr.mxu0 0.0
    %3478 = vmatpush1.msra.mxu0 %v3438
    %3479 = vmatprep.subr.mxu0 0.0
    %3480 = vmatpush1.msra.mxu0 %v3437
    %3481 = vmatprep.subr.mxu0 0.0
    %3482 = vmatpush1.msra.mxu0 %v3436
    %3483 = vmatprep.subr.mxu0 0.0
    %3484 = vmatpush2.msra.mxu0 0.0
    %3485 = vmatprep.subr.mxu0 0.0
    %3486 = vmatpush2.msra.mxu0 0.0
    %3487 = vmatprep.subr.mxu0 0.0
    %3488 = vmatpush2.msra.mxu0 0.0
    %3489 = vmatprep.subr.mxu0 0.0
    %3490 = vmatpush2.msra.mxu0 0.0
    %3491 = vmatprep.subr.mxu0 0.0
    %3492 = vmatpush2.msra.mxu0 0.0
    %3493 = vmatprep.subr.mxu0 0.0
    %3494 = vmatpush2.msra.mxu0 0.0
    %3495 = vmatprep.subr.mxu0 0.0
    %3496 = vmatpush2.msra.mxu0 0.0
    %3497 = vmatprep.subr.mxu0 0.0
    %3498 = vmatpush2.msra.mxu0 0.0
    %3499 = vmatprep.subr.mxu0 0.0
    %3500 = vmatpush2.msra.mxu0 0.0
    %3501 = vmatprep.subr.mxu0 0.0
    %3502 = vmatpush2.msra.mxu0 0.0
    %3503 = vmatprep.subr.mxu0 0.0
    %3504 = vmatpush2.msra.mxu0 0.0
    %3505 = vmatprep.subr.mxu0 0.0
    %3506 = vmatpush2.msra.mxu0 0.0
    %3507 = vmatprep.subr.mxu0 0.0
    %3508 = vmatpush2.msra.mxu0 0.0
    %3509 = vmatprep.subr.mxu0 0.0
    %3510 = vmatpush2.msra.mxu0 0.0
    %3511 = vmatprep.subr.mxu0 0.0
    %3512 = vmatpush2.msra.mxu0 0.0
    %3513 = vmatprep.subr.mxu0 0.0
    %3514 = vmatpush2.msra.mxu0 0.0
    %3515 = vmatprep.mubr.f32.mxu0 0.0
    %3516 = vmatmul.mubr.f32.gmra.mxu0 %v3449
    %v3517 = vpop.f32.mrf.mxu0
    %v3518 = vadd.f32 %v3445, %v3517
    %v3519 = vpop.f32.mrf.mxu0
    %3520 = vdwg.mxu0
    %v3521 = vmul.f32 %v3518, 1.702
    %v3522 = vxor.u32 %v3521, 2147483648
    %v3523 = vmul.f32 %v3522, 1.442695
    %v3524 = vpow.pop %v3523
    %v3525 = vadd.f32 %v3524, 1.0
    %v3526 = vrcp.pop %v3525
    %v3527 = vmul.f32 1.0, %v3526
    %v3528 = vmul.f32 %v3518, %v3527
    %v3529 = vld [vmem:[%s7] sm:$0xff]
    %v3530 = vld [vmem:[%s7 + $0x8] sm:$0xff]
    %v3531 = vld [vmem:[#allocation11] sm:$0x1]
    %v3533 = vlaneseq
    %v3534 = vshrl.u32 %v3533, 7
    %v3535 = vsub.s32 0, %v3534
    %v3536 = vrot.slane %v3531, %v3535
    %vm3538 = vcmask 130048
    %v3540 = vsel %vm3538, %v3528, 0
    %3542 = vmatprep.subr.mxu0 0.0
    %3543 = vmatpush1.msra.mxu0 0.0
    %3544 = vmatprep.subr.mxu0 0.0
    %3545 = vmatpush1.msra.mxu0 0.0
    %3546 = vmatprep.subr.mxu0 0.0
    %3547 = vmatpush1.msra.mxu0 0.0
    %3548 = vmatprep.subr.mxu0 0.0
    %3549 = vmatpush1.msra.mxu0 0.0
    %3550 = vmatprep.subr.mxu0 0.0
    %3551 = vmatpush1.msra.mxu0 0.0
    %3552 = vmatprep.subr.mxu0 0.0
    %3553 = vmatpush1.msra.mxu0 0.0
    %3554 = vmatprep.subr.mxu0 0.0
    %3555 = vmatpush1.msra.mxu0 0.0
    %3556 = vmatprep.subr.mxu0 0.0
    %3557 = vmatpush1.msra.mxu0 0.0
    %3558 = vmatprep.subr.mxu0 0.0
    %3559 = vmatpush1.msra.mxu0 0.0
    %3560 = vmatprep.subr.mxu0 0.0
    %3561 = vmatpush1.msra.mxu0 0.0
    %3562 = vmatprep.subr.mxu0 0.0
    %3563 = vmatpush1.msra.mxu0 0.0
    %3564 = vmatprep.subr.mxu0 0.0
    %3565 = vmatpush1.msra.mxu0 0.0
    %3566 = vmatprep.subr.mxu0 0.0
    %3567 = vmatpush1.msra.mxu0 0.0
    %3568 = vmatprep.subr.mxu0 0.0
    %3569 = vmatpush1.msra.mxu0 0.0
    %3570 = vmatprep.subr.mxu0 0.0
    %3571 = vmatpush1.msra.mxu0 %v3530
    %3572 = vmatprep.subr.mxu0 0.0
    %3573 = vmatpush1.msra.mxu0 %v3529
    %3574 = vmatprep.subr.mxu0 0.0
    %3575 = vmatpush2.msra.mxu0 0.0
    %3576 = vmatprep.subr.mxu0 0.0
    %3577 = vmatpush2.msra.mxu0 0.0
    %3578 = vmatprep.subr.mxu0 0.0
    %3579 = vmatpush2.msra.mxu0 0.0
    %3580 = vmatprep.subr.mxu0 0.0
    %3581 = vmatpush2.msra.mxu0 0.0
    %3582 = vmatprep.subr.mxu0 0.0
    %3583 = vmatpush2.msra.mxu0 0.0
    %3584 = vmatprep.subr.mxu0 0.0
    %3585 = vmatpush2.msra.mxu0 0.0
    %3586 = vmatprep.subr.mxu0 0.0
    %3587 = vmatpush2.msra.mxu0 0.0
    %3588 = vmatprep.subr.mxu0 0.0
    %3589 = vmatpush2.msra.mxu0 0.0
    %3590 = vmatprep.subr.mxu0 0.0
    %3591 = vmatpush2.msra.mxu0 0.0
    %3592 = vmatprep.subr.mxu0 0.0
    %3593 = vmatpush2.msra.mxu0 0.0
    %3594 = vmatprep.subr.mxu0 0.0
    %3595 = vmatpush2.msra.mxu0 0.0
    %3596 = vmatprep.subr.mxu0 0.0
    %3597 = vmatpush2.msra.mxu0 0.0
    %3598 = vmatprep.subr.mxu0 0.0
    %3599 = vmatpush2.msra.mxu0 0.0
    %3600 = vmatprep.subr.mxu0 0.0
    %3601 = vmatpush2.msra.mxu0 0.0
    %3602 = vmatprep.subr.mxu0 0.0
    %3603 = vmatpush2.msra.mxu0 0.0
    %3604 = vmatprep.subr.mxu0 0.0
    %3605 = vmatpush2.msra.mxu0 0.0
    %3606 = vmatprep.mubr.f32.mxu0 0.0
    %3607 = vmatmul.mubr.f32.gmra.mxu0 %v3540
    %v3608 = vpop.f32.mrf.mxu0
    %v3609 = vadd.f32 %v3536, %v3608
    %v3610 = vpop.f32.mrf.mxu0
    %3611 = vdwg.mxu0
    %v3612 = vmul.f32 %v3609, 1.702
    %v3613 = vxor.u32 %v3612, 2147483648
    %v3614 = vmul.f32 %v3613, 1.442695
    %v3615 = vpow.pop %v3614
    %v3616 = vadd.f32 %v3615, 1.0
    %v3617 = vrcp.pop %v3616
    %v3618 = vmul.f32 1.0, %v3617
    %v3619 = vmul.f32 %v3609, %v3618
    %v3620 = vld [vmem:[#allocation13] sm:$0xff]
    %v3621 = vld [vmem:[#allocation14] sm:$0x1]
    %v3623 = vlaneseq
    %v3624 = vshrl.u32 %v3623, 7
    %v3625 = vsub.s32 0, %v3624
    %v3626 = vrot.slane %v3621, %v3625
    %vm3628 = vcmask 64512
    %v3630 = vsel %vm3628, %v3619, 0
    %3632 = vmatprep.subr.mxu0 0.0
    %3633 = vmatpush1.msra.mxu0 0.0
    %3634 = vmatprep.subr.mxu0 0.0
    %3635 = vmatpush1.msra.mxu0 0.0
    %3636 = vmatprep.subr.mxu0 0.0
    %3637 = vmatpush1.msra.mxu0 0.0
    %3638 = vmatprep.subr.mxu0 0.0
    %3639 = vmatpush1.msra.mxu0 0.0
    %3640 = vmatprep.subr.mxu0 0.0
    %3641 = vmatpush1.msra.mxu0 0.0
    %3642 = vmatprep.subr.mxu0 0.0
    %3643 = vmatpush1.msra.mxu0 0.0
    %3644 = vmatprep.subr.mxu0 0.0
    %3645 = vmatpush1.msra.mxu0 0.0
    %3646 = vmatprep.subr.mxu0 0.0
    %3647 = vmatpush1.msra.mxu0 0.0
    %3648 = vmatprep.subr.mxu0 0.0
    %3649 = vmatpush1.msra.mxu0 0.0
    %3650 = vmatprep.subr.mxu0 0.0
    %3651 = vmatpush1.msra.mxu0 0.0
    %3652 = vmatprep.subr.mxu0 0.0
    %3653 = vmatpush1.msra.mxu0 0.0
    %3654 = vmatprep.subr.mxu0 0.0
    %3655 = vmatpush1.msra.mxu0 0.0
    %3656 = vmatprep.subr.mxu0 0.0
    %3657 = vmatpush1.msra.mxu0 0.0
    %3658 = vmatprep.subr.mxu0 0.0
    %3659 = vmatpush1.msra.mxu0 0.0
    %3660 = vmatprep.subr.mxu0 0.0
    %3661 = vmatpush1.msra.mxu0 0.0
    %3662 = vmatprep.subr.mxu0 0.0
    %3663 = vmatpush1.msra.mxu0 %v3620
    %3664 = vmatprep.subr.mxu0 0.0
    %3665 = vmatpush2.msra.mxu0 0.0
    %3666 = vmatprep.subr.mxu0 0.0
    %3667 = vmatpush2.msra.mxu0 0.0
    %3668 = vmatprep.subr.mxu0 0.0
    %3669 = vmatpush2.msra.mxu0 0.0
    %3670 = vmatprep.subr.mxu0 0.0
    %3671 = vmatpush2.msra.mxu0 0.0
    %3672 = vmatprep.subr.mxu0 0.0
    %3673 = vmatpush2.msra.mxu0 0.0
    %3674 = vmatprep.subr.mxu0 0.0
    %3675 = vmatpush2.msra.mxu0 0.0
    %3676 = vmatprep.subr.mxu0 0.0
    %3677 = vmatpush2.msra.mxu0 0.0
    %3678 = vmatprep.subr.mxu0 0.0
    %3679 = vmatpush2.msra.mxu0 0.0
    %3680 = vmatprep.subr.mxu0 0.0
    %3681 = vmatpush2.msra.mxu0 0.0
    %3682 = vmatprep.subr.mxu0 0.0
    %3683 = vmatpush2.msra.mxu0 0.0
    %3684 = vmatprep.subr.mxu0 0.0
    %3685 = vmatpush2.msra.mxu0 0.0
    %3686 = vmatprep.subr.mxu0 0.0
    %3687 = vmatpush2.msra.mxu0 0.0
    %3688 = vmatprep.subr.mxu0 0.0
    %3689 = vmatpush2.msra.mxu0 0.0
    %3690 = vmatprep.subr.mxu0 0.0
    %3691 = vmatpush2.msra.mxu0 0.0
    %3692 = vmatprep.subr.mxu0 0.0
    %3693 = vmatpush2.msra.mxu0 0.0
    %3694 = vmatprep.subr.mxu0 0.0
    %3695 = vmatpush2.msra.mxu0 0.0
    %3696 = vmatprep.mubr.f32.mxu0 0.0
    %3697 = vmatmul.mubr.f32.gmra.mxu0 %v3630
    %v3698 = vpop.f32.mrf.mxu0
    %v3699 = vadd.f32 %v3626, %v3698
    %v3700 = vpop.f32.mrf.mxu0
    %3701 = vdwg.mxu0
    %vm3702 = vcmask 41984
    %3703 = vst.msk [vmem:[#allocation16] sm:$0x3] %vm3702, %v3699
    // Predicated region
    $region78: #{tpu_custom_call.1} parent=1 // pred_check
      _
    $region79: #{tpu_custom_call.1} parent=1 // pred_check_branch
      %3705 = sbr.rel (0) target = $region81
    $region80: #{tpu_custom_call.1} parent=1 // pred_region
      %s3707 = ssub.s32 32, 32
      %3708 = vsyncadd [#allocation4], %s3707
      %s3710 = sshll.u32 [#allocation16], 4
      %s3711 = int_to_ptr.vmem [resolvable:$true] %s3710
      %3713 = dma.vmem_to_hbm [thread:$0]  %s3711, 32, %s11, [#allocation4]
    $region81: #{tpu_custom_call.1} parent=1 // pred_fallthru
      _
    // Predicated region
    $region82: #{tpu_custom_call.1} parent=1 // pred_check
      _
    $region83: #{tpu_custom_call.1} parent=1 // pred_check_branch
      %3715 = sbr.rel (0) target = $region85
    $region84: #{tpu_custom_call.1} parent=1 // pred_region
      %3716 = dma.done [#allocation4], 32
    $region85: #{tpu_custom_call.1} parent=1 // pred_fallthru
      _
    %3717 = vsyncpa [#allocation3], 1
    %3718 = vsyncpa [#allocation6], 1
    %3719 = vsyncpa [#allocation9], 1
    %3720 = vsyncpa [#allocation12], 1
    %3721 = vsyncpa [#allocation15], 1
    %3722 = vsyncpa [#allocation4], 1

</llo_original>
